<compile_context>
chip_gen: v7x
topology: tpu7x:2x2x1
jax: 0.10.0
libtpu: 0.0.40
codegen_flags: <defaults>
</compile_context>

<pallas_src>
import functools

import jax
import jax.numpy as jnp
from jax.experimental import pallas as pl
from jax.experimental.pallas import tpu as pltpu

FEATURE_DIM = 128   # SimCLR projection dim
ENC_C = 1280        # MobileNetV2 feature channels
HID = 512           # projector hidden dim


def simclr_head_kernel(h_ref, w1_ref, b1_ref, w2_ref, b2_ref, out_ref, acc_ref,
                       *, inv_hw):
    hw_step = pl.program_id(1)

    @pl.when(hw_step == 0)
    def _():
        acc_ref[...] = jnp.zeros_like(acc_ref)

    # Running pooled SUM over this HW tile. f32 accumulation without materializing a
    # full f32 copy of the (bt, hwt, C) tile (per review: dtype= instead of astype).
    acc_ref[...] += jnp.sum(h_ref[...], axis=1, dtype=jnp.float32)   # (bt, C) f32

    @pl.when(hw_step == pl.num_programs(1) - 1)
    def _():
        # adaptive_avg_pool2d((1,1)) + flatten: apply the 1/HW scale once at the end.
        pooled = acc_ref[...] * inv_hw                                # (bt, C) f32

        # projector: Linear(1280,512) -> ReLU -> Linear(512,128) on the MXU.
        z1 = jnp.dot(pooled.astype(w1_ref.dtype), w1_ref[...],
                     preferred_element_type=jnp.float32) + b1_ref[...]
        z1 = jnp.maximum(z1, 0.0)
        z2 = jnp.dot(z1.astype(w2_ref.dtype), w2_ref[...],
                     preferred_element_type=jnp.float32) + b2_ref[...]

        # F.normalize(z, dim=1): z / max(||z||, 1e-12) == z * rsqrt(max(sum(z^2), 1e-24)).
        ssq = jnp.sum(z2 * z2, axis=1, keepdims=True)
        out_ref[...] = (z2 * jax.lax.rsqrt(jnp.maximum(ssq, 1e-24))).astype(out_ref.dtype)


def _pick_bt(B, max_bt):
    """Largest batch tile <= max_bt that divides B (multiple of 8 when tiling)."""
    if B <= max_bt:
        return B, 0
    start = max(8, max_bt - max_bt % 8)
    for cand in range(start, 7, -8):
        if B % cand == 0:
            return cand, 0
    # Rare fallback: pad the batch (padded rows run through the epilogue on bias-only
    # data and are sliced off afterwards).
    bt = start
    return bt, (-B) % bt


def _pick_hwt(bt, HW, C, h_bytes, budget):
    """Largest divisor-of-HW tile (stepping by 16 for bf16 sublane packing, else 8)
    whose (bt, hwt, C) block fits `budget` bytes; smallest legal tile otherwise."""
    step = 16 if HW % 16 == 0 else 8
    best = step
    for cand in range(step, HW + 1, step):
        if HW % cand == 0 and bt * cand * C * h_bytes <= budget:
            best = cand
    return best


def _choose_tiles(B, HW, C, h_bytes, *, max_bt=128, h_buf_budget=12 << 20):
    """Co-tune (bt, hwt) against a per-buffer VMEM budget for the feature-map tile."""
    if HW % 8 != 0:
        # HW cannot be tiled to a legal sublane multiple (e.g. MobileNetV2 7x7 -> 49):
        # keep HW untiled and shrink the batch tile so two h buffers fit the budget.
        cap = h_buf_budget // (HW * C * h_bytes)
        cap = max(8, (cap // 8) * 8)
        bt, pad_b = _pick_bt(B, min(max_bt, cap))
        return bt, pad_b, HW
    bt, pad_b = _pick_bt(B, max_bt)
    hwt = _pick_hwt(bt, HW, C, h_bytes, h_buf_budget)
    return bt, pad_b, hwt


def simclr_head(h, w1, b1, w2, b2, *, max_bt=128, hwt=None, out_dtype=jnp.float32):
    """h: (B, HW, C) channels-last, spatially flattened encoder feature map (any float dtype)."""
    B, HW, C = h.shape
    h_bytes = jnp.dtype(h.dtype).itemsize

    # Small weight / bias operands: bf16 on the MXU, f32 bias add (negligible HBM cost).
    w1 = w1.astype(jnp.bfloat16)
    w2 = w2.astype(jnp.bfloat16)
    b1 = jnp.asarray(b1, jnp.float32).reshape(1, -1)
    b2 = jnp.asarray(b2, jnp.float32).reshape(1, -1)
    hid = w1.shape[1]
    fdim = w2.shape[1]

    bt, pad_b, auto_hwt = _choose_tiles(B, HW, C, h_bytes, max_bt=max_bt)
    if hwt is None or HW % hwt != 0 or (hwt % 8 != 0 and hwt != HW):
        hwt = auto_hwt
    if pad_b:
        # TODO(synk): rare path — prefer batch sizes with a divisor <= max_bt so the
        # feature map is never copied for padding.
        h = jnp.pad(h, ((0, pad_b), (0, 0), (0, 0)))
    Bp = B + pad_b

    grid = (Bp // bt, HW // hwt)   # batch tiles (parallel) x HW reduction (arbitrary, last)

    # VMEM plan: double-buffered h tiles + double-buffered grid-invariant weights/biases
    # + f32 pooled-sum accumulator + double-buffered output block, plus slack.
    w_bytes = 2 * 2 * (C * hid + hid * fdim) + 2 * 4 * (hid + fdim)
    vmem_needed = (2 * bt * hwt * C * h_bytes + w_bytes
                   + bt * C * 4 + 2 * bt * fdim * 4 + (4 << 20))
    vmem_limit = int(min(max(vmem_needed, 32 << 20), 64 << 20))  # <= v7x physical VMEM

    cost = pl.CostEstimate(
        flops=2 * Bp * (C * hid + hid * fdim) + Bp * HW * C,
        transcendentals=Bp,
        bytes_accessed=(Bp * HW * C * h_bytes + 2 * (C * hid + hid * fdim)
                        + 4 * (hid + fdim) + Bp * fdim * 4),
    )

    out = pl.pallas_call(
        functools.partial(simclr_head_kernel, inv_hw=1.0 / HW),
        out_shape=jax.ShapeDtypeStruct((Bp, fdim), out_dtype),
        grid=grid,
        in_specs=[
            pl.BlockSpec((bt, hwt, C), lambda i, j: (i, j, 0)),   # feature-map tile
            pl.BlockSpec((C, hid), lambda i, j: (0, 0)),          # W1 (grid-invariant)
            pl.BlockSpec((1, hid), lambda i, j: (0, 0)),          # b1
            pl.BlockSpec((hid, fdim), lambda i, j: (0, 0)),       # W2 (grid-invariant)
            pl.BlockSpec((1, fdim), lambda i, j: (0, 0)),         # b2
        ],
        out_specs=pl.BlockSpec((bt, fdim), lambda i, j: (i, 0)),  # lane-dense (bt, 128)
        scratch_shapes=[pltpu.VMEM((bt, C), jnp.float32)],        # pooled-sum accumulator
        compiler_params=pltpu.CompilerParams(
            dimension_semantics=("parallel", "arbitrary"),
            vmem_limit_bytes=vmem_limit),
        cost_estimate=cost,
    )(h, w1, b1, w2, b2)
    return out[:B]


if __name__ == "__main__":
    key = jax.random.PRNGKey(0)
    k_x, k_we, k_w1, k_b1, k_w2, k_b2 = jax.random.split(key, 6)

    # Small shapes consistent with the module's forward.
    B, Cin, H, W = 2, 4, 16, 16
    x = jax.random.normal(k_x, (B, Cin, H, W), dtype=jnp.float32)   # NCHW (PyTorch convention)

    # Deterministic synthetic parameters, stored as (in, out) so z = h @ W + b (== x @ W.T + b).
    we = jax.random.normal(k_we, (Cin, ENC_C), jnp.float32) * 0.1
    w1 = jax.random.normal(k_w1, (ENC_C, HID), jnp.float32) * 0.02
    b1 = jax.random.normal(k_b1, (HID,), jnp.float32) * 0.01
    w2 = jax.random.normal(k_w2, (HID, FEATURE_DIM), jnp.float32) * 0.02
    b2 = jax.random.normal(k_b2, (FEATURE_DIM,), jnp.float32) * 0.01

    # TODO(synk): base_encoder is an externally injected MobileNetV2 feature extractor; it is
    # replaced here by a deterministic 1x1-conv + ReLU6 stand-in that emits the (B, HW, 1280)
    # channels-last bf16 feature map the head consumes (bf16 at the source, so the kernel
    # reads the dominant operand exactly once — no wrapper-side cast pass).
    x_hwc = jnp.transpose(x, (0, 2, 3, 1)).reshape(B, H * W, Cin)    # NCHW -> (B, HW, Cin)
    h_feat = jnp.clip(x_hwc @ we, 0.0, 6.0).astype(jnp.bfloat16)     # (B, HW, 1280) bf16

    # hwt=64 forces 4 HW reduction steps so the accumulator path is exercised.
    z = simclr_head(h_feat, w1, b1, w2, b2, hwt=64)
    jax.block_until_ready(z)

    # Pure-JAX reference of the head in the same precision regime
    # (bf16 feature map / MXU operands, f32 accumulation), matching the kernel.
    pooled = jnp.mean(h_feat.astype(jnp.float32), axis=1)
    z1 = jnp.maximum(
        jnp.dot(pooled.astype(jnp.bfloat16), w1.astype(jnp.bfloat16),
                preferred_element_type=jnp.float32) + b1[None, :], 0.0)
    z2 = jnp.dot(z1.astype(jnp.bfloat16), w2.astype(jnp.bfloat16),
                 preferred_element_type=jnp.float32) + b2[None, :]
    z_ref = z2 / jnp.maximum(jnp.linalg.norm(z2, axis=1, keepdims=True), 1e-12)

    assert z.shape == (B, FEATURE_DIM)
    assert jnp.allclose(z, z_ref, atol=2e-2), "mismatch vs reference"

    print("KERNEL_OK")
</pallas_src>

<mosaic_0001>
module attributes {stable_mosaic.version = 11 : i64} {
  func.func @simclr_head_kernel(%arg0: i32, %arg1: i32, %arg2: memref<2x64x1280xbf16, #tpu.memory_space<vmem>>, %arg3: memref<1280x512xbf16, #tpu.memory_space<vmem>>, %arg4: memref<1x512xf32, #tpu.memory_space<vmem>>, %arg5: memref<512x128xbf16, #tpu.memory_space<vmem>>, %arg6: memref<1x128xf32, #tpu.memory_space<vmem>>, %arg7: memref<2x128xf32, #tpu.memory_space<vmem>>, %arg8: memref<2x1280xf32, #tpu.memory_space<vmem>>) attributes {dimension_semantics = [#tpu.dimension_semantics<parallel>, #tpu.dimension_semantics<arbitrary>], iteration_bounds = array<i64: 1, 4>, scalar_prefetch = 0 : i64, scratch_operands = 1 : i64, tpu.core_type = #tpu.core_type<tc>, window_params = [{transform_indices = @transform_0, window_bounds = array<i64: 2, 64, 1280>}, {pipeline_mode = #tpu.pipeline_mode<synchronous>, transform_indices = @transform_1, window_bounds = array<i64: 1280, 512>}, {pipeline_mode = #tpu.pipeline_mode<synchronous>, transform_indices = @transform_2, window_bounds = array<i64: 1, 512>}, {pipeline_mode = #tpu.pipeline_mode<synchronous>, transform_indices = @transform_3, window_bounds = array<i64: 512, 128>}, {pipeline_mode = #tpu.pipeline_mode<synchronous>, transform_indices = @transform_4, window_bounds = array<i64: 1, 128>}, {transform_indices = @transform_5, window_bounds = array<i64: 2, 128>}]} {
    %c0_i32 = arith.constant 0 : i32
    %0 = arith.cmpi eq, %arg1, %c0_i32 : i32
    %1 = arith.extui %0 : i1 to i32
    %c0_i32_0 = arith.constant 0 : i32
    %2 = arith.cmpi ne, %1, %c0_i32_0 : i32
    scf.if %2 {
      %cst_8 = arith.constant 0.000000e+00 : f32
      %12 = vector.broadcast %cst_8 : f32 to vector<2x1280xf32>
      %c0_9 = arith.constant 0 : index
      %c0_10 = arith.constant 0 : index
      %13 = vector.load %arg8[%c0_9, %c0_10] : memref<2x1280xf32, #tpu.memory_space<vmem>>, vector<2x1280xf32>
      tpu.vector_store %arg8[%c0_9, %c0_10], %12 {strides = array<i32>} : memref<2x1280xf32, #tpu.memory_space<vmem>>, vector<2x1280xf32>,
    } else {
    }
    %c0 = arith.constant 0 : index
    %c0_1 = arith.constant 0 : index
    %3 = vector.load %arg8[%c0, %c0_1] : memref<2x1280xf32, #tpu.memory_space<vmem>>, vector<2x1280xf32>
    %c0_2 = arith.constant 0 : index
    %c0_3 = arith.constant 0 : index
    %c0_4 = arith.constant 0 : index
    %4 = vector.load %arg2[%c0_2, %c0_3, %c0_4] : memref<2x64x1280xbf16, #tpu.memory_space<vmem>>, vector<2x64x1280xbf16>
    %5 = arith.extf %4 : vector<2x64x1280xbf16> to vector<2x64x1280xf32>
    %cst = arith.constant dense<0.000000e+00> : vector<2x1280xf32>
    %6 = vector.multi_reduction <add>, %5, %cst [1] : vector<2x64x1280xf32> to vector<2x1280xf32>
    %7 = arith.addf %3, %6 : vector<2x1280xf32>
    %c0_5 = arith.constant 0 : index
    %c0_6 = arith.constant 0 : index
    %8 = vector.load %arg8[%c0_5, %c0_6] : memref<2x1280xf32, #tpu.memory_space<vmem>>, vector<2x1280xf32>
    tpu.vector_store %arg8[%c0_5, %c0_6], %7 {strides = array<i32>} : memref<2x1280xf32, #tpu.memory_space<vmem>>, vector<2x1280xf32>,
    %c3_i32 = arith.constant 3 : i32
    %9 = arith.cmpi eq, %arg1, %c3_i32 : i32
    %10 = arith.extui %9 : i1 to i32
    %c0_i32_7 = arith.constant 0 : i32
    %11 = arith.cmpi ne, %10, %c0_i32_7 : i32
    scf.if %11 {
      %c0_8 = arith.constant 0 : index
      %c0_9 = arith.constant 0 : index
      %12 = vector.load %arg8[%c0_8, %c0_9] : memref<2x1280xf32, #tpu.memory_space<vmem>>, vector<2x1280xf32>
      %cst_10 = arith.constant 3.906250e-03 : f32
      %13 = vector.broadcast %cst_10 : f32 to vector<2x1280xf32>
      %14 = arith.mulf %12, %13 : vector<2x1280xf32>
      %15 = arith.truncf %14 : vector<2x1280xf32> to vector<2x1280xbf16>
      %c0_11 = arith.constant 0 : index
      %c0_12 = arith.constant 0 : index
      %16 = vector.load %arg3[%c0_11, %c0_12] : memref<1280x512xbf16, #tpu.memory_space<vmem>>, vector<1280x512xbf16>
      %cst_13 = arith.constant dense<0.000000e+00> : vector<2x512xf32>
      %17 = tpu.matmul %15, %16, %cst_13 {dimension_numbers = #tpu.dot_dimension_numbers<[1], [0], [0], [1], [0, 0, 1, 1], [], []>} : vector<2x1280xbf16>, vector<1280x512xbf16>, vector<2x512xf32> -> vector<2x512xf32>
      %c0_14 = arith.constant 0 : index
      %c0_15 = arith.constant 0 : index
      %18 = vector.load %arg4[%c0_14, %c0_15] : memref<1x512xf32, #tpu.memory_space<vmem>>, vector<1x512xf32>
      %19 = vector.broadcast %18 : vector<1x512xf32> to vector<2x512xf32>
      %20 = arith.addf %17, %19 : vector<2x512xf32>
      %cst_16 = arith.constant 0.000000e+00 : f32
      %21 = vector.broadcast %cst_16 : f32 to vector<2x512xf32>
      %22 = arith.maximumf %20, %21 : vector<2x512xf32>
      %23 = arith.truncf %22 : vector<2x512xf32> to vector<2x512xbf16>
      %c0_17 = arith.constant 0 : index
      %c0_18 = arith.constant 0 : index
      %24 = vector.load %arg5[%c0_17, %c0_18] : memref<512x128xbf16, #tpu.memory_space<vmem>>, vector<512x128xbf16>
      %cst_19 = arith.constant dense<0.000000e+00> : vector<2x128xf32>
      %25 = tpu.matmul %23, %24, %cst_19 {dimension_numbers = #tpu.dot_dimension_numbers<[1], [0], [0], [1], [0, 0, 1, 1], [], []>} : vector<2x512xbf16>, vector<512x128xbf16>, vector<2x128xf32> -> vector<2x128xf32>
      %c0_20 = arith.constant 0 : index
      %c0_21 = arith.constant 0 : index
      %26 = vector.load %arg6[%c0_20, %c0_21] : memref<1x128xf32, #tpu.memory_space<vmem>>, vector<1x128xf32>
      %27 = vector.broadcast %26 : vector<1x128xf32> to vector<2x128xf32>
      %28 = arith.addf %25, %27 : vector<2x128xf32>
      %29 = arith.mulf %28, %28 : vector<2x128xf32>
      %cst_22 = arith.constant dense<0.000000e+00> : vector<2xf32>
      %30 = vector.multi_reduction <add>, %29, %cst_22 [1] : vector<2x128xf32> to vector<2xf32>
      %31 = vector.shape_cast %30 : vector<2xf32> to vector<2x1xf32>
      %cst_23 = arith.constant 1.000000e-24 : f32
      %32 = vector.broadcast %cst_23 : f32 to vector<2x1xf32>
      %33 = arith.maximumf %31, %32 : vector<2x1xf32>
      %34 = math.rsqrt %33 : vector<2x1xf32>
      %35 = vector.broadcast %34 : vector<2x1xf32> to vector<2x128xf32>
      %36 = arith.mulf %28, %35 : vector<2x128xf32>
      %c0_24 = arith.constant 0 : index
      %c0_25 = arith.constant 0 : index
      %37 = vector.load %arg7[%c0_24, %c0_25] : memref<2x128xf32, #tpu.memory_space<vmem>>, vector<2x128xf32>
      tpu.vector_store %arg7[%c0_24, %c0_25], %36 {strides = array<i32>} : memref<2x128xf32, #tpu.memory_space<vmem>>, vector<2x128xf32>,
    } else {
    }
    return
  }
  func.func @transform_0(%arg0: i32, %arg1: i32) -> (i32, i32, i32) {
    %c0_i32 = arith.constant 0 : i32
    %c0_i32_0 = arith.constant 0 : i32
    return %arg0, %arg1, %c0_i32 : i32, i32, i32
  }
  func.func @transform_1(%arg0: i32, %arg1: i32) -> (i32, i32) {
    %c0_i32 = arith.constant 0 : i32
    %c0_i32_0 = arith.constant 0 : i32
    %c0_i32_1 = arith.constant 0 : i32
    return %c0_i32, %c0_i32_0 : i32, i32
  }
  func.func @transform_2(%arg0: i32, %arg1: i32) -> (i32, i32) {
    %c0_i32 = arith.constant 0 : i32
    %c0_i32_0 = arith.constant 0 : i32
    %c0_i32_1 = arith.constant 0 : i32
    return %c0_i32, %c0_i32_0 : i32, i32
  }
  func.func @transform_3(%arg0: i32, %arg1: i32) -> (i32, i32) {
    %c0_i32 = arith.constant 0 : i32
    %c0_i32_0 = arith.constant 0 : i32
    %c0_i32_1 = arith.constant 0 : i32
    return %c0_i32, %c0_i32_0 : i32, i32
  }
  func.func @transform_4(%arg0: i32, %arg1: i32) -> (i32, i32) {
    %c0_i32 = arith.constant 0 : i32
    %c0_i32_0 = arith.constant 0 : i32
    %c0_i32_1 = arith.constant 0 : i32
    return %c0_i32, %c0_i32_0 : i32, i32
  }
  func.func @transform_5(%arg0: i32, %arg1: i32) -> (i32, i32) {
    %c0_i32 = arith.constant 0 : i32
    %c0_i32_0 = arith.constant 0 : i32
    return %arg0, %c0_i32 : i32, i32
  }
}

</mosaic_0001>

<llo_original>
// kernel: tpu_custom_call.1
$region0: #{tpu_custom_call.1}
  #allocation0 [shape = 'u32[]', space=smem, size = 0x4, offset = 0x4, fixed_abs, tag = 'smem constant byte address 0x4 - core index']
  #allocation1 [shape = 'u32[144,128]{1,0:T(1,128)}', space=vmem, size = 0x12000, scoped, tag = 'internal scratch']
  #allocation2 [shape = 'f32[2,1280]{1,0:T(2,128)}', space=vmem, size = 0x2800, scoped, tag = 'scratch operand']
  #allocation13 [shape = 's32[]', space=sflag, size = 0x4, offset = 0, fixed_abs, tag = 'sflag constant byte address 0x0 - dummy sync flag']
  %s0 = inlined_call_operand.hbm [shape: bf16[2,256,1280], index: 0, kind: input, shape index: {}]
  %s1 = inlined_call_operand.hbm [shape: bf16[1280,512], index: 1, kind: input, shape index: {}]
  %s2 = inlined_call_operand.hbm [shape: f32[1,512], index: 2, kind: input, shape index: {}]
  %s3 = inlined_call_operand.hbm [shape: bf16[512,128], index: 3, kind: input, shape index: {}]
  %s4 = inlined_call_operand.hbm [shape: f32[1,128], index: 4, kind: input, shape index: {}]
  %s5 = inlined_call_operand.hbm [shape: f32[2,128], index: 5, kind: output, shape index: {}]
  %s6 = sld [smem:[#allocation0]]
  $region81: #{tpu_custom_call.1} parent=0
    _
  %s8 = ssub.s32 1, %s6
  %s9 = scalar_select 0, %s8, %s6
  $region1: #{tpu_custom_call.1} parent=0
    #allocation3 [shape = 'u8[655360]{0}', space=vmem, size = 0xa0000, scoped, tag = 'input window, operand 0']
    #allocation4 [shape = 's32[2]{0}', space=sflag, size = 0x8, scoped, tag = 'scoped memory for tpu_custom_call.1']
    #allocation5 [shape = 's32[2]{0}', space=sflag, size = 0x8, scoped, tag = 'scoped memory for tpu_custom_call.1']
    #allocation6 [shape = 'u8[1310720]{0}', space=vmem, size = 0x140000, scoped, tag = 'input window, operand 1, single buffered']
    #allocation7 [shape = 's32[1]{0}', space=sflag, size = 0x4, scoped, tag = 'scoped memory for tpu_custom_call.1']
    #allocation8 [shape = 'u8[2048]{0}', space=vmem, size = 0x800, scoped, tag = 'input window, operand 2, single buffered']
    #allocation9 [shape = 'u8[131072]{0}', space=vmem, size = 0x20000, scoped, tag = 'input window, operand 3, single buffered']
    #allocation10 [shape = 's32[1]{0}', space=sflag, size = 0x4, scoped, tag = 'scoped memory for tpu_custom_call.1']
    #allocation11 [shape = 'u8[512]{0}', space=vmem, size = 0x400, scoped, tag = 'input window, operand 4, single buffered']
    #allocation12 [shape = 'u8[1024]{0}', space=vmem, size = 0x400, scoped, tag = 'output window, operand 0, single buffered']
    %10 = vsyncpa [#allocation4], 0
    %s11 = scalar_lea.sflag [#allocation4], 1
    %12 = vsyncpa %s11, 0
    %13 = vsyncpa [#allocation7], 0
    %14 = vsyncpa [#allocation10], 0
    %15 = vsyncpa [#allocation5], 0
    loop: start=0, step=1, limit=6
    $region2: #{tpu_custom_call.1} parent=1 // loop_pre_header
      _
    $region3: #{tpu_custom_call.1} parent=1 // loop_header
      %s17 = sphi 0, %s21
      %p18 = scmp.ge.s32.totalorder %s17, 6
      %s24 = sphi 0, %s36
      %s25 = sphi 0, %s32
      %s26 = sphi 0, %s24
      %s27 = sphi 0, %s25
      %s28 = sphi 0, %s26
      %s29 = sphi 0, %s27
      %s41 = sphi 0, %s43
      %s44 = sphi 0, %s41
      %s45 = sphi 0, %s44
      %s61 = sphi 0, %s45
      %s65 = sphi 0, %s65
      %s67 = sphi 0, %s65
      %s68 = sphi 0, %s67
      %s82 = sphi 0, %s68
      %s86 = sphi 0, %s86
      %s88 = sphi 0, %s86
      %s89 = sphi 0, %s88
      %s103 = sphi 0, %s89
      %s107 = sphi 0, %s107
      %s109 = sphi 0, %s107
      %s110 = sphi 0, %s109
      %s124 = sphi 0, %s110
      %s128 = sphi 0, %s128
      %s130 = sphi 0, %s128
      %s131 = sphi 0, %s130
      %s145 = sphi 0, %s131
      %s151 = sphi 0, %s153
      %s154 = sphi 0, %s151
      %s155 = sphi 0, %s154
      %s171 = sphi 0, %s155
    $region4: #{tpu_custom_call.1} parent=1 // loop_header_branch
      %20 = sbr.rel (%p18) target = $region8
    $region5: #{tpu_custom_call.1} parent=1 // loop_body
      %s22 = ssub.s32 %s17, 1
      %s23 = ssub.s32 %s17, 2
      %s30 = sadd.s32 1, %s25
      %p31 = scmp.ge.s32.totalorder %s30, 4
      %s32 = scalar_select %p31, 0, %s30
      %s33 = sadd.s32 1, %s24
      %s34 = scalar_select %p31, %s33, %s24
      %p35 = scmp.ge.s32.totalorder %s34, 1
      %s36 = scalar_select %p35, 0, %s34
      %s37 = ssub.s32 %s24, %s36
      %s38 = ssub.s32 %s25, %s32
      %s39 = sor.u32 %s37, %s38
      %p40 = scmp.eq.s32.totalorder %s39, 0
      %s42 = sadd.s32 %s41, 1
      %s43 = scalar_select %p40, %s41, %s42
      %p46 = pneg %p40
      %p47 = scmp.eq.s32.totalorder %s17, 3
      %p48 = por %p46, %p47
      %p49 = scmp.ne.s32.totalorder %s41, %s44
      %p50 = scmp.eq.s32.totalorder %s17, 0
      %p51 = por %p49, %p50
      %p52 = scmp.ne.s32.totalorder %s41, %s44
      %p53 = scmp.eq.s32.totalorder %s22, 3
      %p54 = por %p52, %p53
      %p55 = scmp.ne.s32.totalorder %s44, %s45
      %p56 = scmp.eq.s32.totalorder %s22, 0
      %p57 = por %p55, %p56
      %p58 = scmp.ne.s32.totalorder %s44, %s45
      %p59 = scmp.eq.s32.totalorder %s23, 3
      %p60 = por %p58, %p59
      %p62 = scmp.ne.s32.totalorder %s45, %s61
      %p63 = scmp.eq.s32.totalorder %s23, 0
      %p64 = por %p62, %p63
      %s66 = sadd.s32 %s65, 1
      %p69 = scmp.eq.s32.totalorder %s17, 3
      %p70 = scmp.ne.s32.totalorder %s65, %s67
      %p71 = scmp.eq.s32.totalorder %s17, 0
      %p72 = por %p70, %p71
      %p73 = scmp.ne.s32.totalorder %s65, %s67
      %p74 = scmp.eq.s32.totalorder %s22, 3
      %p75 = por %p73, %p74
      %p76 = scmp.ne.s32.totalorder %s67, %s68
      %p77 = scmp.eq.s32.totalorder %s22, 0
      %p78 = por %p76, %p77
      %p79 = scmp.ne.s32.totalorder %s67, %s68
      %p80 = scmp.eq.s32.totalorder %s23, 3
      %p81 = por %p79, %p80
      %p83 = scmp.ne.s32.totalorder %s68, %s82
      %p84 = scmp.eq.s32.totalorder %s23, 0
      %p85 = por %p83, %p84
      %s87 = sadd.s32 %s86, 1
      %p90 = scmp.eq.s32.totalorder %s17, 3
      %p91 = scmp.ne.s32.totalorder %s86, %s88
      %p92 = scmp.eq.s32.totalorder %s17, 0
      %p93 = por %p91, %p92
      %p94 = scmp.ne.s32.totalorder %s86, %s88
      %p95 = scmp.eq.s32.totalorder %s22, 3
      %p96 = por %p94, %p95
      %p97 = scmp.ne.s32.totalorder %s88, %s89
      %p98 = scmp.eq.s32.totalorder %s22, 0
      %p99 = por %p97, %p98
      %p100 = scmp.ne.s32.totalorder %s88, %s89
      %p101 = scmp.eq.s32.totalorder %s23, 3
      %p102 = por %p100, %p101
      %p104 = scmp.ne.s32.totalorder %s89, %s103
      %p105 = scmp.eq.s32.totalorder %s23, 0
      %p106 = por %p104, %p105
      %s108 = sadd.s32 %s107, 1
      %p111 = scmp.eq.s32.totalorder %s17, 3
      %p112 = scmp.ne.s32.totalorder %s107, %s109
      %p113 = scmp.eq.s32.totalorder %s17, 0
      %p114 = por %p112, %p113
      %p115 = scmp.ne.s32.totalorder %s107, %s109
      %p116 = scmp.eq.s32.totalorder %s22, 3
      %p117 = por %p115, %p116
      %p118 = scmp.ne.s32.totalorder %s109, %s110
      %p119 = scmp.eq.s32.totalorder %s22, 0
      %p120 = por %p118, %p119
      %p121 = scmp.ne.s32.totalorder %s109, %s110
      %p122 = scmp.eq.s32.totalorder %s23, 3
      %p123 = por %p121, %p122
      %p125 = scmp.ne.s32.totalorder %s110, %s124
      %p126 = scmp.eq.s32.totalorder %s23, 0
      %p127 = por %p125, %p126
      %s129 = sadd.s32 %s128, 1
      %p132 = scmp.eq.s32.totalorder %s17, 3
      %p133 = scmp.ne.s32.totalorder %s128, %s130
      %p134 = scmp.eq.s32.totalorder %s17, 0
      %p135 = por %p133, %p134
      %p136 = scmp.ne.s32.totalorder %s128, %s130
      %p137 = scmp.eq.s32.totalorder %s22, 3
      %p138 = por %p136, %p137
      %p139 = scmp.ne.s32.totalorder %s130, %s131
      %p140 = scmp.eq.s32.totalorder %s22, 0
      %p141 = por %p139, %p140
      %p142 = scmp.ne.s32.totalorder %s130, %s131
      %p143 = scmp.eq.s32.totalorder %s23, 3
      %p144 = por %p142, %p143
      %p146 = scmp.ne.s32.totalorder %s131, %s145
      %p147 = scmp.eq.s32.totalorder %s23, 0
      %p148 = por %p146, %p147
      %s149 = ssub.s32 %s24, %s36
      %p150 = scmp.eq.s32.totalorder %s149, 0
      %s152 = sadd.s32 %s151, 1
      %s153 = scalar_select %p150, %s151, %s152
      %p156 = pneg %p150
      %p157 = scmp.eq.s32.totalorder %s17, 3
      %p158 = por %p156, %p157
      %p159 = scmp.ne.s32.totalorder %s151, %s154
      %p160 = scmp.eq.s32.totalorder %s17, 0
      %p161 = por %p159, %p160
      %p162 = scmp.ne.s32.totalorder %s151, %s154
      %p163 = scmp.eq.s32.totalorder %s22, 3
      %p164 = por %p162, %p163
      %p165 = scmp.ne.s32.totalorder %s154, %s155
      %p166 = scmp.eq.s32.totalorder %s22, 0
      %p167 = por %p165, %p166
      %p168 = scmp.ne.s32.totalorder %s154, %s155
      %p169 = scmp.eq.s32.totalorder %s23, 3
      %p170 = por %p168, %p169
      %p172 = scmp.ne.s32.totalorder %s155, %s171
      %p173 = scmp.eq.s32.totalorder %s23, 0
      %p174 = por %p172, %p173
      %p175 = scmp.le.s32.totalorder 1, %s17
      %p176 = scmp.lt.s32.totalorder %s17, 5
      %p177 = pnand %p175, %p176
      %p178 = pneg %p177
      // Predicated region
      $region9: #{tpu_custom_call.1} parent=5 // pred_check
        _
      $region10: #{tpu_custom_call.1} parent=5 // pred_check_branch
        %180 = sbr.rel (%p177) target = $region12
      $region11: #{tpu_custom_call.1} parent=5 // pred_region
        %s181 = ssub.s32 %s17, 1
        // Predicated region
        $region13: #{tpu_custom_call.1} parent=11 // pred_check
          %p182 = pneg %p78
        $region14: #{tpu_custom_call.1} parent=11 // pred_check_branch
          %184 = sbr.rel (%p182) target = $region16
        $region15: #{tpu_custom_call.1} parent=11 // pred_region
          %s186 = ssub.s32 40960, 40960
          %187 = vsyncadd [#allocation7], %s186
          %s188 = sshll.u32 [#allocation6], 4
          %s189 = int_to_ptr.vmem [resolvable:$true] %s188
          %194 = dma.hbm_to_vmem [thread:$0]  %s1, 40960, %s189, [#allocation7], 256, 256, 16
        $region16: #{tpu_custom_call.1} parent=11 // pred_fallthru
          _
        // Predicated region
        $region17: #{tpu_custom_call.1} parent=11 // pred_check
          %p195 = pneg %p99
        $region18: #{tpu_custom_call.1} parent=11 // pred_check_branch
          %197 = sbr.rel (%p195) target = $region20
        $region19: #{tpu_custom_call.1} parent=11 // pred_region
          %s199 = ssub.s32 64, 64
          %200 = vsyncadd [#allocation7], %s199
          %s202 = sshll.u32 [#allocation8], 4
          %s203 = int_to_ptr.vmem [resolvable:$true] %s202
          %205 = dma.hbm_to_vmem [thread:$0]  %s2, 64, %s203, [#allocation7]
        $region20: #{tpu_custom_call.1} parent=11 // pred_fallthru
          _
        // Predicated region
        $region21: #{tpu_custom_call.1} parent=11 // pred_check
          %p206 = pneg %p120
        $region22: #{tpu_custom_call.1} parent=11 // pred_check_branch
          %208 = sbr.rel (%p206) target = $region24
        $region23: #{tpu_custom_call.1} parent=11 // pred_region
          %s210 = ssub.s32 4096, 4096
          %211 = vsyncadd [#allocation10], %s210
          %s212 = sshll.u32 [#allocation9], 4
          %s213 = int_to_ptr.vmem [resolvable:$true] %s212
          %218 = dma.hbm_to_vmem [thread:$0]  %s3, 4096, %s213, [#allocation10], 64, 64, 4
        $region24: #{tpu_custom_call.1} parent=11 // pred_fallthru
          _
        // Predicated region
        $region25: #{tpu_custom_call.1} parent=11 // pred_check
          %p219 = pneg %p141
        $region26: #{tpu_custom_call.1} parent=11 // pred_check_branch
          %221 = sbr.rel (%p219) target = $region28
        $region27: #{tpu_custom_call.1} parent=11 // pred_region
          %s223 = ssub.s32 16, 16
          %224 = vsyncadd [#allocation10], %s223
          %s226 = sshll.u32 [#allocation11], 4
          %s227 = int_to_ptr.vmem [resolvable:$true] %s226
          %229 = dma.hbm_to_vmem [thread:$0]  %s4, 16, %s227, [#allocation10]
        $region28: #{tpu_custom_call.1} parent=11 // pred_fallthru
          _
      $region12: #{tpu_custom_call.1} parent=5 // pred_fallthru
        _
      %p230 = scmp.lt.s32.totalorder %s17, 4
      // Predicated region
      $region29: #{tpu_custom_call.1} parent=5 // pred_check
        %p231 = pneg %p230
      $region30: #{tpu_custom_call.1} parent=5 // pred_check_branch
        %233 = sbr.rel (%p231) target = $region32
      $region31: #{tpu_custom_call.1} parent=5 // pred_region
        // Predicated region
        $region33: #{tpu_custom_call.1} parent=31 // pred_check
          %p234 = pneg %p51
        $region34: #{tpu_custom_call.1} parent=31 // pred_check_branch
          %236 = sbr.rel (%p234) target = $region36
        $region35: #{tpu_custom_call.1} parent=31 // pred_region
          #allocation14 [shape = 'u32[6]{0}', space=smem, size = 0x18, scoped, tag = 'DMA stride descriptor']
          %s237 = sand.u32 %s41, 1
          %s238 = scalar_lea.sflag [#allocation4], %s237
          %s239 = sand.u32 %s41, 1
          %s240 = smul.addr %s239, 640
          %s241 = scalar_lea.vmem [#allocation3], %s240
          %s242 = smul.u32 2, %s24
          %s243 = smul.u32 8, %s25
          %s245 = ssub.s32 10240, 10240
          %246 = vsyncadd %s238, %s245
          %s247 = smul.addr %s243, 10
          %s248 = smul.addr %s242, 320
          %s249 = sadd.s32 %s247, %s248
          %s250 = smul.addr %s249, 64
          %s251 = scalar_lea.hbm %s0, %s250
          %s253 = sshll.u32 1, 14
          %s254 = sxor.u32 4294967295, %s253
          %s256 = sld [smem:[#allocation0]]
          %s257 = sadd.s32 2, %s256
          %s259 = sshll.u32 7, 26
          %s260 = sxor.u32 4294967295, %s259
          %s261 = sand.u32 0, %s260
          %s262 = sshll.u32 %s257, 26
          %s263 = sor.u32 %s261, %s262
          %s264 = sshll.u32 %s241, 4
          %s265 = int_to_ptr.vmem [resolvable:$true] %s264
          %271 = sst [smem:[#allocation14]] 20480
          %s272 = scalar_lea.smem [#allocation14], 1
          %273 = sst [smem:[%s272]] 5120
          %s274 = scalar_lea.smem [#allocation14], 2
          %275 = sst [smem:[%s274]] 8
          %s276 = scalar_lea.smem [#allocation14], 3
          %277 = sst [smem:[%s276]] 640
          %s278 = scalar_lea.smem [#allocation14], 4
          %279 = sst [smem:[%s278]] 640
          %s280 = scalar_lea.smem [#allocation14], 5
          %281 = sst [smem:[%s280]] 40
          %283 = dma.general %s251, 10240, %s265, %s238, [#allocation13], [#allocation14], %s263, 0
        $region36: #{tpu_custom_call.1} parent=31 // pred_fallthru
          _
      $region32: #{tpu_custom_call.1} parent=5 // pred_fallthru
        _
      %p284 = scmp.le.s32.totalorder 1, %s17
      %p285 = scmp.lt.s32.totalorder %s17, 5
      %p286 = pnand %p284, %p285
      %p287 = pneg %p286
      // Predicated region
      $region37: #{tpu_custom_call.1} parent=5 // pred_check
        _
      $region38: #{tpu_custom_call.1} parent=5 // pred_check_branch
        %289 = sbr.rel (%p286) target = $region40
      $region39: #{tpu_custom_call.1} parent=5 // pred_region
        %s290 = ssub.s32 %s17, 1
        %s291 = sand.u32 %s44, 1
        %s292 = scalar_lea.sflag [#allocation4], %s291
        %s293 = sand.u32 %s44, 1
        %s294 = smul.addr %s293, 640
        %s295 = scalar_lea.vmem [#allocation3], %s294
        // Predicated region
        $region41: #{tpu_custom_call.1} parent=39 // pred_check
          %p296 = pneg %p57
        $region42: #{tpu_custom_call.1} parent=39 // pred_check_branch
          %298 = sbr.rel (%p296) target = $region44
        $region43: #{tpu_custom_call.1} parent=39 // pred_region
          %299 = dma.done %s292, 10240
        $region44: #{tpu_custom_call.1} parent=39 // pred_fallthru
          _
        // Predicated region
        $region45: #{tpu_custom_call.1} parent=39 // pred_check
          %p300 = pneg %p78
        $region46: #{tpu_custom_call.1} parent=39 // pred_check_branch
          %302 = sbr.rel (%p300) target = $region48
        $region47: #{tpu_custom_call.1} parent=39 // pred_region
          %303 = dma.done [#allocation7], 40960
        $region48: #{tpu_custom_call.1} parent=39 // pred_fallthru
          _
        // Predicated region
        $region49: #{tpu_custom_call.1} parent=39 // pred_check
          %p304 = pneg %p99
        $region50: #{tpu_custom_call.1} parent=39 // pred_check_branch
          %306 = sbr.rel (%p304) target = $region52
        $region51: #{tpu_custom_call.1} parent=39 // pred_region
          %307 = dma.done [#allocation7], 64
        $region52: #{tpu_custom_call.1} parent=39 // pred_fallthru
          _
        // Predicated region
        $region53: #{tpu_custom_call.1} parent=39 // pred_check
          %p308 = pneg %p120
        $region54: #{tpu_custom_call.1} parent=39 // pred_check_branch
          %310 = sbr.rel (%p308) target = $region56
        $region55: #{tpu_custom_call.1} parent=39 // pred_region
          %311 = dma.done [#allocation10], 4096
        $region56: #{tpu_custom_call.1} parent=39 // pred_fallthru
          _
        // Predicated region
        $region57: #{tpu_custom_call.1} parent=39 // pred_check
          %p312 = pneg %p141
        $region58: #{tpu_custom_call.1} parent=39 // pred_check_branch
          %314 = sbr.rel (%p312) target = $region60
        $region59: #{tpu_custom_call.1} parent=39 // pred_region
          %315 = dma.done [#allocation10], 16
        $region60: #{tpu_custom_call.1} parent=39 // pred_fallthru
          _
        %s316 = sand.u32 %s44, 1
        %s317 = scalar_lea.sflag [#allocation4], %s316
        %s318 = sand.u32 %s44, 1
        %s319 = smul.addr %s318, 640
        %s320 = scalar_lea.vmem [#allocation3], %s319
        %p321 = pneg %p57
        %p322 = pneg %p54
        %p323 = pneg %p78
        %p324 = pneg %p75
        %p325 = pneg %p99
        %p326 = pneg %p96
        %p327 = pneg %p120
        %p328 = pneg %p117
        %p329 = pneg %p141
        %p330 = pneg %p138
        %p331 = pneg %p167
        %p332 = pneg %p164
        %s333 = smul.u32 2, %s26
        %s334 = smul.u32 8, %s27
        %p336 = scmp.eq.s32.totalorder %s27, 0
        // Predicated region
        $region61: #{tpu_custom_call.1} parent=39 // pred_check
          %p337 = pneg %p336
        $region62: #{tpu_custom_call.1} parent=39 // pred_check_branch
          %339 = sbr.rel (%p337) target = $region64
        $region63: #{tpu_custom_call.1} parent=39 // pred_region
          %340 = vst [vmem:[#allocation2] sm:$0xff] 0.0
          %341 = vst [vmem:[#allocation2 + $0x8] sm:$0xff] 0.0
          %342 = vst [vmem:[#allocation2 + $0x10] sm:$0xf] 0.0
        $region64: #{tpu_custom_call.1} parent=39 // pred_fallthru
          _
        %v343 = vld [vmem:[#allocation2] sm:$0xff]
        %v344 = vld [vmem:[#allocation2 + $0x8] sm:$0xff]
        %v345 = vld [vmem:[#allocation2 + $0x10] sm:$0xf]
        %v346 = vld [vmem:[%s295] sm:$0xff]
        %v347 = vld [vmem:[%s295 + $0x8] sm:$0xff]
        %v348 = vld [vmem:[%s295 + $0x10] sm:$0xff]
        %v349 = vld [vmem:[%s295 + $0x18] sm:$0xff]
        %v350 = vld [vmem:[%s295 + $0x20] sm:$0xff]
        %v351 = vld [vmem:[%s295 + $0x28] sm:$0xff]
        %v352 = vld [vmem:[%s295 + $0x30] sm:$0xff]
        %v353 = vld [vmem:[%s295 + $0x38] sm:$0xff]
        %v354 = vld [vmem:[%s295 + $0x40] sm:$0xff]
        %v355 = vld [vmem:[%s295 + $0x48] sm:$0xff]
        %v356 = vld [vmem:[%s295 + $0x50] sm:$0xff]
        %v357 = vld [vmem:[%s295 + $0x58] sm:$0xff]
        %v358 = vld [vmem:[%s295 + $0x60] sm:$0xff]
        %v359 = vld [vmem:[%s295 + $0x68] sm:$0xff]
        %v360 = vld [vmem:[%s295 + $0x70] sm:$0xff]
        %v361 = vld [vmem:[%s295 + $0x78] sm:$0xff]
        %v362 = vld [vmem:[%s295 + $0x80] sm:$0xff]
        %v363 = vld [vmem:[%s295 + $0x88] sm:$0xff]
        %v364 = vld [vmem:[%s295 + $0x90] sm:$0xff]
        %v365 = vld [vmem:[%s295 + $0x98] sm:$0xff]
        %v366 = vld [vmem:[%s295 + $0xa0] sm:$0xff]
        %v367 = vld [vmem:[%s295 + $0xa8] sm:$0xff]
        %v368 = vld [vmem:[%s295 + $0xb0] sm:$0xff]
        %v369 = vld [vmem:[%s295 + $0xb8] sm:$0xff]
        %v370 = vld [vmem:[%s295 + $0xc0] sm:$0xff]
        %v371 = vld [vmem:[%s295 + $0xc8] sm:$0xff]
        %v372 = vld [vmem:[%s295 + $0xd0] sm:$0xff]
        %v373 = vld [vmem:[%s295 + $0xd8] sm:$0xff]
        %v374 = vld [vmem:[%s295 + $0xe0] sm:$0xff]
        %v375 = vld [vmem:[%s295 + $0xe8] sm:$0xff]
        %v376 = vld [vmem:[%s295 + $0xf0] sm:$0xff]
        %v377 = vld [vmem:[%s295 + $0xf8] sm:$0xff]
        %v378 = vld [vmem:[%s295 + $0x100] sm:$0xff]
        %v379 = vld [vmem:[%s295 + $0x108] sm:$0xff]
        %v380 = vld [vmem:[%s295 + $0x110] sm:$0xff]
        %v381 = vld [vmem:[%s295 + $0x118] sm:$0xff]
        %v382 = vld [vmem:[%s295 + $0x120] sm:$0xff]
        %v383 = vld [vmem:[%s295 + $0x128] sm:$0xff]
        %v384 = vld [vmem:[%s295 + $0x130] sm:$0xff]
        %v385 = vld [vmem:[%s295 + $0x138] sm:$0xff]
        %v386 = vld [vmem:[%s295 + $0x140] sm:$0xff]
        %v387 = vld [vmem:[%s295 + $0x148] sm:$0xff]
        %v388 = vld [vmem:[%s295 + $0x150] sm:$0xff]
        %v389 = vld [vmem:[%s295 + $0x158] sm:$0xff]
        %v390 = vld [vmem:[%s295 + $0x160] sm:$0xff]
        %v391 = vld [vmem:[%s295 + $0x168] sm:$0xff]
        %v392 = vld [vmem:[%s295 + $0x170] sm:$0xff]
        %v393 = vld [vmem:[%s295 + $0x178] sm:$0xff]
        %v394 = vld [vmem:[%s295 + $0x180] sm:$0xff]
        %v395 = vld [vmem:[%s295 + $0x188] sm:$0xff]
        %v396 = vld [vmem:[%s295 + $0x190] sm:$0xff]
        %v397 = vld [vmem:[%s295 + $0x198] sm:$0xff]
        %v398 = vld [vmem:[%s295 + $0x1a0] sm:$0xff]
        %v399 = vld [vmem:[%s295 + $0x1a8] sm:$0xff]
        %v400 = vld [vmem:[%s295 + $0x1b0] sm:$0xff]
        %v401 = vld [vmem:[%s295 + $0x1b8] sm:$0xff]
        %v402 = vld [vmem:[%s295 + $0x1c0] sm:$0xff]
        %v403 = vld [vmem:[%s295 + $0x1c8] sm:$0xff]
        %v404 = vld [vmem:[%s295 + $0x1d0] sm:$0xff]
        %v405 = vld [vmem:[%s295 + $0x1d8] sm:$0xff]
        %v406 = vld [vmem:[%s295 + $0x1e0] sm:$0xff]
        %v407 = vld [vmem:[%s295 + $0x1e8] sm:$0xff]
        %v408 = vld [vmem:[%s295 + $0x1f0] sm:$0xff]
        %v409 = vld [vmem:[%s295 + $0x1f8] sm:$0xff]
        %v410 = vld [vmem:[%s295 + $0x200] sm:$0xff]
        %v411 = vld [vmem:[%s295 + $0x208] sm:$0xff]
        %v412 = vld [vmem:[%s295 + $0x210] sm:$0xff]
        %v413 = vld [vmem:[%s295 + $0x218] sm:$0xff]
        %v414 = vld [vmem:[%s295 + $0x220] sm:$0xff]
        %v415 = vld [vmem:[%s295 + $0x228] sm:$0xff]
        %v416 = vld [vmem:[%s295 + $0x230] sm:$0xff]
        %v417 = vld [vmem:[%s295 + $0x238] sm:$0xff]
        %v418 = vld [vmem:[%s295 + $0x240] sm:$0xff]
        %v419 = vld [vmem:[%s295 + $0x248] sm:$0xff]
        %v420 = vld [vmem:[%s295 + $0x250] sm:$0xff]
        %v421 = vld [vmem:[%s295 + $0x258] sm:$0xff]
        %v422 = vld [vmem:[%s295 + $0x260] sm:$0xff]
        %v423 = vld [vmem:[%s295 + $0x268] sm:$0xff]
        %v424 = vld [vmem:[%s295 + $0x270] sm:$0xff]
        %v425 = vld [vmem:[%s295 + $0x278] sm:$0xff]
        %v426 = vunpack.c.l.bf16 %v346
        %v427 = vunpack.c.h.bf16 %v346
        %v428 = vunpack.c.l.bf16 %v347
        %v429 = vunpack.c.h.bf16 %v347
        %v430 = vunpack.c.l.bf16 %v348
        %v431 = vunpack.c.h.bf16 %v348
        %v432 = vunpack.c.l.bf16 %v349
        %v433 = vunpack.c.h.bf16 %v349
        %v434 = vunpack.c.l.bf16 %v350
        %v435 = vunpack.c.h.bf16 %v350
        %v436 = vunpack.c.l.bf16 %v351
        %v437 = vunpack.c.h.bf16 %v351
        %v438 = vunpack.c.l.bf16 %v352
        %v439 = vunpack.c.h.bf16 %v352
        %v440 = vunpack.c.l.bf16 %v353
        %v441 = vunpack.c.h.bf16 %v353
        %v442 = vunpack.c.l.bf16 %v354
        %v443 = vunpack.c.h.bf16 %v354
        %v444 = vunpack.c.l.bf16 %v355
        %v445 = vunpack.c.h.bf16 %v355
        %v446 = vunpack.c.l.bf16 %v356
        %v447 = vunpack.c.h.bf16 %v356
        %v448 = vunpack.c.l.bf16 %v357
        %v449 = vunpack.c.h.bf16 %v357
        %v450 = vunpack.c.l.bf16 %v358
        %v451 = vunpack.c.h.bf16 %v358
        %v452 = vunpack.c.l.bf16 %v359
        %v453 = vunpack.c.h.bf16 %v359
        %v454 = vunpack.c.l.bf16 %v360
        %v455 = vunpack.c.h.bf16 %v360
        %v456 = vunpack.c.l.bf16 %v361
        %v457 = vunpack.c.h.bf16 %v361
        %v458 = vunpack.c.l.bf16 %v362
        %v459 = vunpack.c.h.bf16 %v362
        %v460 = vunpack.c.l.bf16 %v363
        %v461 = vunpack.c.h.bf16 %v363
        %v462 = vunpack.c.l.bf16 %v364
        %v463 = vunpack.c.h.bf16 %v364
        %v464 = vunpack.c.l.bf16 %v365
        %v465 = vunpack.c.h.bf16 %v365
        %v466 = vunpack.c.l.bf16 %v366
        %v467 = vunpack.c.h.bf16 %v366
        %v468 = vunpack.c.l.bf16 %v367
        %v469 = vunpack.c.h.bf16 %v367
        %v470 = vunpack.c.l.bf16 %v368
        %v471 = vunpack.c.h.bf16 %v368
        %v472 = vunpack.c.l.bf16 %v369
        %v473 = vunpack.c.h.bf16 %v369
        %v474 = vunpack.c.l.bf16 %v370
        %v475 = vunpack.c.h.bf16 %v370
        %v476 = vunpack.c.l.bf16 %v371
        %v477 = vunpack.c.h.bf16 %v371
        %v478 = vunpack.c.l.bf16 %v372
        %v479 = vunpack.c.h.bf16 %v372
        %v480 = vunpack.c.l.bf16 %v373
        %v481 = vunpack.c.h.bf16 %v373
        %v482 = vunpack.c.l.bf16 %v374
        %v483 = vunpack.c.h.bf16 %v374
        %v484 = vunpack.c.l.bf16 %v375
        %v485 = vunpack.c.h.bf16 %v375
        %v486 = vunpack.c.l.bf16 %v376
        %v487 = vunpack.c.h.bf16 %v376
        %v488 = vunpack.c.l.bf16 %v377
        %v489 = vunpack.c.h.bf16 %v377
        %v490 = vunpack.c.l.bf16 %v378
        %v491 = vunpack.c.h.bf16 %v378
        %v492 = vunpack.c.l.bf16 %v379
        %v493 = vunpack.c.h.bf16 %v379
        %v494 = vunpack.c.l.bf16 %v380
        %v495 = vunpack.c.h.bf16 %v380
        %v496 = vunpack.c.l.bf16 %v381
        %v497 = vunpack.c.h.bf16 %v381
        %v498 = vunpack.c.l.bf16 %v382
        %v499 = vunpack.c.h.bf16 %v382
        %v500 = vunpack.c.l.bf16 %v383
        %v501 = vunpack.c.h.bf16 %v383
        %v502 = vunpack.c.l.bf16 %v384
        %v503 = vunpack.c.h.bf16 %v384
        %v504 = vunpack.c.l.bf16 %v385
        %v505 = vunpack.c.h.bf16 %v385
        %v506 = vunpack.c.l.bf16 %v386
        %v507 = vunpack.c.h.bf16 %v386
        %v508 = vunpack.c.l.bf16 %v387
        %v509 = vunpack.c.h.bf16 %v387
        %v510 = vunpack.c.l.bf16 %v388
        %v511 = vunpack.c.h.bf16 %v388
        %v512 = vunpack.c.l.bf16 %v389
        %v513 = vunpack.c.h.bf16 %v389
        %v514 = vunpack.c.l.bf16 %v390
        %v515 = vunpack.c.h.bf16 %v390
        %v516 = vunpack.c.l.bf16 %v391
        %v517 = vunpack.c.h.bf16 %v391
        %v518 = vunpack.c.l.bf16 %v392
        %v519 = vunpack.c.h.bf16 %v392
        %v520 = vunpack.c.l.bf16 %v393
        %v521 = vunpack.c.h.bf16 %v393
        %v522 = vunpack.c.l.bf16 %v394
        %v523 = vunpack.c.h.bf16 %v394
        %v524 = vunpack.c.l.bf16 %v395
        %v525 = vunpack.c.h.bf16 %v395
        %v526 = vunpack.c.l.bf16 %v396
        %v527 = vunpack.c.h.bf16 %v396
        %v528 = vunpack.c.l.bf16 %v397
        %v529 = vunpack.c.h.bf16 %v397
        %v530 = vunpack.c.l.bf16 %v398
        %v531 = vunpack.c.h.bf16 %v398
        %v532 = vunpack.c.l.bf16 %v399
        %v533 = vunpack.c.h.bf16 %v399
        %v534 = vunpack.c.l.bf16 %v400
        %v535 = vunpack.c.h.bf16 %v400
        %v536 = vunpack.c.l.bf16 %v401
        %v537 = vunpack.c.h.bf16 %v401
        %v538 = vunpack.c.l.bf16 %v402
        %v539 = vunpack.c.h.bf16 %v402
        %v540 = vunpack.c.l.bf16 %v403
        %v541 = vunpack.c.h.bf16 %v403
        %v542 = vunpack.c.l.bf16 %v404
        %v543 = vunpack.c.h.bf16 %v404
        %v544 = vunpack.c.l.bf16 %v405
        %v545 = vunpack.c.h.bf16 %v405
        %v546 = vunpack.c.l.bf16 %v406
        %v547 = vunpack.c.h.bf16 %v406
        %v548 = vunpack.c.l.bf16 %v407
        %v549 = vunpack.c.h.bf16 %v407
        %v550 = vunpack.c.l.bf16 %v408
        %v551 = vunpack.c.h.bf16 %v408
        %v552 = vunpack.c.l.bf16 %v409
        %v553 = vunpack.c.h.bf16 %v409
        %v554 = vunpack.c.l.bf16 %v410
        %v555 = vunpack.c.h.bf16 %v410
        %v556 = vunpack.c.l.bf16 %v411
        %v557 = vunpack.c.h.bf16 %v411
        %v558 = vunpack.c.l.bf16 %v412
        %v559 = vunpack.c.h.bf16 %v412
        %v560 = vunpack.c.l.bf16 %v413
        %v561 = vunpack.c.h.bf16 %v413
        %v562 = vunpack.c.l.bf16 %v414
        %v563 = vunpack.c.h.bf16 %v414
        %v564 = vunpack.c.l.bf16 %v415
        %v565 = vunpack.c.h.bf16 %v415
        %v566 = vunpack.c.l.bf16 %v416
        %v567 = vunpack.c.h.bf16 %v416
        %v568 = vunpack.c.l.bf16 %v417
        %v569 = vunpack.c.h.bf16 %v417
        %v570 = vunpack.c.l.bf16 %v418
        %v571 = vunpack.c.h.bf16 %v418
        %v572 = vunpack.c.l.bf16 %v419
        %v573 = vunpack.c.h.bf16 %v419
        %v574 = vunpack.c.l.bf16 %v420
        %v575 = vunpack.c.h.bf16 %v420
        %v576 = vunpack.c.l.bf16 %v421
        %v577 = vunpack.c.h.bf16 %v421
        %v578 = vunpack.c.l.bf16 %v422
        %v579 = vunpack.c.h.bf16 %v422
        %v580 = vunpack.c.l.bf16 %v423
        %v581 = vunpack.c.h.bf16 %v423
        %v582 = vunpack.c.l.bf16 %v424
        %v583 = vunpack.c.h.bf16 %v424
        %v584 = vunpack.c.l.bf16 %v425
        %v585 = vunpack.c.h.bf16 %v425
        %v586 = vadd.f32 %v426, %v436
        %v587 = vadd.f32 %v586, %v446
        %v588 = vadd.f32 %v587, %v456
        %v589 = vadd.f32 %v588, %v466
        %v590 = vadd.f32 %v589, %v476
        %v591 = vadd.f32 %v590, %v486
        %v592 = vadd.f32 %v591, %v496
        %v593 = vrot.slane %v592, 4
        %v594 = vadd.f32 %v592, %v593
        %v595 = vrot.slane %v594, 2
        %v596 = vadd.f32 %v594, %v595
        %v597 = vrot.slane %v596, 1
        %v598 = vadd.f32 %v596, %v597
        %v599 = vadd.f32 %v427, %v437
        %v600 = vadd.f32 %v599, %v447
        %v601 = vadd.f32 %v600, %v457
        %v602 = vadd.f32 %v601, %v467
        %v603 = vadd.f32 %v602, %v477
        %v604 = vadd.f32 %v603, %v487
        %v605 = vadd.f32 %v604, %v497
        %v606 = vrot.slane %v605, 4
        %v607 = vadd.f32 %v605, %v606
        %v608 = vrot.slane %v607, 2
        %v609 = vadd.f32 %v607, %v608
        %v610 = vrot.slane %v609, 1
        %v611 = vadd.f32 %v609, %v610
        %v612 = vadd.f32 %v428, %v438
        %v613 = vadd.f32 %v612, %v448
        %v614 = vadd.f32 %v613, %v458
        %v615 = vadd.f32 %v614, %v468
        %v616 = vadd.f32 %v615, %v478
        %v617 = vadd.f32 %v616, %v488
        %v618 = vadd.f32 %v617, %v498
        %v619 = vrot.slane %v618, 4
        %v620 = vadd.f32 %v618, %v619
        %v621 = vrot.slane %v620, 2
        %v622 = vadd.f32 %v620, %v621
        %v623 = vrot.slane %v622, 1
        %v624 = vadd.f32 %v622, %v623
        %v625 = vadd.f32 %v429, %v439
        %v626 = vadd.f32 %v625, %v449
        %v627 = vadd.f32 %v626, %v459
        %v628 = vadd.f32 %v627, %v469
        %v629 = vadd.f32 %v628, %v479
        %v630 = vadd.f32 %v629, %v489
        %v631 = vadd.f32 %v630, %v499
        %v632 = vrot.slane %v631, 4
        %v633 = vadd.f32 %v631, %v632
        %v634 = vrot.slane %v633, 2
        %v635 = vadd.f32 %v633, %v634
        %v636 = vrot.slane %v635, 1
        %v637 = vadd.f32 %v635, %v636
        %v638 = vadd.f32 %v430, %v440
        %v639 = vadd.f32 %v638, %v450
        %v640 = vadd.f32 %v639, %v460
        %v641 = vadd.f32 %v640, %v470
        %v642 = vadd.f32 %v641, %v480
        %v643 = vadd.f32 %v642, %v490
        %v644 = vadd.f32 %v643, %v500
        %v645 = vrot.slane %v644, 4
        %v646 = vadd.f32 %v644, %v645
        %v647 = vrot.slane %v646, 2
        %v648 = vadd.f32 %v646, %v647
        %v649 = vrot.slane %v648, 1
        %v650 = vadd.f32 %v648, %v649
        %v651 = vadd.f32 %v431, %v441
        %v652 = vadd.f32 %v651, %v451
        %v653 = vadd.f32 %v652, %v461
        %v654 = vadd.f32 %v653, %v471
        %v655 = vadd.f32 %v654, %v481
        %v656 = vadd.f32 %v655, %v491
        %v657 = vadd.f32 %v656, %v501
        %v658 = vrot.slane %v657, 4
        %v659 = vadd.f32 %v657, %v658
        %v660 = vrot.slane %v659, 2
        %v661 = vadd.f32 %v659, %v660
        %v662 = vrot.slane %v661, 1
        %v663 = vadd.f32 %v661, %v662
        %v664 = vadd.f32 %v432, %v442
        %v665 = vadd.f32 %v664, %v452
        %v666 = vadd.f32 %v665, %v462
        %v667 = vadd.f32 %v666, %v472
        %v668 = vadd.f32 %v667, %v482
        %v669 = vadd.f32 %v668, %v492
        %v670 = vadd.f32 %v669, %v502
        %v671 = vrot.slane %v670, 4
        %v672 = vadd.f32 %v670, %v671
        %v673 = vrot.slane %v672, 2
        %v674 = vadd.f32 %v672, %v673
        %v675 = vrot.slane %v674, 1
        %v676 = vadd.f32 %v674, %v675
        %v677 = vadd.f32 %v433, %v443
        %v678 = vadd.f32 %v677, %v453
        %v679 = vadd.f32 %v678, %v463
        %v680 = vadd.f32 %v679, %v473
        %v681 = vadd.f32 %v680, %v483
        %v682 = vadd.f32 %v681, %v493
        %v683 = vadd.f32 %v682, %v503
        %v684 = vrot.slane %v683, 4
        %v685 = vadd.f32 %v683, %v684
        %v686 = vrot.slane %v685, 2
        %v687 = vadd.f32 %v685, %v686
        %v688 = vrot.slane %v687, 1
        %v689 = vadd.f32 %v687, %v688
        %v690 = vadd.f32 %v434, %v444
        %v691 = vadd.f32 %v690, %v454
        %v692 = vadd.f32 %v691, %v464
        %v693 = vadd.f32 %v692, %v474
        %v694 = vadd.f32 %v693, %v484
        %v695 = vadd.f32 %v694, %v494
        %v696 = vadd.f32 %v695, %v504
        %v697 = vrot.slane %v696, 4
        %v698 = vadd.f32 %v696, %v697
        %v699 = vrot.slane %v698, 2
        %v700 = vadd.f32 %v698, %v699
        %v701 = vrot.slane %v700, 1
        %v702 = vadd.f32 %v700, %v701
        %v703 = vadd.f32 %v435, %v445
        %v704 = vadd.f32 %v703, %v455
        %v705 = vadd.f32 %v704, %v465
        %v706 = vadd.f32 %v705, %v475
        %v707 = vadd.f32 %v706, %v485
        %v708 = vadd.f32 %v707, %v495
        %v709 = vadd.f32 %v708, %v505
        %v710 = vrot.slane %v709, 4
        %v711 = vadd.f32 %v709, %v710
        %v712 = vrot.slane %v711, 2
        %v713 = vadd.f32 %v711, %v712
        %v714 = vrot.slane %v713, 1
        %v715 = vadd.f32 %v713, %v714
        %v716 = vadd.f32 %v506, %v516
        %v717 = vadd.f32 %v716, %v526
        %v718 = vadd.f32 %v717, %v536
        %v719 = vadd.f32 %v718, %v546
        %v720 = vadd.f32 %v719, %v556
        %v721 = vadd.f32 %v720, %v566
        %v722 = vadd.f32 %v721, %v576
        %v723 = vrot.slane %v722, 4
        %v724 = vadd.f32 %v722, %v723
        %v725 = vrot.slane %v724, 2
        %v726 = vadd.f32 %v724, %v725
        %v727 = vrot.slane %v726, 1
        %v728 = vadd.f32 %v726, %v727
        %v729 = vadd.f32 %v507, %v517
        %v730 = vadd.f32 %v729, %v527
        %v731 = vadd.f32 %v730, %v537
        %v732 = vadd.f32 %v731, %v547
        %v733 = vadd.f32 %v732, %v557
        %v734 = vadd.f32 %v733, %v567
        %v735 = vadd.f32 %v734, %v577
        %v736 = vrot.slane %v735, 4
        %v737 = vadd.f32 %v735, %v736
        %v738 = vrot.slane %v737, 2
        %v739 = vadd.f32 %v737, %v738
        %v740 = vrot.slane %v739, 1
        %v741 = vadd.f32 %v739, %v740
        %v742 = vadd.f32 %v508, %v518
        %v743 = vadd.f32 %v742, %v528
        %v744 = vadd.f32 %v743, %v538
        %v745 = vadd.f32 %v744, %v548
        %v746 = vadd.f32 %v745, %v558
        %v747 = vadd.f32 %v746, %v568
        %v748 = vadd.f32 %v747, %v578
        %v749 = vrot.slane %v748, 4
        %v750 = vadd.f32 %v748, %v749
        %v751 = vrot.slane %v750, 2
        %v752 = vadd.f32 %v750, %v751
        %v753 = vrot.slane %v752, 1
        %v754 = vadd.f32 %v752, %v753
        %v755 = vadd.f32 %v509, %v519
        %v756 = vadd.f32 %v755, %v529
        %v757 = vadd.f32 %v756, %v539
        %v758 = vadd.f32 %v757, %v549
        %v759 = vadd.f32 %v758, %v559
        %v760 = vadd.f32 %v759, %v569
        %v761 = vadd.f32 %v760, %v579
        %v762 = vrot.slane %v761, 4
        %v763 = vadd.f32 %v761, %v762
        %v764 = vrot.slane %v763, 2
        %v765 = vadd.f32 %v763, %v764
        %v766 = vrot.slane %v765, 1
        %v767 = vadd.f32 %v765, %v766
        %v768 = vadd.f32 %v510, %v520
        %v769 = vadd.f32 %v768, %v530
        %v770 = vadd.f32 %v769, %v540
        %v771 = vadd.f32 %v770, %v550
        %v772 = vadd.f32 %v771, %v560
        %v773 = vadd.f32 %v772, %v570
        %v774 = vadd.f32 %v773, %v580
        %v775 = vrot.slane %v774, 4
        %v776 = vadd.f32 %v774, %v775
        %v777 = vrot.slane %v776, 2
        %v778 = vadd.f32 %v776, %v777
        %v779 = vrot.slane %v778, 1
        %v780 = vadd.f32 %v778, %v779
        %v781 = vadd.f32 %v511, %v521
        %v782 = vadd.f32 %v781, %v531
        %v783 = vadd.f32 %v782, %v541
        %v784 = vadd.f32 %v783, %v551
        %v785 = vadd.f32 %v784, %v561
        %v786 = vadd.f32 %v785, %v571
        %v787 = vadd.f32 %v786, %v581
        %v788 = vrot.slane %v787, 4
        %v789 = vadd.f32 %v787, %v788
        %v790 = vrot.slane %v789, 2
        %v791 = vadd.f32 %v789, %v790
        %v792 = vrot.slane %v791, 1
        %v793 = vadd.f32 %v791, %v792
        %v794 = vadd.f32 %v512, %v522
        %v795 = vadd.f32 %v794, %v532
        %v796 = vadd.f32 %v795, %v542
        %v797 = vadd.f32 %v796, %v552
        %v798 = vadd.f32 %v797, %v562
        %v799 = vadd.f32 %v798, %v572
        %v800 = vadd.f32 %v799, %v582
        %v801 = vrot.slane %v800, 4
        %v802 = vadd.f32 %v800, %v801
        %v803 = vrot.slane %v802, 2
        %v804 = vadd.f32 %v802, %v803
        %v805 = vrot.slane %v804, 1
        %v806 = vadd.f32 %v804, %v805
        %v807 = vadd.f32 %v513, %v523
        %v808 = vadd.f32 %v807, %v533
        %v809 = vadd.f32 %v808, %v543
        %v810 = vadd.f32 %v809, %v553
        %v811 = vadd.f32 %v810, %v563
        %v812 = vadd.f32 %v811, %v573
        %v813 = vadd.f32 %v812, %v583
        %v814 = vrot.slane %v813, 4
        %v815 = vadd.f32 %v813, %v814
        %v816 = vrot.slane %v815, 2
        %v817 = vadd.f32 %v815, %v816
        %v818 = vrot.slane %v817, 1
        %v819 = vadd.f32 %v817, %v818
        %v820 = vadd.f32 %v514, %v524
        %v821 = vadd.f32 %v820, %v534
        %v822 = vadd.f32 %v821, %v544
        %v823 = vadd.f32 %v822, %v554
        %v824 = vadd.f32 %v823, %v564
        %v825 = vadd.f32 %v824, %v574
        %v826 = vadd.f32 %v825, %v584
        %v827 = vrot.slane %v826, 4
        %v828 = vadd.f32 %v826, %v827
        %v829 = vrot.slane %v828, 2
        %v830 = vadd.f32 %v828, %v829
        %v831 = vrot.slane %v830, 1
        %v832 = vadd.f32 %v830, %v831
        %v833 = vadd.f32 %v515, %v525
        %v834 = vadd.f32 %v833, %v535
        %v835 = vadd.f32 %v834, %v545
        %v836 = vadd.f32 %v835, %v555
        %v837 = vadd.f32 %v836, %v565
        %v838 = vadd.f32 %v837, %v575
        %v839 = vadd.f32 %v838, %v585
        %v840 = vrot.slane %v839, 4
        %v841 = vadd.f32 %v839, %v840
        %v842 = vrot.slane %v841, 2
        %v843 = vadd.f32 %v841, %v842
        %v844 = vrot.slane %v843, 1
        %v845 = vadd.f32 %v843, %v844
        %v866 = vcombine.low %v598, %v611
        %v867 = vcombine.low %v624, %v637
        %v869 = vunpack.c.l.s4 1983009808
        %v870 = vunpack.c.0.s8 %v869
        %v871 = vlaneseq
        %v872 = vshrl.u32 %v871, 7
        %v873 = vsub.s32 %v870, %v872
        %v874 = vrot.slane %v866, %v873
        %v876 = vunpack.c.l.s4 1983009808
        %v877 = vunpack.c.0.s8 %v876
        %v878 = vlaneseq
        %v879 = vshrl.u32 %v878, 7
        %v880 = vsub.s32 %v877, %v879
        %v881 = vrot.slane %v867, %v880
        %v882 = vcombine.low %v874, %v881
        %v883 = vcombine.low %v650, %v663
        %v884 = vcombine.low %v676, %v689
        %v886 = vunpack.c.l.s4 1983009808
        %v887 = vunpack.c.0.s8 %v886
        %v888 = vlaneseq
        %v889 = vshrl.u32 %v888, 7
        %v890 = vsub.s32 %v887, %v889
        %v891 = vrot.slane %v883, %v890
        %v893 = vunpack.c.l.s4 1983009808
        %v894 = vunpack.c.0.s8 %v893
        %v895 = vlaneseq
        %v896 = vshrl.u32 %v895, 7
        %v897 = vsub.s32 %v894, %v896
        %v898 = vrot.slane %v884, %v897
        %v899 = vcombine.low %v891, %v898
        %v900 = vcombine.low %v702, %v715
        %v902 = vunpack.c.l.s4 1983009808
        %v903 = vunpack.c.0.s8 %v902
        %v904 = vlaneseq
        %v905 = vshrl.u32 %v904, 7
        %v906 = vsub.s32 %v903, %v905
        %v907 = vrot.slane %v900, %v906
        %v908 = vcombine.low %v728, %v741
        %v909 = vcombine.low %v754, %v767
        %v911 = vunpack.c.l.s4 1983009808
        %v912 = vunpack.c.0.s8 %v911
        %v913 = vlaneseq
        %v914 = vshrl.u32 %v913, 7
        %v915 = vsub.s32 %v912, %v914
        %v916 = vrot.slane %v908, %v915
        %v918 = vunpack.c.l.s4 1983009808
        %v919 = vunpack.c.0.s8 %v918
        %v920 = vlaneseq
        %v921 = vshrl.u32 %v920, 7
        %v922 = vsub.s32 %v919, %v921
        %v923 = vrot.slane %v909, %v922
        %v924 = vcombine.low %v916, %v923
        %v925 = vcombine.low %v780, %v793
        %v926 = vcombine.low %v806, %v819
        %v928 = vunpack.c.l.s4 1983009808
        %v929 = vunpack.c.0.s8 %v928
        %v930 = vlaneseq
        %v931 = vshrl.u32 %v930, 7
        %v932 = vsub.s32 %v929, %v931
        %v933 = vrot.slane %v925, %v932
        %v935 = vunpack.c.l.s4 1983009808
        %v936 = vunpack.c.0.s8 %v935
        %v937 = vlaneseq
        %v938 = vshrl.u32 %v937, 7
        %v939 = vsub.s32 %v936, %v938
        %v940 = vrot.slane %v926, %v939
        %v941 = vcombine.low %v933, %v940
        %v942 = vcombine.low %v832, %v845
        %v944 = vunpack.c.l.s4 1983009808
        %v945 = vunpack.c.0.s8 %v944
        %v946 = vlaneseq
        %v947 = vshrl.u32 %v946, 7
        %v948 = vsub.s32 %v945, %v947
        %v949 = vrot.slane %v942, %v948
        %vm950 = vcmask 1044484
        %v951 = vsel %vm950, %v882, %v882
        %vm952 = vcmask 1046534
        %v953 = vsel %vm952, %v882, %v951
        %v954 = vrot.slane %v924, 7
        %vm955 = vcmask 1041409
        %v956 = vsel %vm955, %v954, %v953
        %vm957 = vcmask 1043459
        %v958 = vsel %vm957, %v954, %v956
        %vm959 = vcmask 1045509
        %v960 = vsel %vm959, %v954, %v958
        %vm961 = vcmask 1047559
        %v962 = vsel %vm961, %v954, %v960
        %v963 = vsel %vm950, %v899, %v899
        %v964 = vsel %vm952, %v899, %v963
        %v965 = vrot.slane %v941, 7
        %v966 = vsel %vm955, %v965, %v964
        %v967 = vsel %vm957, %v965, %v966
        %v968 = vsel %vm959, %v965, %v967
        %v969 = vsel %vm961, %v965, %v968
        %v970 = vsel %vm950, %v907, %v907
        %v971 = vsel %vm952, %v907, %v970
        %v972 = vrot.slane %v949, 7
        %v973 = vsel %vm955, %v972, %v971
        %v974 = vsel %vm957, %v972, %v973
        %v975 = vsel %vm959, %v972, %v974
        %v976 = vsel %vm961, %v972, %v975
        %v980 = vadd.f32 %v343, %v962
        %v981 = vadd.f32 %v344, %v969
        %v982 = vadd.f32 %v345, %v976
        %983 = vst [vmem:[#allocation2] sm:$0xff] %v980
        %984 = vst [vmem:[#allocation2 + $0x8] sm:$0xff] %v981
        %985 = vst [vmem:[#allocation2 + $0x10] sm:$0xf] %v982
        %p986 = scmp.eq.s32.totalorder %s27, 3
        // Predicated region
        $region65: #{tpu_custom_call.1} parent=39 // pred_check
          %p987 = pneg %p986
        $region66: #{tpu_custom_call.1} parent=39 // pred_check_branch
          %989 = sbr.rel (%p987) target = $region68
        $region67: #{tpu_custom_call.1} parent=39 // pred_region
          %v990 = vld [vmem:[#allocation2] sm:$0xff]
          %v991 = vld [vmem:[#allocation2 + $0x8] sm:$0xff]
          %v992 = vld [vmem:[#allocation2 + $0x10] sm:$0xf]
          %v993 = vmul.f32 %v990, 0.00390625
          %v994 = vmul.f32 %v991, 0.00390625
          %v995 = vmul.f32 %v992, 0.00390625
          %v999 = vcombine.high %v993, %v993
          %v1001 = vunpack.c.l.s4 1983009808
          %v1002 = vunpack.c.0.s8 %v1001
          %v1003 = vlaneseq
          %v1004 = vshrl.u32 %v1003, 7
          %v1005 = vsub.s32 %v1002, %v1004
          %v1006 = vrot.slane %v993, %v1005
          %v1008 = vunpack.c.l.s4 1983009808
          %v1009 = vunpack.c.0.s8 %v1008
          %v1010 = vlaneseq
          %v1011 = vshrl.u32 %v1010, 7
          %v1012 = vsub.s32 %v1009, %v1011
          %v1013 = vrot.slane %v999, %v1012
          %v1014 = vcombine.high %v1006, %v1006
          %v1015 = vcombine.high %v1013, %v1013
          %v1016 = vcombine.high %v994, %v994
          %v1018 = vunpack.c.l.s4 1983009808
          %v1019 = vunpack.c.0.s8 %v1018
          %v1020 = vlaneseq
          %v1021 = vshrl.u32 %v1020, 7
          %v1022 = vsub.s32 %v1019, %v1021
          %v1023 = vrot.slane %v994, %v1022
          %v1025 = vunpack.c.l.s4 1983009808
          %v1026 = vunpack.c.0.s8 %v1025
          %v1027 = vlaneseq
          %v1028 = vshrl.u32 %v1027, 7
          %v1029 = vsub.s32 %v1026, %v1028
          %v1030 = vrot.slane %v1016, %v1029
          %v1031 = vcombine.high %v1023, %v1023
          %v1032 = vcombine.high %v1030, %v1030
          %v1034 = vunpack.c.l.s4 1983009808
          %v1035 = vunpack.c.0.s8 %v1034
          %v1036 = vlaneseq
          %v1037 = vshrl.u32 %v1036, 7
          %v1038 = vsub.s32 %v1035, %v1037
          %v1039 = vrot.slane %v995, %v1038
          %v1040 = vcombine.high %v1039, %v1039
          %v1051 = vpack.c.bf16 %v1006, %v1006
          %v1052 = vpack.c.bf16 %v1014, %v1014
          %v1053 = vpack.c.bf16 %v1013, %v1013
          %v1054 = vpack.c.bf16 %v1015, %v1015
          %v1055 = vpack.c.bf16 %v1023, %v1023
          %v1056 = vpack.c.bf16 %v1031, %v1031
          %v1057 = vpack.c.bf16 %v1030, %v1030
          %v1058 = vpack.c.bf16 %v1032, %v1032
          %v1059 = vpack.c.bf16 %v1039, %v1039
          %v1060 = vpack.c.bf16 %v1040, %v1040
          %v1061 = vld [vmem:[#allocation6] sm:$0xff]
          %v1062 = vld [vmem:[#allocation6 + $0x8] sm:$0xff]
          %v1063 = vld [vmem:[#allocation6 + $0x10] sm:$0xff]
          %v1064 = vld [vmem:[#allocation6 + $0x18] sm:$0xff]
          %v1065 = vld [vmem:[#allocation6 + $0x20] sm:$0xff]
          %v1066 = vld [vmem:[#allocation6 + $0x28] sm:$0xff]
          %v1067 = vld [vmem:[#allocation6 + $0x30] sm:$0xff]
          %v1068 = vld [vmem:[#allocation6 + $0x38] sm:$0xff]
          %v1069 = vld [vmem:[#allocation6 + $0x40] sm:$0xff]
          %v1070 = vld [vmem:[#allocation6 + $0x48] sm:$0xff]
          %v1071 = vld [vmem:[#allocation6 + $0x50] sm:$0xff]
          %v1072 = vld [vmem:[#allocation6 + $0x58] sm:$0xff]
          %v1073 = vld [vmem:[#allocation6 + $0x60] sm:$0xff]
          %v1074 = vld [vmem:[#allocation6 + $0x68] sm:$0xff]
          %v1075 = vld [vmem:[#allocation6 + $0x70] sm:$0xff]
          %v1076 = vld [vmem:[#allocation6 + $0x78] sm:$0xff]
          %v1077 = vld [vmem:[#allocation6 + $0x80] sm:$0xff]
          %v1078 = vld [vmem:[#allocation6 + $0x88] sm:$0xff]
          %v1079 = vld [vmem:[#allocation6 + $0x90] sm:$0xff]
          %v1080 = vld [vmem:[#allocation6 + $0x98] sm:$0xff]
          %v1081 = vld [vmem:[#allocation6 + $0xa0] sm:$0xff]
          %v1082 = vld [vmem:[#allocation6 + $0xa8] sm:$0xff]
          %v1083 = vld [vmem:[#allocation6 + $0xb0] sm:$0xff]
          %v1084 = vld [vmem:[#allocation6 + $0xb8] sm:$0xff]
          %v1085 = vld [vmem:[#allocation6 + $0xc0] sm:$0xff]
          %v1086 = vld [vmem:[#allocation6 + $0xc8] sm:$0xff]
          %v1087 = vld [vmem:[#allocation6 + $0xd0] sm:$0xff]
          %v1088 = vld [vmem:[#allocation6 + $0xd8] sm:$0xff]
          %v1089 = vld [vmem:[#allocation6 + $0xe0] sm:$0xff]
          %v1090 = vld [vmem:[#allocation6 + $0xe8] sm:$0xff]
          %v1091 = vld [vmem:[#allocation6 + $0xf0] sm:$0xff]
          %v1092 = vld [vmem:[#allocation6 + $0xf8] sm:$0xff]
          %v1093 = vld [vmem:[#allocation6 + $0x100] sm:$0xff]
          %v1094 = vld [vmem:[#allocation6 + $0x108] sm:$0xff]
          %v1095 = vld [vmem:[#allocation6 + $0x110] sm:$0xff]
          %v1096 = vld [vmem:[#allocation6 + $0x118] sm:$0xff]
          %v1097 = vld [vmem:[#allocation6 + $0x120] sm:$0xff]
          %v1098 = vld [vmem:[#allocation6 + $0x128] sm:$0xff]
          %v1099 = vld [vmem:[#allocation6 + $0x130] sm:$0xff]
          %v1100 = vld [vmem:[#allocation6 + $0x138] sm:$0xff]
          %v1101 = vld [vmem:[#allocation6 + $0x140] sm:$0xff]
          %v1102 = vld [vmem:[#allocation6 + $0x148] sm:$0xff]
          %v1103 = vld [vmem:[#allocation6 + $0x150] sm:$0xff]
          %v1104 = vld [vmem:[#allocation6 + $0x158] sm:$0xff]
          %v1105 = vld [vmem:[#allocation6 + $0x160] sm:$0xff]
          %v1106 = vld [vmem:[#allocation6 + $0x168] sm:$0xff]
          %v1107 = vld [vmem:[#allocation6 + $0x170] sm:$0xff]
          %v1108 = vld [vmem:[#allocation6 + $0x178] sm:$0xff]
          %v1109 = vld [vmem:[#allocation6 + $0x180] sm:$0xff]
          %v1110 = vld [vmem:[#allocation6 + $0x188] sm:$0xff]
          %v1111 = vld [vmem:[#allocation6 + $0x190] sm:$0xff]
          %v1112 = vld [vmem:[#allocation6 + $0x198] sm:$0xff]
          %v1113 = vld [vmem:[#allocation6 + $0x1a0] sm:$0xff]
          %v1114 = vld [vmem:[#allocation6 + $0x1a8] sm:$0xff]
          %v1115 = vld [vmem:[#allocation6 + $0x1b0] sm:$0xff]
          %v1116 = vld [vmem:[#allocation6 + $0x1b8] sm:$0xff]
          %v1117 = vld [vmem:[#allocation6 + $0x1c0] sm:$0xff]
          %v1118 = vld [vmem:[#allocation6 + $0x1c8] sm:$0xff]
          %v1119 = vld [vmem:[#allocation6 + $0x1d0] sm:$0xff]
          %v1120 = vld [vmem:[#allocation6 + $0x1d8] sm:$0xff]
          %v1121 = vld [vmem:[#allocation6 + $0x1e0] sm:$0xff]
          %v1122 = vld [vmem:[#allocation6 + $0x1e8] sm:$0xff]
          %v1123 = vld [vmem:[#allocation6 + $0x1f0] sm:$0xff]
          %v1124 = vld [vmem:[#allocation6 + $0x1f8] sm:$0xff]
          %v1125 = vld [vmem:[#allocation6 + $0x200] sm:$0xff]
          %v1126 = vld [vmem:[#allocation6 + $0x208] sm:$0xff]
          %v1127 = vld [vmem:[#allocation6 + $0x210] sm:$0xff]
          %v1128 = vld [vmem:[#allocation6 + $0x218] sm:$0xff]
          %v1129 = vld [vmem:[#allocation6 + $0x220] sm:$0xff]
          %v1130 = vld [vmem:[#allocation6 + $0x228] sm:$0xff]
          %v1131 = vld [vmem:[#allocation6 + $0x230] sm:$0xff]
          %v1132 = vld [vmem:[#allocation6 + $0x238] sm:$0xff]
          %v1133 = vld [vmem:[#allocation6 + $0x240] sm:$0xff]
          %v1134 = vld [vmem:[#allocation6 + $0x248] sm:$0xff]
          %v1135 = vld [vmem:[#allocation6 + $0x250] sm:$0xff]
          %v1136 = vld [vmem:[#allocation6 + $0x258] sm:$0xff]
          %v1137 = vld [vmem:[#allocation6 + $0x260] sm:$0xff]
          %v1138 = vld [vmem:[#allocation6 + $0x268] sm:$0xff]
          %v1139 = vld [vmem:[#allocation6 + $0x270] sm:$0xff]
          %v1140 = vld [vmem:[#allocation6 + $0x278] sm:$0xff]
          %v1141 = vld [vmem:[#allocation6 + $0x280] sm:$0xff]
          %v1142 = vld [vmem:[#allocation6 + $0x288] sm:$0xff]
          %v1143 = vld [vmem:[#allocation6 + $0x290] sm:$0xff]
          %v1144 = vld [vmem:[#allocation6 + $0x298] sm:$0xff]
          %v1145 = vld [vmem:[#allocation6 + $0x2a0] sm:$0xff]
          %v1146 = vld [vmem:[#allocation6 + $0x2a8] sm:$0xff]
          %v1147 = vld [vmem:[#allocation6 + $0x2b0] sm:$0xff]
          %v1148 = vld [vmem:[#allocation6 + $0x2b8] sm:$0xff]
          %v1149 = vld [vmem:[#allocation6 + $0x2c0] sm:$0xff]
          %v1150 = vld [vmem:[#allocation6 + $0x2c8] sm:$0xff]
          %v1151 = vld [vmem:[#allocation6 + $0x2d0] sm:$0xff]
          %v1152 = vld [vmem:[#allocation6 + $0x2d8] sm:$0xff]
          %v1153 = vld [vmem:[#allocation6 + $0x2e0] sm:$0xff]
          %v1154 = vld [vmem:[#allocation6 + $0x2e8] sm:$0xff]
          %v1155 = vld [vmem:[#allocation6 + $0x2f0] sm:$0xff]
          %v1156 = vld [vmem:[#allocation6 + $0x2f8] sm:$0xff]
          %v1157 = vld [vmem:[#allocation6 + $0x300] sm:$0xff]
          %v1158 = vld [vmem:[#allocation6 + $0x308] sm:$0xff]
          %v1159 = vld [vmem:[#allocation6 + $0x310] sm:$0xff]
          %v1160 = vld [vmem:[#allocation6 + $0x318] sm:$0xff]
          %v1161 = vld [vmem:[#allocation6 + $0x320] sm:$0xff]
          %v1162 = vld [vmem:[#allocation6 + $0x328] sm:$0xff]
          %v1163 = vld [vmem:[#allocation6 + $0x330] sm:$0xff]
          %v1164 = vld [vmem:[#allocation6 + $0x338] sm:$0xff]
          %v1165 = vld [vmem:[#allocation6 + $0x340] sm:$0xff]
          %v1166 = vld [vmem:[#allocation6 + $0x348] sm:$0xff]
          %v1167 = vld [vmem:[#allocation6 + $0x350] sm:$0xff]
          %v1168 = vld [vmem:[#allocation6 + $0x358] sm:$0xff]
          %v1169 = vld [vmem:[#allocation6 + $0x360] sm:$0xff]
          %v1170 = vld [vmem:[#allocation6 + $0x368] sm:$0xff]
          %v1171 = vld [vmem:[#allocation6 + $0x370] sm:$0xff]
          %v1172 = vld [vmem:[#allocation6 + $0x378] sm:$0xff]
          %v1173 = vld [vmem:[#allocation6 + $0x380] sm:$0xff]
          %v1174 = vld [vmem:[#allocation6 + $0x388] sm:$0xff]
          %v1175 = vld [vmem:[#allocation6 + $0x390] sm:$0xff]
          %v1176 = vld [vmem:[#allocation6 + $0x398] sm:$0xff]
          %v1177 = vld [vmem:[#allocation6 + $0x3a0] sm:$0xff]
          %v1178 = vld [vmem:[#allocation6 + $0x3a8] sm:$0xff]
          %v1179 = vld [vmem:[#allocation6 + $0x3b0] sm:$0xff]
          %v1180 = vld [vmem:[#allocation6 + $0x3b8] sm:$0xff]
          %v1181 = vld [vmem:[#allocation6 + $0x3c0] sm:$0xff]
          %v1182 = vld [vmem:[#allocation6 + $0x3c8] sm:$0xff]
          %v1183 = vld [vmem:[#allocation6 + $0x3d0] sm:$0xff]
          %v1184 = vld [vmem:[#allocation6 + $0x3d8] sm:$0xff]
          %v1185 = vld [vmem:[#allocation6 + $0x3e0] sm:$0xff]
          %v1186 = vld [vmem:[#allocation6 + $0x3e8] sm:$0xff]
          %v1187 = vld [vmem:[#allocation6 + $0x3f0] sm:$0xff]
          %v1188 = vld [vmem:[#allocation6 + $0x3f8] sm:$0xff]
          %v1189 = vld [vmem:[#allocation6 + $0x400] sm:$0xff]
          %v1190 = vld [vmem:[#allocation6 + $0x408] sm:$0xff]
          %v1191 = vld [vmem:[#allocation6 + $0x410] sm:$0xff]
          %v1192 = vld [vmem:[#allocation6 + $0x418] sm:$0xff]
          %v1193 = vld [vmem:[#allocation6 + $0x420] sm:$0xff]
          %v1194 = vld [vmem:[#allocation6 + $0x428] sm:$0xff]
          %v1195 = vld [vmem:[#allocation6 + $0x430] sm:$0xff]
          %v1196 = vld [vmem:[#allocation6 + $0x438] sm:$0xff]
          %v1197 = vld [vmem:[#allocation6 + $0x440] sm:$0xff]
          %v1198 = vld [vmem:[#allocation6 + $0x448] sm:$0xff]
          %v1199 = vld [vmem:[#allocation6 + $0x450] sm:$0xff]
          %v1200 = vld [vmem:[#allocation6 + $0x458] sm:$0xff]
          %v1201 = vld [vmem:[#allocation6 + $0x460] sm:$0xff]
          %v1202 = vld [vmem:[#allocation6 + $0x468] sm:$0xff]
          %v1203 = vld [vmem:[#allocation6 + $0x470] sm:$0xff]
          %v1204 = vld [vmem:[#allocation6 + $0x478] sm:$0xff]
          %v1205 = vld [vmem:[#allocation6 + $0x480] sm:$0xff]
          %v1206 = vld [vmem:[#allocation6 + $0x488] sm:$0xff]
          %v1207 = vld [vmem:[#allocation6 + $0x490] sm:$0xff]
          %v1208 = vld [vmem:[#allocation6 + $0x498] sm:$0xff]
          %v1209 = vld [vmem:[#allocation6 + $0x4a0] sm:$0xff]
          %v1210 = vld [vmem:[#allocation6 + $0x4a8] sm:$0xff]
          %v1211 = vld [vmem:[#allocation6 + $0x4b0] sm:$0xff]
          %v1212 = vld [vmem:[#allocation6 + $0x4b8] sm:$0xff]
          %v1213 = vld [vmem:[#allocation6 + $0x4c0] sm:$0xff]
          %v1214 = vld [vmem:[#allocation6 + $0x4c8] sm:$0xff]
          %v1215 = vld [vmem:[#allocation6 + $0x4d0] sm:$0xff]
          %v1216 = vld [vmem:[#allocation6 + $0x4d8] sm:$0xff]
          %v1217 = vld [vmem:[#allocation6 + $0x4e0] sm:$0xff]
          %v1218 = vld [vmem:[#allocation6 + $0x4e8] sm:$0xff]
          %v1219 = vld [vmem:[#allocation6 + $0x4f0] sm:$0xff]
          %v1220 = vld [vmem:[#allocation6 + $0x4f8] sm:$0xff]
          %v1221 = vld [vmem:[#allocation6 + $0x500] sm:$0xff]
          %v1222 = vld [vmem:[#allocation6 + $0x508] sm:$0xff]
          %v1223 = vld [vmem:[#allocation6 + $0x510] sm:$0xff]
          %v1224 = vld [vmem:[#allocation6 + $0x518] sm:$0xff]
          %v1225 = vld [vmem:[#allocation6 + $0x520] sm:$0xff]
          %v1226 = vld [vmem:[#allocation6 + $0x528] sm:$0xff]
          %v1227 = vld [vmem:[#allocation6 + $0x530] sm:$0xff]
          %v1228 = vld [vmem:[#allocation6 + $0x538] sm:$0xff]
          %v1229 = vld [vmem:[#allocation6 + $0x540] sm:$0xff]
          %v1230 = vld [vmem:[#allocation6 + $0x548] sm:$0xff]
          %v1231 = vld [vmem:[#allocation6 + $0x550] sm:$0xff]
          %v1232 = vld [vmem:[#allocation6 + $0x558] sm:$0xff]
          %v1233 = vld [vmem:[#allocation6 + $0x560] sm:$0xff]
          %v1234 = vld [vmem:[#allocation6 + $0x568] sm:$0xff]
          %v1235 = vld [vmem:[#allocation6 + $0x570] sm:$0xff]
          %v1236 = vld [vmem:[#allocation6 + $0x578] sm:$0xff]
          %v1237 = vld [vmem:[#allocation6 + $0x580] sm:$0xff]
          %v1238 = vld [vmem:[#allocation6 + $0x588] sm:$0xff]
          %v1239 = vld [vmem:[#allocation6 + $0x590] sm:$0xff]
          %v1240 = vld [vmem:[#allocation6 + $0x598] sm:$0xff]
          %v1241 = vld [vmem:[#allocation6 + $0x5a0] sm:$0xff]
          %v1242 = vld [vmem:[#allocation6 + $0x5a8] sm:$0xff]
          %v1243 = vld [vmem:[#allocation6 + $0x5b0] sm:$0xff]
          %v1244 = vld [vmem:[#allocation6 + $0x5b8] sm:$0xff]
          %v1245 = vld [vmem:[#allocation6 + $0x5c0] sm:$0xff]
          %v1246 = vld [vmem:[#allocation6 + $0x5c8] sm:$0xff]
          %v1247 = vld [vmem:[#allocation6 + $0x5d0] sm:$0xff]
          %v1248 = vld [vmem:[#allocation6 + $0x5d8] sm:$0xff]
          %v1249 = vld [vmem:[#allocation6 + $0x5e0] sm:$0xff]
          %v1250 = vld [vmem:[#allocation6 + $0x5e8] sm:$0xff]
          %v1251 = vld [vmem:[#allocation6 + $0x5f0] sm:$0xff]
          %v1252 = vld [vmem:[#allocation6 + $0x5f8] sm:$0xff]
          %v1253 = vld [vmem:[#allocation6 + $0x600] sm:$0xff]
          %v1254 = vld [vmem:[#allocation6 + $0x608] sm:$0xff]
          %v1255 = vld [vmem:[#allocation6 + $0x610] sm:$0xff]
          %v1256 = vld [vmem:[#allocation6 + $0x618] sm:$0xff]
          %v1257 = vld [vmem:[#allocation6 + $0x620] sm:$0xff]
          %v1258 = vld [vmem:[#allocation6 + $0x628] sm:$0xff]
          %v1259 = vld [vmem:[#allocation6 + $0x630] sm:$0xff]
          %v1260 = vld [vmem:[#allocation6 + $0x638] sm:$0xff]
          %v1261 = vld [vmem:[#allocation6 + $0x640] sm:$0xff]
          %v1262 = vld [vmem:[#allocation6 + $0x648] sm:$0xff]
          %v1263 = vld [vmem:[#allocation6 + $0x650] sm:$0xff]
          %v1264 = vld [vmem:[#allocation6 + $0x658] sm:$0xff]
          %v1265 = vld [vmem:[#allocation6 + $0x660] sm:$0xff]
          %v1266 = vld [vmem:[#allocation6 + $0x668] sm:$0xff]
          %v1267 = vld [vmem:[#allocation6 + $0x670] sm:$0xff]
          %v1268 = vld [vmem:[#allocation6 + $0x678] sm:$0xff]
          %v1269 = vld [vmem:[#allocation6 + $0x680] sm:$0xff]
          %v1270 = vld [vmem:[#allocation6 + $0x688] sm:$0xff]
          %v1271 = vld [vmem:[#allocation6 + $0x690] sm:$0xff]
          %v1272 = vld [vmem:[#allocation6 + $0x698] sm:$0xff]
          %v1273 = vld [vmem:[#allocation6 + $0x6a0] sm:$0xff]
          %v1274 = vld [vmem:[#allocation6 + $0x6a8] sm:$0xff]
          %v1275 = vld [vmem:[#allocation6 + $0x6b0] sm:$0xff]
          %v1276 = vld [vmem:[#allocation6 + $0x6b8] sm:$0xff]
          %v1277 = vld [vmem:[#allocation6 + $0x6c0] sm:$0xff]
          %v1278 = vld [vmem:[#allocation6 + $0x6c8] sm:$0xff]
          %v1279 = vld [vmem:[#allocation6 + $0x6d0] sm:$0xff]
          %v1280 = vld [vmem:[#allocation6 + $0x6d8] sm:$0xff]
          %v1281 = vld [vmem:[#allocation6 + $0x6e0] sm:$0xff]
          %v1282 = vld [vmem:[#allocation6 + $0x6e8] sm:$0xff]
          %v1283 = vld [vmem:[#allocation6 + $0x6f0] sm:$0xff]
          %v1284 = vld [vmem:[#allocation6 + $0x6f8] sm:$0xff]
          %v1285 = vld [vmem:[#allocation6 + $0x700] sm:$0xff]
          %v1286 = vld [vmem:[#allocation6 + $0x708] sm:$0xff]
          %v1287 = vld [vmem:[#allocation6 + $0x710] sm:$0xff]
          %v1288 = vld [vmem:[#allocation6 + $0x718] sm:$0xff]
          %v1289 = vld [vmem:[#allocation6 + $0x720] sm:$0xff]
          %v1290 = vld [vmem:[#allocation6 + $0x728] sm:$0xff]
          %v1291 = vld [vmem:[#allocation6 + $0x730] sm:$0xff]
          %v1292 = vld [vmem:[#allocation6 + $0x738] sm:$0xff]
          %v1293 = vld [vmem:[#allocation6 + $0x740] sm:$0xff]
          %v1294 = vld [vmem:[#allocation6 + $0x748] sm:$0xff]
          %v1295 = vld [vmem:[#allocation6 + $0x750] sm:$0xff]
          %v1296 = vld [vmem:[#allocation6 + $0x758] sm:$0xff]
          %v1297 = vld [vmem:[#allocation6 + $0x760] sm:$0xff]
          %v1298 = vld [vmem:[#allocation6 + $0x768] sm:$0xff]
          %v1299 = vld [vmem:[#allocation6 + $0x770] sm:$0xff]
          %v1300 = vld [vmem:[#allocation6 + $0x778] sm:$0xff]
          %v1301 = vld [vmem:[#allocation6 + $0x780] sm:$0xff]
          %v1302 = vld [vmem:[#allocation6 + $0x788] sm:$0xff]
          %v1303 = vld [vmem:[#allocation6 + $0x790] sm:$0xff]
          %v1304 = vld [vmem:[#allocation6 + $0x798] sm:$0xff]
          %v1305 = vld [vmem:[#allocation6 + $0x7a0] sm:$0xff]
          %v1306 = vld [vmem:[#allocation6 + $0x7a8] sm:$0xff]
          %v1307 = vld [vmem:[#allocation6 + $0x7b0] sm:$0xff]
          %v1308 = vld [vmem:[#allocation6 + $0x7b8] sm:$0xff]
          %v1309 = vld [vmem:[#allocation6 + $0x7c0] sm:$0xff]
          %v1310 = vld [vmem:[#allocation6 + $0x7c8] sm:$0xff]
          %v1311 = vld [vmem:[#allocation6 + $0x7d0] sm:$0xff]
          %v1312 = vld [vmem:[#allocation6 + $0x7d8] sm:$0xff]
          %v1313 = vld [vmem:[#allocation6 + $0x7e0] sm:$0xff]
          %v1314 = vld [vmem:[#allocation6 + $0x7e8] sm:$0xff]
          %v1315 = vld [vmem:[#allocation6 + $0x7f0] sm:$0xff]
          %v1316 = vld [vmem:[#allocation6 + $0x7f8] sm:$0xff]
          %v1317 = vld [vmem:[#allocation6 + $0x800] sm:$0xff]
          %v1318 = vld [vmem:[#allocation6 + $0x808] sm:$0xff]
          %v1319 = vld [vmem:[#allocation6 + $0x810] sm:$0xff]
          %v1320 = vld [vmem:[#allocation6 + $0x818] sm:$0xff]
          %v1321 = vld [vmem:[#allocation6 + $0x820] sm:$0xff]
          %v1322 = vld [vmem:[#allocation6 + $0x828] sm:$0xff]
          %v1323 = vld [vmem:[#allocation6 + $0x830] sm:$0xff]
          %v1324 = vld [vmem:[#allocation6 + $0x838] sm:$0xff]
          %v1325 = vld [vmem:[#allocation6 + $0x840] sm:$0xff]
          %v1326 = vld [vmem:[#allocation6 + $0x848] sm:$0xff]
          %v1327 = vld [vmem:[#allocation6 + $0x850] sm:$0xff]
          %v1328 = vld [vmem:[#allocation6 + $0x858] sm:$0xff]
          %v1329 = vld [vmem:[#allocation6 + $0x860] sm:$0xff]
          %v1330 = vld [vmem:[#allocation6 + $0x868] sm:$0xff]
          %v1331 = vld [vmem:[#allocation6 + $0x870] sm:$0xff]
          %v1332 = vld [vmem:[#allocation6 + $0x878] sm:$0xff]
          %v1333 = vld [vmem:[#allocation6 + $0x880] sm:$0xff]
          %v1334 = vld [vmem:[#allocation6 + $0x888] sm:$0xff]
          %v1335 = vld [vmem:[#allocation6 + $0x890] sm:$0xff]
          %v1336 = vld [vmem:[#allocation6 + $0x898] sm:$0xff]
          %v1337 = vld [vmem:[#allocation6 + $0x8a0] sm:$0xff]
          %v1338 = vld [vmem:[#allocation6 + $0x8a8] sm:$0xff]
          %v1339 = vld [vmem:[#allocation6 + $0x8b0] sm:$0xff]
          %v1340 = vld [vmem:[#allocation6 + $0x8b8] sm:$0xff]
          %v1341 = vld [vmem:[#allocation6 + $0x8c0] sm:$0xff]
          %v1342 = vld [vmem:[#allocation6 + $0x8c8] sm:$0xff]
          %v1343 = vld [vmem:[#allocation6 + $0x8d0] sm:$0xff]
          %v1344 = vld [vmem:[#allocation6 + $0x8d8] sm:$0xff]
          %v1345 = vld [vmem:[#allocation6 + $0x8e0] sm:$0xff]
          %v1346 = vld [vmem:[#allocation6 + $0x8e8] sm:$0xff]
          %v1347 = vld [vmem:[#allocation6 + $0x8f0] sm:$0xff]
          %v1348 = vld [vmem:[#allocation6 + $0x8f8] sm:$0xff]
          %v1349 = vld [vmem:[#allocation6 + $0x900] sm:$0xff]
          %v1350 = vld [vmem:[#allocation6 + $0x908] sm:$0xff]
          %v1351 = vld [vmem:[#allocation6 + $0x910] sm:$0xff]
          %v1352 = vld [vmem:[#allocation6 + $0x918] sm:$0xff]
          %v1353 = vld [vmem:[#allocation6 + $0x920] sm:$0xff]
          %v1354 = vld [vmem:[#allocation6 + $0x928] sm:$0xff]
          %v1355 = vld [vmem:[#allocation6 + $0x930] sm:$0xff]
          %v1356 = vld [vmem:[#allocation6 + $0x938] sm:$0xff]
          %v1357 = vld [vmem:[#allocation6 + $0x940] sm:$0xff]
          %v1358 = vld [vmem:[#allocation6 + $0x948] sm:$0xff]
          %v1359 = vld [vmem:[#allocation6 + $0x950] sm:$0xff]
          %v1360 = vld [vmem:[#allocation6 + $0x958] sm:$0xff]
          %v1361 = vld [vmem:[#allocation6 + $0x960] sm:$0xff]
          %v1362 = vld [vmem:[#allocation6 + $0x968] sm:$0xff]
          %v1363 = vld [vmem:[#allocation6 + $0x970] sm:$0xff]
          %v1364 = vld [vmem:[#allocation6 + $0x978] sm:$0xff]
          %v1365 = vld [vmem:[#allocation6 + $0x980] sm:$0xff]
          %v1366 = vld [vmem:[#allocation6 + $0x988] sm:$0xff]
          %v1367 = vld [vmem:[#allocation6 + $0x990] sm:$0xff]
          %v1368 = vld [vmem:[#allocation6 + $0x998] sm:$0xff]
          %v1369 = vld [vmem:[#allocation6 + $0x9a0] sm:$0xff]
          %v1370 = vld [vmem:[#allocation6 + $0x9a8] sm:$0xff]
          %v1371 = vld [vmem:[#allocation6 + $0x9b0] sm:$0xff]
          %v1372 = vld [vmem:[#allocation6 + $0x9b8] sm:$0xff]
          %v1373 = vld [vmem:[#allocation6 + $0x9c0] sm:$0xff]
          %v1374 = vld [vmem:[#allocation6 + $0x9c8] sm:$0xff]
          %v1375 = vld [vmem:[#allocation6 + $0x9d0] sm:$0xff]
          %v1376 = vld [vmem:[#allocation6 + $0x9d8] sm:$0xff]
          %v1377 = vld [vmem:[#allocation6 + $0x9e0] sm:$0xff]
          %v1378 = vld [vmem:[#allocation6 + $0x9e8] sm:$0xff]
          %v1379 = vld [vmem:[#allocation6 + $0x9f0] sm:$0xff]
          %v1380 = vld [vmem:[#allocation6 + $0x9f8] sm:$0xff]
          %v1381 = vld [vmem:[#allocation8] sm:$0xf]
          %v1383 = vlaneseq
          %v1384 = vshrl.u32 %v1383, 7
          %v1385 = vsub.s32 0, %v1384
          %v1386 = vrot.slane %v1381, %v1385
          %v1387 = vlaneseq
          %v1388 = vshrl.u32 %v1387, 7
          %v1389 = vsub.s32 1, %v1388
          %v1390 = vrot.slane %v1381, %v1389
          %v1391 = vlaneseq
          %v1392 = vshrl.u32 %v1391, 7
          %v1393 = vsub.s32 2, %v1392
          %v1394 = vrot.slane %v1381, %v1393
          %v1395 = vlaneseq
          %v1396 = vshrl.u32 %v1395, 7
          %v1397 = vsub.s32 3, %v1396
          %v1398 = vrot.slane %v1381, %v1397
          %v1723 = vunpack.c.l.b16 %v1061
          %v1724 = vunpack.c.h.b16 %v1061
          %v1725 = vunpack.c.l.b16 %v1062
          %v1726 = vunpack.c.h.b16 %v1062
          %v1727 = vunpack.c.l.b16 %v1063
          %v1728 = vunpack.c.h.b16 %v1063
          %v1729 = vunpack.c.l.b16 %v1064
          %v1730 = vunpack.c.h.b16 %v1064
          %v1731 = vunpack.c.l.b16 %v1065
          %v1732 = vunpack.c.h.b16 %v1065
          %v1733 = vunpack.c.l.b16 %v1066
          %v1734 = vunpack.c.h.b16 %v1066
          %v1735 = vunpack.c.l.b16 %v1067
          %v1736 = vunpack.c.h.b16 %v1067
          %v1737 = vunpack.c.l.b16 %v1068
          %v1738 = vunpack.c.h.b16 %v1068
          %v1739 = vunpack.c.l.b16 %v1069
          %v1740 = vunpack.c.h.b16 %v1069
          %v1741 = vunpack.c.l.b16 %v1070
          %v1742 = vunpack.c.h.b16 %v1070
          %v1743 = vunpack.c.l.b16 %v1071
          %v1744 = vunpack.c.h.b16 %v1071
          %v1745 = vunpack.c.l.b16 %v1072
          %v1746 = vunpack.c.h.b16 %v1072
          %v1747 = vunpack.c.l.b16 %v1073
          %v1748 = vunpack.c.h.b16 %v1073
          %v1749 = vunpack.c.l.b16 %v1074
          %v1750 = vunpack.c.h.b16 %v1074
          %v1751 = vunpack.c.l.b16 %v1075
          %v1752 = vunpack.c.h.b16 %v1075
          %v1753 = vunpack.c.l.b16 %v1076
          %v1754 = vunpack.c.h.b16 %v1076
          %v1755 = vunpack.c.l.b16 %v1077
          %v1756 = vunpack.c.h.b16 %v1077
          %v1757 = vunpack.c.l.b16 %v1078
          %v1758 = vunpack.c.h.b16 %v1078
          %v1759 = vunpack.c.l.b16 %v1079
          %v1760 = vunpack.c.h.b16 %v1079
          %v1761 = vunpack.c.l.b16 %v1080
          %v1762 = vunpack.c.h.b16 %v1080
          %v1763 = vunpack.c.l.b16 %v1081
          %v1764 = vunpack.c.h.b16 %v1081
          %v1765 = vunpack.c.l.b16 %v1082
          %v1766 = vunpack.c.h.b16 %v1082
          %v1767 = vunpack.c.l.b16 %v1083
          %v1768 = vunpack.c.h.b16 %v1083
          %v1769 = vunpack.c.l.b16 %v1084
          %v1770 = vunpack.c.h.b16 %v1084
          %v1771 = vunpack.c.l.b16 %v1085
          %v1772 = vunpack.c.h.b16 %v1085
          %v1773 = vunpack.c.l.b16 %v1086
          %v1774 = vunpack.c.h.b16 %v1086
          %v1775 = vunpack.c.l.b16 %v1087
          %v1776 = vunpack.c.h.b16 %v1087
          %v1777 = vunpack.c.l.b16 %v1088
          %v1778 = vunpack.c.h.b16 %v1088
          %v1779 = vunpack.c.l.b16 %v1089
          %v1780 = vunpack.c.h.b16 %v1089
          %v1781 = vunpack.c.l.b16 %v1090
          %v1782 = vunpack.c.h.b16 %v1090
          %v1783 = vunpack.c.l.b16 %v1091
          %v1784 = vunpack.c.h.b16 %v1091
          %v1785 = vunpack.c.l.b16 %v1092
          %v1786 = vunpack.c.h.b16 %v1092
          %v1787 = vunpack.c.l.b16 %v1093
          %v1788 = vunpack.c.h.b16 %v1093
          %v1789 = vunpack.c.l.b16 %v1094
          %v1790 = vunpack.c.h.b16 %v1094
          %v1791 = vunpack.c.l.b16 %v1095
          %v1792 = vunpack.c.h.b16 %v1095
          %v1793 = vunpack.c.l.b16 %v1096
          %v1794 = vunpack.c.h.b16 %v1096
          %v1795 = vunpack.c.l.b16 %v1097
          %v1796 = vunpack.c.h.b16 %v1097
          %v1797 = vunpack.c.l.b16 %v1098
          %v1798 = vunpack.c.h.b16 %v1098
          %v1799 = vunpack.c.l.b16 %v1099
          %v1800 = vunpack.c.h.b16 %v1099
          %v1801 = vunpack.c.l.b16 %v1100
          %v1802 = vunpack.c.h.b16 %v1100
          %v1803 = vunpack.c.l.b16 %v1101
          %v1804 = vunpack.c.h.b16 %v1101
          %v1805 = vunpack.c.l.b16 %v1102
          %v1806 = vunpack.c.h.b16 %v1102
          %v1807 = vunpack.c.l.b16 %v1103
          %v1808 = vunpack.c.h.b16 %v1103
          %v1809 = vunpack.c.l.b16 %v1104
          %v1810 = vunpack.c.h.b16 %v1104
          %v1811 = vunpack.c.l.b16 %v1105
          %v1812 = vunpack.c.h.b16 %v1105
          %v1813 = vunpack.c.l.b16 %v1106
          %v1814 = vunpack.c.h.b16 %v1106
          %v1815 = vunpack.c.l.b16 %v1107
          %v1816 = vunpack.c.h.b16 %v1107
          %v1817 = vunpack.c.l.b16 %v1108
          %v1818 = vunpack.c.h.b16 %v1108
          %v1819 = vunpack.c.l.b16 %v1109
          %v1820 = vunpack.c.h.b16 %v1109
          %v1821 = vunpack.c.l.b16 %v1110
          %v1822 = vunpack.c.h.b16 %v1110
          %v1823 = vunpack.c.l.b16 %v1111
          %v1824 = vunpack.c.h.b16 %v1111
          %v1825 = vunpack.c.l.b16 %v1112
          %v1826 = vunpack.c.h.b16 %v1112
          %v1827 = vunpack.c.l.b16 %v1113
          %v1828 = vunpack.c.h.b16 %v1113
          %v1829 = vunpack.c.l.b16 %v1114
          %v1830 = vunpack.c.h.b16 %v1114
          %v1831 = vunpack.c.l.b16 %v1115
          %v1832 = vunpack.c.h.b16 %v1115
          %v1833 = vunpack.c.l.b16 %v1116
          %v1834 = vunpack.c.h.b16 %v1116
          %v1835 = vunpack.c.l.b16 %v1117
          %v1836 = vunpack.c.h.b16 %v1117
          %v1837 = vunpack.c.l.b16 %v1118
          %v1838 = vunpack.c.h.b16 %v1118
          %v1839 = vunpack.c.l.b16 %v1119
          %v1840 = vunpack.c.h.b16 %v1119
          %v1841 = vunpack.c.l.b16 %v1120
          %v1842 = vunpack.c.h.b16 %v1120
          %v1843 = vunpack.c.l.b16 %v1121
          %v1844 = vunpack.c.h.b16 %v1121
          %v1845 = vunpack.c.l.b16 %v1122
          %v1846 = vunpack.c.h.b16 %v1122
          %v1847 = vunpack.c.l.b16 %v1123
          %v1848 = vunpack.c.h.b16 %v1123
          %v1849 = vunpack.c.l.b16 %v1124
          %v1850 = vunpack.c.h.b16 %v1124
          %v1851 = vunpack.c.l.b16 %v1125
          %v1852 = vunpack.c.h.b16 %v1125
          %v1853 = vunpack.c.l.b16 %v1126
          %v1854 = vunpack.c.h.b16 %v1126
          %v1855 = vunpack.c.l.b16 %v1127
          %v1856 = vunpack.c.h.b16 %v1127
          %v1857 = vunpack.c.l.b16 %v1128
          %v1858 = vunpack.c.h.b16 %v1128
          %v1859 = vunpack.c.l.b16 %v1129
          %v1860 = vunpack.c.h.b16 %v1129
          %v1861 = vunpack.c.l.b16 %v1130
          %v1862 = vunpack.c.h.b16 %v1130
          %v1863 = vunpack.c.l.b16 %v1131
          %v1864 = vunpack.c.h.b16 %v1131
          %v1865 = vunpack.c.l.b16 %v1132
          %v1866 = vunpack.c.h.b16 %v1132
          %v1867 = vunpack.c.l.b16 %v1133
          %v1868 = vunpack.c.h.b16 %v1133
          %v1869 = vunpack.c.l.b16 %v1134
          %v1870 = vunpack.c.h.b16 %v1134
          %v1871 = vunpack.c.l.b16 %v1135
          %v1872 = vunpack.c.h.b16 %v1135
          %v1873 = vunpack.c.l.b16 %v1136
          %v1874 = vunpack.c.h.b16 %v1136
          %v1875 = vunpack.c.l.b16 %v1137
          %v1876 = vunpack.c.h.b16 %v1137
          %v1877 = vunpack.c.l.b16 %v1138
          %v1878 = vunpack.c.h.b16 %v1138
          %v1879 = vunpack.c.l.b16 %v1139
          %v1880 = vunpack.c.h.b16 %v1139
          %v1881 = vunpack.c.l.b16 %v1140
          %v1882 = vunpack.c.h.b16 %v1140
          %v1883 = vunpack.c.l.b16 %v1141
          %v1884 = vunpack.c.h.b16 %v1141
          %v1885 = vunpack.c.l.b16 %v1142
          %v1886 = vunpack.c.h.b16 %v1142
          %v1887 = vunpack.c.l.b16 %v1143
          %v1888 = vunpack.c.h.b16 %v1143
          %v1889 = vunpack.c.l.b16 %v1144
          %v1890 = vunpack.c.h.b16 %v1144
          %v1891 = vunpack.c.l.b16 %v1145
          %v1892 = vunpack.c.h.b16 %v1145
          %v1893 = vunpack.c.l.b16 %v1146
          %v1894 = vunpack.c.h.b16 %v1146
          %v1895 = vunpack.c.l.b16 %v1147
          %v1896 = vunpack.c.h.b16 %v1147
          %v1897 = vunpack.c.l.b16 %v1148
          %v1898 = vunpack.c.h.b16 %v1148
          %v1899 = vunpack.c.l.b16 %v1149
          %v1900 = vunpack.c.h.b16 %v1149
          %v1901 = vunpack.c.l.b16 %v1150
          %v1902 = vunpack.c.h.b16 %v1150
          %v1903 = vunpack.c.l.b16 %v1151
          %v1904 = vunpack.c.h.b16 %v1151
          %v1905 = vunpack.c.l.b16 %v1152
          %v1906 = vunpack.c.h.b16 %v1152
          %v1907 = vunpack.c.l.b16 %v1153
          %v1908 = vunpack.c.h.b16 %v1153
          %v1909 = vunpack.c.l.b16 %v1154
          %v1910 = vunpack.c.h.b16 %v1154
          %v1911 = vunpack.c.l.b16 %v1155
          %v1912 = vunpack.c.h.b16 %v1155
          %v1913 = vunpack.c.l.b16 %v1156
          %v1914 = vunpack.c.h.b16 %v1156
          %v1915 = vunpack.c.l.b16 %v1157
          %v1916 = vunpack.c.h.b16 %v1157
          %v1917 = vunpack.c.l.b16 %v1158
          %v1918 = vunpack.c.h.b16 %v1158
          %v1919 = vunpack.c.l.b16 %v1159
          %v1920 = vunpack.c.h.b16 %v1159
          %v1921 = vunpack.c.l.b16 %v1160
          %v1922 = vunpack.c.h.b16 %v1160
          %v1923 = vunpack.c.l.b16 %v1161
          %v1924 = vunpack.c.h.b16 %v1161
          %v1925 = vunpack.c.l.b16 %v1162
          %v1926 = vunpack.c.h.b16 %v1162
          %v1927 = vunpack.c.l.b16 %v1163
          %v1928 = vunpack.c.h.b16 %v1163
          %v1929 = vunpack.c.l.b16 %v1164
          %v1930 = vunpack.c.h.b16 %v1164
          %v1931 = vunpack.c.l.b16 %v1165
          %v1932 = vunpack.c.h.b16 %v1165
          %v1933 = vunpack.c.l.b16 %v1166
          %v1934 = vunpack.c.h.b16 %v1166
          %v1935 = vunpack.c.l.b16 %v1167
          %v1936 = vunpack.c.h.b16 %v1167
          %v1937 = vunpack.c.l.b16 %v1168
          %v1938 = vunpack.c.h.b16 %v1168
          %v1939 = vunpack.c.l.b16 %v1169
          %v1940 = vunpack.c.h.b16 %v1169
          %v1941 = vunpack.c.l.b16 %v1170
          %v1942 = vunpack.c.h.b16 %v1170
          %v1943 = vunpack.c.l.b16 %v1171
          %v1944 = vunpack.c.h.b16 %v1171
          %v1945 = vunpack.c.l.b16 %v1172
          %v1946 = vunpack.c.h.b16 %v1172
          %v1947 = vunpack.c.l.b16 %v1173
          %v1948 = vunpack.c.h.b16 %v1173
          %v1949 = vunpack.c.l.b16 %v1174
          %v1950 = vunpack.c.h.b16 %v1174
          %v1951 = vunpack.c.l.b16 %v1175
          %v1952 = vunpack.c.h.b16 %v1175
          %v1953 = vunpack.c.l.b16 %v1176
          %v1954 = vunpack.c.h.b16 %v1176
          %v1955 = vunpack.c.l.b16 %v1177
          %v1956 = vunpack.c.h.b16 %v1177
          %v1957 = vunpack.c.l.b16 %v1178
          %v1958 = vunpack.c.h.b16 %v1178
          %v1959 = vunpack.c.l.b16 %v1179
          %v1960 = vunpack.c.h.b16 %v1179
          %v1961 = vunpack.c.l.b16 %v1180
          %v1962 = vunpack.c.h.b16 %v1180
          %v1963 = vunpack.c.l.b16 %v1181
          %v1964 = vunpack.c.h.b16 %v1181
          %v1965 = vunpack.c.l.b16 %v1182
          %v1966 = vunpack.c.h.b16 %v1182
          %v1967 = vunpack.c.l.b16 %v1183
          %v1968 = vunpack.c.h.b16 %v1183
          %v1969 = vunpack.c.l.b16 %v1184
          %v1970 = vunpack.c.h.b16 %v1184
          %v1971 = vunpack.c.l.b16 %v1185
          %v1972 = vunpack.c.h.b16 %v1185
          %v1973 = vunpack.c.l.b16 %v1186
          %v1974 = vunpack.c.h.b16 %v1186
          %v1975 = vunpack.c.l.b16 %v1187
          %v1976 = vunpack.c.h.b16 %v1187
          %v1977 = vunpack.c.l.b16 %v1188
          %v1978 = vunpack.c.h.b16 %v1188
          %v1979 = vunpack.c.l.b16 %v1189
          %v1980 = vunpack.c.h.b16 %v1189
          %v1981 = vunpack.c.l.b16 %v1190
          %v1982 = vunpack.c.h.b16 %v1190
          %v1983 = vunpack.c.l.b16 %v1191
          %v1984 = vunpack.c.h.b16 %v1191
          %v1985 = vunpack.c.l.b16 %v1192
          %v1986 = vunpack.c.h.b16 %v1192
          %v1987 = vunpack.c.l.b16 %v1193
          %v1988 = vunpack.c.h.b16 %v1193
          %v1989 = vunpack.c.l.b16 %v1194
          %v1990 = vunpack.c.h.b16 %v1194
          %v1991 = vunpack.c.l.b16 %v1195
          %v1992 = vunpack.c.h.b16 %v1195
          %v1993 = vunpack.c.l.b16 %v1196
          %v1994 = vunpack.c.h.b16 %v1196
          %v1995 = vunpack.c.l.b16 %v1197
          %v1996 = vunpack.c.h.b16 %v1197
          %v1997 = vunpack.c.l.b16 %v1198
          %v1998 = vunpack.c.h.b16 %v1198
          %v1999 = vunpack.c.l.b16 %v1199
          %v2000 = vunpack.c.h.b16 %v1199
          %v2001 = vunpack.c.l.b16 %v1200
          %v2002 = vunpack.c.h.b16 %v1200
          %v2003 = vunpack.c.l.b16 %v1201
          %v2004 = vunpack.c.h.b16 %v1201
          %v2005 = vunpack.c.l.b16 %v1202
          %v2006 = vunpack.c.h.b16 %v1202
          %v2007 = vunpack.c.l.b16 %v1203
          %v2008 = vunpack.c.h.b16 %v1203
          %v2009 = vunpack.c.l.b16 %v1204
          %v2010 = vunpack.c.h.b16 %v1204
          %v2011 = vunpack.c.l.b16 %v1205
          %v2012 = vunpack.c.h.b16 %v1205
          %v2013 = vunpack.c.l.b16 %v1206
          %v2014 = vunpack.c.h.b16 %v1206
          %v2015 = vunpack.c.l.b16 %v1207
          %v2016 = vunpack.c.h.b16 %v1207
          %v2017 = vunpack.c.l.b16 %v1208
          %v2018 = vunpack.c.h.b16 %v1208
          %v2019 = vunpack.c.l.b16 %v1209
          %v2020 = vunpack.c.h.b16 %v1209
          %v2021 = vunpack.c.l.b16 %v1210
          %v2022 = vunpack.c.h.b16 %v1210
          %v2023 = vunpack.c.l.b16 %v1211
          %v2024 = vunpack.c.h.b16 %v1211
          %v2025 = vunpack.c.l.b16 %v1212
          %v2026 = vunpack.c.h.b16 %v1212
          %v2027 = vunpack.c.l.b16 %v1213
          %v2028 = vunpack.c.h.b16 %v1213
          %v2029 = vunpack.c.l.b16 %v1214
          %v2030 = vunpack.c.h.b16 %v1214
          %v2031 = vunpack.c.l.b16 %v1215
          %v2032 = vunpack.c.h.b16 %v1215
          %v2033 = vunpack.c.l.b16 %v1216
          %v2034 = vunpack.c.h.b16 %v1216
          %v2035 = vunpack.c.l.b16 %v1217
          %v2036 = vunpack.c.h.b16 %v1217
          %v2037 = vunpack.c.l.b16 %v1218
          %v2038 = vunpack.c.h.b16 %v1218
          %v2039 = vunpack.c.l.b16 %v1219
          %v2040 = vunpack.c.h.b16 %v1219
          %v2041 = vunpack.c.l.b16 %v1220
          %v2042 = vunpack.c.h.b16 %v1220
          %v2043 = vunpack.c.l.b16 %v1221
          %v2044 = vunpack.c.h.b16 %v1221
          %v2045 = vunpack.c.l.b16 %v1222
          %v2046 = vunpack.c.h.b16 %v1222
          %v2047 = vunpack.c.l.b16 %v1223
          %v2048 = vunpack.c.h.b16 %v1223
          %v2049 = vunpack.c.l.b16 %v1224
          %v2050 = vunpack.c.h.b16 %v1224
          %v2051 = vunpack.c.l.b16 %v1225
          %v2052 = vunpack.c.h.b16 %v1225
          %v2053 = vunpack.c.l.b16 %v1226
          %v2054 = vunpack.c.h.b16 %v1226
          %v2055 = vunpack.c.l.b16 %v1227
          %v2056 = vunpack.c.h.b16 %v1227
          %v2057 = vunpack.c.l.b16 %v1228
          %v2058 = vunpack.c.h.b16 %v1228
          %v2059 = vunpack.c.l.b16 %v1229
          %v2060 = vunpack.c.h.b16 %v1229
          %v2061 = vunpack.c.l.b16 %v1230
          %v2062 = vunpack.c.h.b16 %v1230
          %v2063 = vunpack.c.l.b16 %v1231
          %v2064 = vunpack.c.h.b16 %v1231
          %v2065 = vunpack.c.l.b16 %v1232
          %v2066 = vunpack.c.h.b16 %v1232
          %v2067 = vunpack.c.l.b16 %v1233
          %v2068 = vunpack.c.h.b16 %v1233
          %v2069 = vunpack.c.l.b16 %v1234
          %v2070 = vunpack.c.h.b16 %v1234
          %v2071 = vunpack.c.l.b16 %v1235
          %v2072 = vunpack.c.h.b16 %v1235
          %v2073 = vunpack.c.l.b16 %v1236
          %v2074 = vunpack.c.h.b16 %v1236
          %v2075 = vunpack.c.l.b16 %v1237
          %v2076 = vunpack.c.h.b16 %v1237
          %v2077 = vunpack.c.l.b16 %v1238
          %v2078 = vunpack.c.h.b16 %v1238
          %v2079 = vunpack.c.l.b16 %v1239
          %v2080 = vunpack.c.h.b16 %v1239
          %v2081 = vunpack.c.l.b16 %v1240
          %v2082 = vunpack.c.h.b16 %v1240
          %v2083 = vunpack.c.l.b16 %v1241
          %v2084 = vunpack.c.h.b16 %v1241
          %v2085 = vunpack.c.l.b16 %v1242
          %v2086 = vunpack.c.h.b16 %v1242
          %v2087 = vunpack.c.l.b16 %v1243
          %v2088 = vunpack.c.h.b16 %v1243
          %v2089 = vunpack.c.l.b16 %v1244
          %v2090 = vunpack.c.h.b16 %v1244
          %v2091 = vunpack.c.l.b16 %v1245
          %v2092 = vunpack.c.h.b16 %v1245
          %v2093 = vunpack.c.l.b16 %v1246
          %v2094 = vunpack.c.h.b16 %v1246
          %v2095 = vunpack.c.l.b16 %v1247
          %v2096 = vunpack.c.h.b16 %v1247
          %v2097 = vunpack.c.l.b16 %v1248
          %v2098 = vunpack.c.h.b16 %v1248
          %v2099 = vunpack.c.l.b16 %v1249
          %v2100 = vunpack.c.h.b16 %v1249
          %v2101 = vunpack.c.l.b16 %v1250
          %v2102 = vunpack.c.h.b16 %v1250
          %v2103 = vunpack.c.l.b16 %v1251
          %v2104 = vunpack.c.h.b16 %v1251
          %v2105 = vunpack.c.l.b16 %v1252
          %v2106 = vunpack.c.h.b16 %v1252
          %v2107 = vunpack.c.l.b16 %v1253
          %v2108 = vunpack.c.h.b16 %v1253
          %v2109 = vunpack.c.l.b16 %v1254
          %v2110 = vunpack.c.h.b16 %v1254
          %v2111 = vunpack.c.l.b16 %v1255
          %v2112 = vunpack.c.h.b16 %v1255
          %v2113 = vunpack.c.l.b16 %v1256
          %v2114 = vunpack.c.h.b16 %v1256
          %v2115 = vunpack.c.l.b16 %v1257
          %v2116 = vunpack.c.h.b16 %v1257
          %v2117 = vunpack.c.l.b16 %v1258
          %v2118 = vunpack.c.h.b16 %v1258
          %v2119 = vunpack.c.l.b16 %v1259
          %v2120 = vunpack.c.h.b16 %v1259
          %v2121 = vunpack.c.l.b16 %v1260
          %v2122 = vunpack.c.h.b16 %v1260
          %v2123 = vunpack.c.l.b16 %v1261
          %v2124 = vunpack.c.h.b16 %v1261
          %v2125 = vunpack.c.l.b16 %v1262
          %v2126 = vunpack.c.h.b16 %v1262
          %v2127 = vunpack.c.l.b16 %v1263
          %v2128 = vunpack.c.h.b16 %v1263
          %v2129 = vunpack.c.l.b16 %v1264
          %v2130 = vunpack.c.h.b16 %v1264
          %v2131 = vunpack.c.l.b16 %v1265
          %v2132 = vunpack.c.h.b16 %v1265
          %v2133 = vunpack.c.l.b16 %v1266
          %v2134 = vunpack.c.h.b16 %v1266
          %v2135 = vunpack.c.l.b16 %v1267
          %v2136 = vunpack.c.h.b16 %v1267
          %v2137 = vunpack.c.l.b16 %v1268
          %v2138 = vunpack.c.h.b16 %v1268
          %v2139 = vunpack.c.l.b16 %v1269
          %v2140 = vunpack.c.h.b16 %v1269
          %v2141 = vunpack.c.l.b16 %v1270
          %v2142 = vunpack.c.h.b16 %v1270
          %v2143 = vunpack.c.l.b16 %v1271
          %v2144 = vunpack.c.h.b16 %v1271
          %v2145 = vunpack.c.l.b16 %v1272
          %v2146 = vunpack.c.h.b16 %v1272
          %v2147 = vunpack.c.l.b16 %v1273
          %v2148 = vunpack.c.h.b16 %v1273
          %v2149 = vunpack.c.l.b16 %v1274
          %v2150 = vunpack.c.h.b16 %v1274
          %v2151 = vunpack.c.l.b16 %v1275
          %v2152 = vunpack.c.h.b16 %v1275
          %v2153 = vunpack.c.l.b16 %v1276
          %v2154 = vunpack.c.h.b16 %v1276
          %v2155 = vunpack.c.l.b16 %v1277
          %v2156 = vunpack.c.h.b16 %v1277
          %v2157 = vunpack.c.l.b16 %v1278
          %v2158 = vunpack.c.h.b16 %v1278
          %v2159 = vunpack.c.l.b16 %v1279
          %v2160 = vunpack.c.h.b16 %v1279
          %v2161 = vunpack.c.l.b16 %v1280
          %v2162 = vunpack.c.h.b16 %v1280
          %v2163 = vunpack.c.l.b16 %v1281
          %v2164 = vunpack.c.h.b16 %v1281
          %v2165 = vunpack.c.l.b16 %v1282
          %v2166 = vunpack.c.h.b16 %v1282
          %v2167 = vunpack.c.l.b16 %v1283
          %v2168 = vunpack.c.h.b16 %v1283
          %v2169 = vunpack.c.l.b16 %v1284
          %v2170 = vunpack.c.h.b16 %v1284
          %v2171 = vunpack.c.l.b16 %v1285
          %v2172 = vunpack.c.h.b16 %v1285
          %v2173 = vunpack.c.l.b16 %v1286
          %v2174 = vunpack.c.h.b16 %v1286
          %v2175 = vunpack.c.l.b16 %v1287
          %v2176 = vunpack.c.h.b16 %v1287
          %v2177 = vunpack.c.l.b16 %v1288
          %v2178 = vunpack.c.h.b16 %v1288
          %v2179 = vunpack.c.l.b16 %v1289
          %v2180 = vunpack.c.h.b16 %v1289
          %v2181 = vunpack.c.l.b16 %v1290
          %v2182 = vunpack.c.h.b16 %v1290
          %v2183 = vunpack.c.l.b16 %v1291
          %v2184 = vunpack.c.h.b16 %v1291
          %v2185 = vunpack.c.l.b16 %v1292
          %v2186 = vunpack.c.h.b16 %v1292
          %v2187 = vunpack.c.l.b16 %v1293
          %v2188 = vunpack.c.h.b16 %v1293
          %v2189 = vunpack.c.l.b16 %v1294
          %v2190 = vunpack.c.h.b16 %v1294
          %v2191 = vunpack.c.l.b16 %v1295
          %v2192 = vunpack.c.h.b16 %v1295
          %v2193 = vunpack.c.l.b16 %v1296
          %v2194 = vunpack.c.h.b16 %v1296
          %v2195 = vunpack.c.l.b16 %v1297
          %v2196 = vunpack.c.h.b16 %v1297
          %v2197 = vunpack.c.l.b16 %v1298
          %v2198 = vunpack.c.h.b16 %v1298
          %v2199 = vunpack.c.l.b16 %v1299
          %v2200 = vunpack.c.h.b16 %v1299
          %v2201 = vunpack.c.l.b16 %v1300
          %v2202 = vunpack.c.h.b16 %v1300
          %v2203 = vunpack.c.l.b16 %v1301
          %v2204 = vunpack.c.h.b16 %v1301
          %v2205 = vunpack.c.l.b16 %v1302
          %v2206 = vunpack.c.h.b16 %v1302
          %v2207 = vunpack.c.l.b16 %v1303
          %v2208 = vunpack.c.h.b16 %v1303
          %v2209 = vunpack.c.l.b16 %v1304
          %v2210 = vunpack.c.h.b16 %v1304
          %v2211 = vunpack.c.l.b16 %v1305
          %v2212 = vunpack.c.h.b16 %v1305
          %v2213 = vunpack.c.l.b16 %v1306
          %v2214 = vunpack.c.h.b16 %v1306
          %v2215 = vunpack.c.l.b16 %v1307
          %v2216 = vunpack.c.h.b16 %v1307
          %v2217 = vunpack.c.l.b16 %v1308
          %v2218 = vunpack.c.h.b16 %v1308
          %v2219 = vunpack.c.l.b16 %v1309
          %v2220 = vunpack.c.h.b16 %v1309
          %v2221 = vunpack.c.l.b16 %v1310
          %v2222 = vunpack.c.h.b16 %v1310
          %v2223 = vunpack.c.l.b16 %v1311
          %v2224 = vunpack.c.h.b16 %v1311
          %v2225 = vunpack.c.l.b16 %v1312
          %v2226 = vunpack.c.h.b16 %v1312
          %v2227 = vunpack.c.l.b16 %v1313
          %v2228 = vunpack.c.h.b16 %v1313
          %v2229 = vunpack.c.l.b16 %v1314
          %v2230 = vunpack.c.h.b16 %v1314
          %v2231 = vunpack.c.l.b16 %v1315
          %v2232 = vunpack.c.h.b16 %v1315
          %v2233 = vunpack.c.l.b16 %v1316
          %v2234 = vunpack.c.h.b16 %v1316
          %v2235 = vunpack.c.l.b16 %v1317
          %v2236 = vunpack.c.h.b16 %v1317
          %v2237 = vunpack.c.l.b16 %v1318
          %v2238 = vunpack.c.h.b16 %v1318
          %v2239 = vunpack.c.l.b16 %v1319
          %v2240 = vunpack.c.h.b16 %v1319
          %v2241 = vunpack.c.l.b16 %v1320
          %v2242 = vunpack.c.h.b16 %v1320
          %v2243 = vunpack.c.l.b16 %v1321
          %v2244 = vunpack.c.h.b16 %v1321
          %v2245 = vunpack.c.l.b16 %v1322
          %v2246 = vunpack.c.h.b16 %v1322
          %v2247 = vunpack.c.l.b16 %v1323
          %v2248 = vunpack.c.h.b16 %v1323
          %v2249 = vunpack.c.l.b16 %v1324
          %v2250 = vunpack.c.h.b16 %v1324
          %v2251 = vunpack.c.l.b16 %v1325
          %v2252 = vunpack.c.h.b16 %v1325
          %v2253 = vunpack.c.l.b16 %v1326
          %v2254 = vunpack.c.h.b16 %v1326
          %v2255 = vunpack.c.l.b16 %v1327
          %v2256 = vunpack.c.h.b16 %v1327
          %v2257 = vunpack.c.l.b16 %v1328
          %v2258 = vunpack.c.h.b16 %v1328
          %v2259 = vunpack.c.l.b16 %v1329
          %v2260 = vunpack.c.h.b16 %v1329
          %v2261 = vunpack.c.l.b16 %v1330
          %v2262 = vunpack.c.h.b16 %v1330
          %v2263 = vunpack.c.l.b16 %v1331
          %v2264 = vunpack.c.h.b16 %v1331
          %v2265 = vunpack.c.l.b16 %v1332
          %v2266 = vunpack.c.h.b16 %v1332
          %v2267 = vunpack.c.l.b16 %v1333
          %v2268 = vunpack.c.h.b16 %v1333
          %v2269 = vunpack.c.l.b16 %v1334
          %v2270 = vunpack.c.h.b16 %v1334
          %v2271 = vunpack.c.l.b16 %v1335
          %v2272 = vunpack.c.h.b16 %v1335
          %v2273 = vunpack.c.l.b16 %v1336
          %v2274 = vunpack.c.h.b16 %v1336
          %v2275 = vunpack.c.l.b16 %v1337
          %v2276 = vunpack.c.h.b16 %v1337
          %v2277 = vunpack.c.l.b16 %v1338
          %v2278 = vunpack.c.h.b16 %v1338
          %v2279 = vunpack.c.l.b16 %v1339
          %v2280 = vunpack.c.h.b16 %v1339
          %v2281 = vunpack.c.l.b16 %v1340
          %v2282 = vunpack.c.h.b16 %v1340
          %v2283 = vunpack.c.l.b16 %v1341
          %v2284 = vunpack.c.h.b16 %v1341
          %v2285 = vunpack.c.l.b16 %v1342
          %v2286 = vunpack.c.h.b16 %v1342
          %v2287 = vunpack.c.l.b16 %v1343
          %v2288 = vunpack.c.h.b16 %v1343
          %v2289 = vunpack.c.l.b16 %v1344
          %v2290 = vunpack.c.h.b16 %v1344
          %v2291 = vunpack.c.l.b16 %v1345
          %v2292 = vunpack.c.h.b16 %v1345
          %v2293 = vunpack.c.l.b16 %v1346
          %v2294 = vunpack.c.h.b16 %v1346
          %v2295 = vunpack.c.l.b16 %v1347
          %v2296 = vunpack.c.h.b16 %v1347
          %v2297 = vunpack.c.l.b16 %v1348
          %v2298 = vunpack.c.h.b16 %v1348
          %v2299 = vunpack.c.l.b16 %v1349
          %v2300 = vunpack.c.h.b16 %v1349
          %v2301 = vunpack.c.l.b16 %v1350
          %v2302 = vunpack.c.h.b16 %v1350
          %v2303 = vunpack.c.l.b16 %v1351
          %v2304 = vunpack.c.h.b16 %v1351
          %v2305 = vunpack.c.l.b16 %v1352
          %v2306 = vunpack.c.h.b16 %v1352
          %v2307 = vunpack.c.l.b16 %v1353
          %v2308 = vunpack.c.h.b16 %v1353
          %v2309 = vunpack.c.l.b16 %v1354
          %v2310 = vunpack.c.h.b16 %v1354
          %v2311 = vunpack.c.l.b16 %v1355
          %v2312 = vunpack.c.h.b16 %v1355
          %v2313 = vunpack.c.l.b16 %v1356
          %v2314 = vunpack.c.h.b16 %v1356
          %v2315 = vunpack.c.l.b16 %v1357
          %v2316 = vunpack.c.h.b16 %v1357
          %v2317 = vunpack.c.l.b16 %v1358
          %v2318 = vunpack.c.h.b16 %v1358
          %v2319 = vunpack.c.l.b16 %v1359
          %v2320 = vunpack.c.h.b16 %v1359
          %v2321 = vunpack.c.l.b16 %v1360
          %v2322 = vunpack.c.h.b16 %v1360
          %v2323 = vunpack.c.l.b16 %v1361
          %v2324 = vunpack.c.h.b16 %v1361
          %v2325 = vunpack.c.l.b16 %v1362
          %v2326 = vunpack.c.h.b16 %v1362
          %v2327 = vunpack.c.l.b16 %v1363
          %v2328 = vunpack.c.h.b16 %v1363
          %v2329 = vunpack.c.l.b16 %v1364
          %v2330 = vunpack.c.h.b16 %v1364
          %v2331 = vunpack.c.l.b16 %v1365
          %v2332 = vunpack.c.h.b16 %v1365
          %v2333 = vunpack.c.l.b16 %v1366
          %v2334 = vunpack.c.h.b16 %v1366
          %v2335 = vunpack.c.l.b16 %v1367
          %v2336 = vunpack.c.h.b16 %v1367
          %v2337 = vunpack.c.l.b16 %v1368
          %v2338 = vunpack.c.h.b16 %v1368
          %v2339 = vunpack.c.l.b16 %v1369
          %v2340 = vunpack.c.h.b16 %v1369
          %v2341 = vunpack.c.l.b16 %v1370
          %v2342 = vunpack.c.h.b16 %v1370
          %v2343 = vunpack.c.l.b16 %v1371
          %v2344 = vunpack.c.h.b16 %v1371
          %v2345 = vunpack.c.l.b16 %v1372
          %v2346 = vunpack.c.h.b16 %v1372
          %v2347 = vunpack.c.l.b16 %v1373
          %v2348 = vunpack.c.h.b16 %v1373
          %v2349 = vunpack.c.l.b16 %v1374
          %v2350 = vunpack.c.h.b16 %v1374
          %v2351 = vunpack.c.l.b16 %v1375
          %v2352 = vunpack.c.h.b16 %v1375
          %v2353 = vunpack.c.l.b16 %v1376
          %v2354 = vunpack.c.h.b16 %v1376
          %v2355 = vunpack.c.l.b16 %v1377
          %v2356 = vunpack.c.h.b16 %v1377
          %v2357 = vunpack.c.l.b16 %v1378
          %v2358 = vunpack.c.h.b16 %v1378
          %v2359 = vunpack.c.l.b16 %v1379
          %v2360 = vunpack.c.h.b16 %v1379
          %v2361 = vunpack.c.l.b16 %v1380
          %v2362 = vunpack.c.h.b16 %v1380
          %v2363 = vpack.c.b16 %v1727, %v1723
          %v2364 = vpack.c.b16 %v1728, %v1724
          %v2365 = vpack.c.b16 %v1729, %v1725
          %v2366 = vpack.c.b16 %v1730, %v1726
          %v2367 = vpack.c.b16 %v1735, %v1731
          %v2368 = vpack.c.b16 %v1736, %v1732
          %v2369 = vpack.c.b16 %v1737, %v1733
          %v2370 = vpack.c.b16 %v1738, %v1734
          %v2371 = vpack.c.b16 %v1743, %v1739
          %v2372 = vpack.c.b16 %v1744, %v1740
          %v2373 = vpack.c.b16 %v1745, %v1741
          %v2374 = vpack.c.b16 %v1746, %v1742
          %v2375 = vpack.c.b16 %v1751, %v1747
          %v2376 = vpack.c.b16 %v1752, %v1748
          %v2377 = vpack.c.b16 %v1753, %v1749
          %v2378 = vpack.c.b16 %v1754, %v1750
          %v2379 = vpack.c.b16 %v1759, %v1755
          %v2380 = vpack.c.b16 %v1760, %v1756
          %v2381 = vpack.c.b16 %v1761, %v1757
          %v2382 = vpack.c.b16 %v1762, %v1758
          %v2383 = vpack.c.b16 %v1767, %v1763
          %v2384 = vpack.c.b16 %v1768, %v1764
          %v2385 = vpack.c.b16 %v1769, %v1765
          %v2386 = vpack.c.b16 %v1770, %v1766
          %v2387 = vpack.c.b16 %v1775, %v1771
          %v2388 = vpack.c.b16 %v1776, %v1772
          %v2389 = vpack.c.b16 %v1777, %v1773
          %v2390 = vpack.c.b16 %v1778, %v1774
          %v2391 = vpack.c.b16 %v1783, %v1779
          %v2392 = vpack.c.b16 %v1784, %v1780
          %v2393 = vpack.c.b16 %v1785, %v1781
          %v2394 = vpack.c.b16 %v1786, %v1782
          %v2395 = vpack.c.b16 %v1791, %v1787
          %v2396 = vpack.c.b16 %v1792, %v1788
          %v2397 = vpack.c.b16 %v1793, %v1789
          %v2398 = vpack.c.b16 %v1794, %v1790
          %v2399 = vpack.c.b16 %v1799, %v1795
          %v2400 = vpack.c.b16 %v1800, %v1796
          %v2401 = vpack.c.b16 %v1801, %v1797
          %v2402 = vpack.c.b16 %v1802, %v1798
          %v2403 = vpack.c.b16 %v1807, %v1803
          %v2404 = vpack.c.b16 %v1808, %v1804
          %v2405 = vpack.c.b16 %v1809, %v1805
          %v2406 = vpack.c.b16 %v1810, %v1806
          %v2407 = vpack.c.b16 %v1815, %v1811
          %v2408 = vpack.c.b16 %v1816, %v1812
          %v2409 = vpack.c.b16 %v1817, %v1813
          %v2410 = vpack.c.b16 %v1818, %v1814
          %v2411 = vpack.c.b16 %v1823, %v1819
          %v2412 = vpack.c.b16 %v1824, %v1820
          %v2413 = vpack.c.b16 %v1825, %v1821
          %v2414 = vpack.c.b16 %v1826, %v1822
          %v2415 = vpack.c.b16 %v1831, %v1827
          %v2416 = vpack.c.b16 %v1832, %v1828
          %v2417 = vpack.c.b16 %v1833, %v1829
          %v2418 = vpack.c.b16 %v1834, %v1830
          %v2419 = vpack.c.b16 %v1839, %v1835
          %v2420 = vpack.c.b16 %v1840, %v1836
          %v2421 = vpack.c.b16 %v1841, %v1837
          %v2422 = vpack.c.b16 %v1842, %v1838
          %v2423 = vpack.c.b16 %v1847, %v1843
          %v2424 = vpack.c.b16 %v1848, %v1844
          %v2425 = vpack.c.b16 %v1849, %v1845
          %v2426 = vpack.c.b16 %v1850, %v1846
          %v2427 = vpack.c.b16 %v1855, %v1851
          %v2428 = vpack.c.b16 %v1856, %v1852
          %v2429 = vpack.c.b16 %v1857, %v1853
          %v2430 = vpack.c.b16 %v1858, %v1854
          %v2431 = vpack.c.b16 %v1863, %v1859
          %v2432 = vpack.c.b16 %v1864, %v1860
          %v2433 = vpack.c.b16 %v1865, %v1861
          %v2434 = vpack.c.b16 %v1866, %v1862
          %v2435 = vpack.c.b16 %v1871, %v1867
          %v2436 = vpack.c.b16 %v1872, %v1868
          %v2437 = vpack.c.b16 %v1873, %v1869
          %v2438 = vpack.c.b16 %v1874, %v1870
          %v2439 = vpack.c.b16 %v1879, %v1875
          %v2440 = vpack.c.b16 %v1880, %v1876
          %v2441 = vpack.c.b16 %v1881, %v1877
          %v2442 = vpack.c.b16 %v1882, %v1878
          %v2443 = vpack.c.b16 %v1887, %v1883
          %v2444 = vpack.c.b16 %v1888, %v1884
          %v2445 = vpack.c.b16 %v1889, %v1885
          %v2446 = vpack.c.b16 %v1890, %v1886
          %v2447 = vpack.c.b16 %v1895, %v1891
          %v2448 = vpack.c.b16 %v1896, %v1892
          %v2449 = vpack.c.b16 %v1897, %v1893
          %v2450 = vpack.c.b16 %v1898, %v1894
          %v2451 = vpack.c.b16 %v1903, %v1899
          %v2452 = vpack.c.b16 %v1904, %v1900
          %v2453 = vpack.c.b16 %v1905, %v1901
          %v2454 = vpack.c.b16 %v1906, %v1902
          %v2455 = vpack.c.b16 %v1911, %v1907
          %v2456 = vpack.c.b16 %v1912, %v1908
          %v2457 = vpack.c.b16 %v1913, %v1909
          %v2458 = vpack.c.b16 %v1914, %v1910
          %v2459 = vpack.c.b16 %v1919, %v1915
          %v2460 = vpack.c.b16 %v1920, %v1916
          %v2461 = vpack.c.b16 %v1921, %v1917
          %v2462 = vpack.c.b16 %v1922, %v1918
          %v2463 = vpack.c.b16 %v1927, %v1923
          %v2464 = vpack.c.b16 %v1928, %v1924
          %v2465 = vpack.c.b16 %v1929, %v1925
          %v2466 = vpack.c.b16 %v1930, %v1926
          %v2467 = vpack.c.b16 %v1935, %v1931
          %v2468 = vpack.c.b16 %v1936, %v1932
          %v2469 = vpack.c.b16 %v1937, %v1933
          %v2470 = vpack.c.b16 %v1938, %v1934
          %v2471 = vpack.c.b16 %v1943, %v1939
          %v2472 = vpack.c.b16 %v1944, %v1940
          %v2473 = vpack.c.b16 %v1945, %v1941
          %v2474 = vpack.c.b16 %v1946, %v1942
          %v2475 = vpack.c.b16 %v1951, %v1947
          %v2476 = vpack.c.b16 %v1952, %v1948
          %v2477 = vpack.c.b16 %v1953, %v1949
          %v2478 = vpack.c.b16 %v1954, %v1950
          %v2479 = vpack.c.b16 %v1959, %v1955
          %v2480 = vpack.c.b16 %v1960, %v1956
          %v2481 = vpack.c.b16 %v1961, %v1957
          %v2482 = vpack.c.b16 %v1962, %v1958
          %v2483 = vpack.c.b16 %v1967, %v1963
          %v2484 = vpack.c.b16 %v1968, %v1964
          %v2485 = vpack.c.b16 %v1969, %v1965
          %v2486 = vpack.c.b16 %v1970, %v1966
          %v2487 = vpack.c.b16 %v1975, %v1971
          %v2488 = vpack.c.b16 %v1976, %v1972
          %v2489 = vpack.c.b16 %v1977, %v1973
          %v2490 = vpack.c.b16 %v1978, %v1974
          %v2491 = vpack.c.b16 %v1983, %v1979
          %v2492 = vpack.c.b16 %v1984, %v1980
          %v2493 = vpack.c.b16 %v1985, %v1981
          %v2494 = vpack.c.b16 %v1986, %v1982
          %v2495 = vpack.c.b16 %v1991, %v1987
          %v2496 = vpack.c.b16 %v1992, %v1988
          %v2497 = vpack.c.b16 %v1993, %v1989
          %v2498 = vpack.c.b16 %v1994, %v1990
          %v2499 = vpack.c.b16 %v1999, %v1995
          %v2500 = vpack.c.b16 %v2000, %v1996
          %v2501 = vpack.c.b16 %v2001, %v1997
          %v2502 = vpack.c.b16 %v2002, %v1998
          %v2503 = vpack.c.b16 %v2007, %v2003
          %v2504 = vpack.c.b16 %v2008, %v2004
          %v2505 = vpack.c.b16 %v2009, %v2005
          %v2506 = vpack.c.b16 %v2010, %v2006
          %v2507 = vpack.c.b16 %v2015, %v2011
          %v2508 = vpack.c.b16 %v2016, %v2012
          %v2509 = vpack.c.b16 %v2017, %v2013
          %v2510 = vpack.c.b16 %v2018, %v2014
          %v2511 = vpack.c.b16 %v2023, %v2019
          %v2512 = vpack.c.b16 %v2024, %v2020
          %v2513 = vpack.c.b16 %v2025, %v2021
          %v2514 = vpack.c.b16 %v2026, %v2022
          %v2515 = vpack.c.b16 %v2031, %v2027
          %v2516 = vpack.c.b16 %v2032, %v2028
          %v2517 = vpack.c.b16 %v2033, %v2029
          %v2518 = vpack.c.b16 %v2034, %v2030
          %v2519 = vpack.c.b16 %v2039, %v2035
          %v2520 = vpack.c.b16 %v2040, %v2036
          %v2521 = vpack.c.b16 %v2041, %v2037
          %v2522 = vpack.c.b16 %v2042, %v2038
          %v2523 = vpack.c.b16 %v2047, %v2043
          %v2524 = vpack.c.b16 %v2048, %v2044
          %v2525 = vpack.c.b16 %v2049, %v2045
          %v2526 = vpack.c.b16 %v2050, %v2046
          %v2527 = vpack.c.b16 %v2055, %v2051
          %v2528 = vpack.c.b16 %v2056, %v2052
          %v2529 = vpack.c.b16 %v2057, %v2053
          %v2530 = vpack.c.b16 %v2058, %v2054
          %v2531 = vpack.c.b16 %v2063, %v2059
          %v2532 = vpack.c.b16 %v2064, %v2060
          %v2533 = vpack.c.b16 %v2065, %v2061
          %v2534 = vpack.c.b16 %v2066, %v2062
          %v2535 = vpack.c.b16 %v2071, %v2067
          %v2536 = vpack.c.b16 %v2072, %v2068
          %v2537 = vpack.c.b16 %v2073, %v2069
          %v2538 = vpack.c.b16 %v2074, %v2070
          %v2539 = vpack.c.b16 %v2079, %v2075
          %v2540 = vpack.c.b16 %v2080, %v2076
          %v2541 = vpack.c.b16 %v2081, %v2077
          %v2542 = vpack.c.b16 %v2082, %v2078
          %v2543 = vpack.c.b16 %v2087, %v2083
          %v2544 = vpack.c.b16 %v2088, %v2084
          %v2545 = vpack.c.b16 %v2089, %v2085
          %v2546 = vpack.c.b16 %v2090, %v2086
          %v2547 = vpack.c.b16 %v2095, %v2091
          %v2548 = vpack.c.b16 %v2096, %v2092
          %v2549 = vpack.c.b16 %v2097, %v2093
          %v2550 = vpack.c.b16 %v2098, %v2094
          %v2551 = vpack.c.b16 %v2103, %v2099
          %v2552 = vpack.c.b16 %v2104, %v2100
          %v2553 = vpack.c.b16 %v2105, %v2101
          %v2554 = vpack.c.b16 %v2106, %v2102
          %v2555 = vpack.c.b16 %v2111, %v2107
          %v2556 = vpack.c.b16 %v2112, %v2108
          %v2557 = vpack.c.b16 %v2113, %v2109
          %v2558 = vpack.c.b16 %v2114, %v2110
          %v2559 = vpack.c.b16 %v2119, %v2115
          %v2560 = vpack.c.b16 %v2120, %v2116
          %v2561 = vpack.c.b16 %v2121, %v2117
          %v2562 = vpack.c.b16 %v2122, %v2118
          %v2563 = vpack.c.b16 %v2127, %v2123
          %v2564 = vpack.c.b16 %v2128, %v2124
          %v2565 = vpack.c.b16 %v2129, %v2125
          %v2566 = vpack.c.b16 %v2130, %v2126
          %v2567 = vpack.c.b16 %v2135, %v2131
          %v2568 = vpack.c.b16 %v2136, %v2132
          %v2569 = vpack.c.b16 %v2137, %v2133
          %v2570 = vpack.c.b16 %v2138, %v2134
          %v2571 = vpack.c.b16 %v2143, %v2139
          %v2572 = vpack.c.b16 %v2144, %v2140
          %v2573 = vpack.c.b16 %v2145, %v2141
          %v2574 = vpack.c.b16 %v2146, %v2142
          %v2575 = vpack.c.b16 %v2151, %v2147
          %v2576 = vpack.c.b16 %v2152, %v2148
          %v2577 = vpack.c.b16 %v2153, %v2149
          %v2578 = vpack.c.b16 %v2154, %v2150
          %v2579 = vpack.c.b16 %v2159, %v2155
          %v2580 = vpack.c.b16 %v2160, %v2156
          %v2581 = vpack.c.b16 %v2161, %v2157
          %v2582 = vpack.c.b16 %v2162, %v2158
          %v2583 = vpack.c.b16 %v2167, %v2163
          %v2584 = vpack.c.b16 %v2168, %v2164
          %v2585 = vpack.c.b16 %v2169, %v2165
          %v2586 = vpack.c.b16 %v2170, %v2166
          %v2587 = vpack.c.b16 %v2175, %v2171
          %v2588 = vpack.c.b16 %v2176, %v2172
          %v2589 = vpack.c.b16 %v2177, %v2173
          %v2590 = vpack.c.b16 %v2178, %v2174
          %v2591 = vpack.c.b16 %v2183, %v2179
          %v2592 = vpack.c.b16 %v2184, %v2180
          %v2593 = vpack.c.b16 %v2185, %v2181
          %v2594 = vpack.c.b16 %v2186, %v2182
          %v2595 = vpack.c.b16 %v2191, %v2187
          %v2596 = vpack.c.b16 %v2192, %v2188
          %v2597 = vpack.c.b16 %v2193, %v2189
          %v2598 = vpack.c.b16 %v2194, %v2190
          %v2599 = vpack.c.b16 %v2199, %v2195
          %v2600 = vpack.c.b16 %v2200, %v2196
          %v2601 = vpack.c.b16 %v2201, %v2197
          %v2602 = vpack.c.b16 %v2202, %v2198
          %v2603 = vpack.c.b16 %v2207, %v2203
          %v2604 = vpack.c.b16 %v2208, %v2204
          %v2605 = vpack.c.b16 %v2209, %v2205
          %v2606 = vpack.c.b16 %v2210, %v2206
          %v2607 = vpack.c.b16 %v2215, %v2211
          %v2608 = vpack.c.b16 %v2216, %v2212
          %v2609 = vpack.c.b16 %v2217, %v2213
          %v2610 = vpack.c.b16 %v2218, %v2214
          %v2611 = vpack.c.b16 %v2223, %v2219
          %v2612 = vpack.c.b16 %v2224, %v2220
          %v2613 = vpack.c.b16 %v2225, %v2221
          %v2614 = vpack.c.b16 %v2226, %v2222
          %v2615 = vpack.c.b16 %v2231, %v2227
          %v2616 = vpack.c.b16 %v2232, %v2228
          %v2617 = vpack.c.b16 %v2233, %v2229
          %v2618 = vpack.c.b16 %v2234, %v2230
          %v2619 = vpack.c.b16 %v2239, %v2235
          %v2620 = vpack.c.b16 %v2240, %v2236
          %v2621 = vpack.c.b16 %v2241, %v2237
          %v2622 = vpack.c.b16 %v2242, %v2238
          %v2623 = vpack.c.b16 %v2247, %v2243
          %v2624 = vpack.c.b16 %v2248, %v2244
          %v2625 = vpack.c.b16 %v2249, %v2245
          %v2626 = vpack.c.b16 %v2250, %v2246
          %v2627 = vpack.c.b16 %v2255, %v2251
          %v2628 = vpack.c.b16 %v2256, %v2252
          %v2629 = vpack.c.b16 %v2257, %v2253
          %v2630 = vpack.c.b16 %v2258, %v2254
          %v2631 = vpack.c.b16 %v2263, %v2259
          %v2632 = vpack.c.b16 %v2264, %v2260
          %v2633 = vpack.c.b16 %v2265, %v2261
          %v2634 = vpack.c.b16 %v2266, %v2262
          %v2635 = vpack.c.b16 %v2271, %v2267
          %v2636 = vpack.c.b16 %v2272, %v2268
          %v2637 = vpack.c.b16 %v2273, %v2269
          %v2638 = vpack.c.b16 %v2274, %v2270
          %v2639 = vpack.c.b16 %v2279, %v2275
          %v2640 = vpack.c.b16 %v2280, %v2276
          %v2641 = vpack.c.b16 %v2281, %v2277
          %v2642 = vpack.c.b16 %v2282, %v2278
          %v2643 = vpack.c.b16 %v2287, %v2283
          %v2644 = vpack.c.b16 %v2288, %v2284
          %v2645 = vpack.c.b16 %v2289, %v2285
          %v2646 = vpack.c.b16 %v2290, %v2286
          %v2647 = vpack.c.b16 %v2295, %v2291
          %v2648 = vpack.c.b16 %v2296, %v2292
          %v2649 = vpack.c.b16 %v2297, %v2293
          %v2650 = vpack.c.b16 %v2298, %v2294
          %v2651 = vpack.c.b16 %v2303, %v2299
          %v2652 = vpack.c.b16 %v2304, %v2300
          %v2653 = vpack.c.b16 %v2305, %v2301
          %v2654 = vpack.c.b16 %v2306, %v2302
          %v2655 = vpack.c.b16 %v2311, %v2307
          %v2656 = vpack.c.b16 %v2312, %v2308
          %v2657 = vpack.c.b16 %v2313, %v2309
          %v2658 = vpack.c.b16 %v2314, %v2310
          %v2659 = vpack.c.b16 %v2319, %v2315
          %v2660 = vpack.c.b16 %v2320, %v2316
          %v2661 = vpack.c.b16 %v2321, %v2317
          %v2662 = vpack.c.b16 %v2322, %v2318
          %v2663 = vpack.c.b16 %v2327, %v2323
          %v2664 = vpack.c.b16 %v2328, %v2324
          %v2665 = vpack.c.b16 %v2329, %v2325
          %v2666 = vpack.c.b16 %v2330, %v2326
          %v2667 = vpack.c.b16 %v2335, %v2331
          %v2668 = vpack.c.b16 %v2336, %v2332
          %v2669 = vpack.c.b16 %v2337, %v2333
          %v2670 = vpack.c.b16 %v2338, %v2334
          %v2671 = vpack.c.b16 %v2343, %v2339
          %v2672 = vpack.c.b16 %v2344, %v2340
          %v2673 = vpack.c.b16 %v2345, %v2341
          %v2674 = vpack.c.b16 %v2346, %v2342
          %v2675 = vpack.c.b16 %v2351, %v2347
          %v2676 = vpack.c.b16 %v2352, %v2348
          %v2677 = vpack.c.b16 %v2353, %v2349
          %v2678 = vpack.c.b16 %v2354, %v2350
          %v2679 = vpack.c.b16 %v2359, %v2355
          %v2680 = vpack.c.b16 %v2360, %v2356
          %v2681 = vpack.c.b16 %v2361, %v2357
          %v2682 = vpack.c.b16 %v2362, %v2358
          %3003 = vmatprep.subr.bf16.mxu0 %v2364
          %3004 = vmatpush1.bf16.msra.mxu0 %v2363
          %3005 = vmatprep.subr.bf16.mxu0 %v2368
          %3006 = vmatpush1.bf16.msra.mxu0 %v2367
          %3007 = vmatprep.subr.bf16.mxu0 %v2372
          %3008 = vmatpush1.bf16.msra.mxu0 %v2371
          %3009 = vmatprep.subr.bf16.mxu0 %v2376
          %3010 = vmatpush1.bf16.msra.mxu0 %v2375
          %3011 = vmatprep.subr.bf16.mxu0 %v2380
          %3012 = vmatpush1.bf16.msra.mxu0 %v2379
          %3013 = vmatprep.subr.bf16.mxu0 %v2384
          %3014 = vmatpush1.bf16.msra.mxu0 %v2383
          %3015 = vmatprep.subr.bf16.mxu0 %v2388
          %3016 = vmatpush1.bf16.msra.mxu0 %v2387
          %3017 = vmatprep.subr.bf16.mxu0 %v2392
          %3018 = vmatpush1.bf16.msra.mxu0 %v2391
          %3019 = vmatprep.subr.bf16.mxu0 %v2396
          %3020 = vmatpush1.bf16.msra.mxu0 %v2395
          %3021 = vmatprep.subr.bf16.mxu0 %v2400
          %3022 = vmatpush1.bf16.msra.mxu0 %v2399
          %3023 = vmatprep.subr.bf16.mxu0 %v2404
          %3024 = vmatpush1.bf16.msra.mxu0 %v2403
          %3025 = vmatprep.subr.bf16.mxu0 %v2408
          %3026 = vmatpush1.bf16.msra.mxu0 %v2407
          %3027 = vmatprep.subr.bf16.mxu0 %v2412
          %3028 = vmatpush1.bf16.msra.mxu0 %v2411
          %3029 = vmatprep.subr.bf16.mxu0 %v2416
          %3030 = vmatpush1.bf16.msra.mxu0 %v2415
          %3031 = vmatprep.subr.bf16.mxu0 %v2420
          %3032 = vmatpush1.bf16.msra.mxu0 %v2419
          %3033 = vmatprep.subr.bf16.mxu0 %v2424
          %3034 = vmatpush1.bf16.msra.mxu0 %v2423
          %3035 = vmatprep.mubr.bf16.mxu0 %v1052
          %3036 = vmatmul.mubr.bf16.gmra.mrb[0].mxu0 %v1051
          %v3037 = vpop.f32.mrb[0].mxu0
          %v3038 = vadd.f32 %v1386, %v3037
          %v3039 = vpop.f32.mrb[0].mxu0
          %v3040 = vadd.f32 %v1390, %v3039
          %v3041 = vpop.f32.mrb[0].mxu0
          %v3042 = vpop.f32.mrb[0].mxu0
          %3043 = vdwg.mxu0
          %3044 = vmatprep.subr.bf16.mxu0 %v2428
          %3045 = vmatpush1.bf16.msra.mxu0 %v2427
          %3046 = vmatprep.subr.bf16.mxu0 %v2432
          %3047 = vmatpush1.bf16.msra.mxu0 %v2431
          %3048 = vmatprep.subr.bf16.mxu0 %v2436
          %3049 = vmatpush1.bf16.msra.mxu0 %v2435
          %3050 = vmatprep.subr.bf16.mxu0 %v2440
          %3051 = vmatpush1.bf16.msra.mxu0 %v2439
          %3052 = vmatprep.subr.bf16.mxu0 %v2444
          %3053 = vmatpush1.bf16.msra.mxu0 %v2443
          %3054 = vmatprep.subr.bf16.mxu0 %v2448
          %3055 = vmatpush1.bf16.msra.mxu0 %v2447
          %3056 = vmatprep.subr.bf16.mxu0 %v2452
          %3057 = vmatpush1.bf16.msra.mxu0 %v2451
          %3058 = vmatprep.subr.bf16.mxu0 %v2456
          %3059 = vmatpush1.bf16.msra.mxu0 %v2455
          %3060 = vmatprep.subr.bf16.mxu0 %v2460
          %3061 = vmatpush1.bf16.msra.mxu0 %v2459
          %3062 = vmatprep.subr.bf16.mxu0 %v2464
          %3063 = vmatpush1.bf16.msra.mxu0 %v2463
          %3064 = vmatprep.subr.bf16.mxu0 %v2468
          %3065 = vmatpush1.bf16.msra.mxu0 %v2467
          %3066 = vmatprep.subr.bf16.mxu0 %v2472
          %3067 = vmatpush1.bf16.msra.mxu0 %v2471
          %3068 = vmatprep.subr.bf16.mxu0 %v2476
          %3069 = vmatpush1.bf16.msra.mxu0 %v2475
          %3070 = vmatprep.subr.bf16.mxu0 %v2480
          %3071 = vmatpush1.bf16.msra.mxu0 %v2479
          %3072 = vmatprep.subr.bf16.mxu0 %v2484
          %3073 = vmatpush1.bf16.msra.mxu0 %v2483
          %3074 = vmatprep.subr.bf16.mxu0 %v2488
          %3075 = vmatpush1.bf16.msra.mxu0 %v2487
          %3076 = vmatprep.mubr.bf16.mxu0 %v1054
          %3077 = vmatmul.mubr.bf16.gmra.mrb[0].mxu0 %v1053
          %v3078 = vpop.f32.mrb[0].mxu0
          %v3079 = vadd.f32 %v3038, %v3078
          %v3080 = vpop.f32.mrb[0].mxu0
          %v3081 = vadd.f32 %v3040, %v3080
          %v3082 = vpop.f32.mrb[0].mxu0
          %v3083 = vpop.f32.mrb[0].mxu0
          %3084 = vdwg.mxu0
          %3085 = vmatprep.subr.bf16.mxu0 %v2492
          %3086 = vmatpush1.bf16.msra.mxu0 %v2491
          %3087 = vmatprep.subr.bf16.mxu0 %v2496
          %3088 = vmatpush1.bf16.msra.mxu0 %v2495
          %3089 = vmatprep.subr.bf16.mxu0 %v2500
          %3090 = vmatpush1.bf16.msra.mxu0 %v2499
          %3091 = vmatprep.subr.bf16.mxu0 %v2504
          %3092 = vmatpush1.bf16.msra.mxu0 %v2503
          %3093 = vmatprep.subr.bf16.mxu0 %v2508
          %3094 = vmatpush1.bf16.msra.mxu0 %v2507
          %3095 = vmatprep.subr.bf16.mxu0 %v2512
          %3096 = vmatpush1.bf16.msra.mxu0 %v2511
          %3097 = vmatprep.subr.bf16.mxu0 %v2516
          %3098 = vmatpush1.bf16.msra.mxu0 %v2515
          %3099 = vmatprep.subr.bf16.mxu0 %v2520
          %3100 = vmatpush1.bf16.msra.mxu0 %v2519
          %3101 = vmatprep.subr.bf16.mxu0 %v2524
          %3102 = vmatpush1.bf16.msra.mxu0 %v2523
          %3103 = vmatprep.subr.bf16.mxu0 %v2528
          %3104 = vmatpush1.bf16.msra.mxu0 %v2527
          %3105 = vmatprep.subr.bf16.mxu0 %v2532
          %3106 = vmatpush1.bf16.msra.mxu0 %v2531
          %3107 = vmatprep.subr.bf16.mxu0 %v2536
          %3108 = vmatpush1.bf16.msra.mxu0 %v2535
          %3109 = vmatprep.subr.bf16.mxu0 %v2540
          %3110 = vmatpush1.bf16.msra.mxu0 %v2539
          %3111 = vmatprep.subr.bf16.mxu0 %v2544
          %3112 = vmatpush1.bf16.msra.mxu0 %v2543
          %3113 = vmatprep.subr.bf16.mxu0 %v2548
          %3114 = vmatpush1.bf16.msra.mxu0 %v2547
          %3115 = vmatprep.subr.bf16.mxu0 %v2552
          %3116 = vmatpush1.bf16.msra.mxu0 %v2551
          %3117 = vmatprep.mubr.bf16.mxu0 %v1056
          %3118 = vmatmul.mubr.bf16.gmra.mrb[0].mxu0 %v1055
          %v3119 = vpop.f32.mrb[0].mxu0
          %v3120 = vadd.f32 %v3079, %v3119
          %v3121 = vpop.f32.mrb[0].mxu0
          %v3122 = vadd.f32 %v3081, %v3121
          %v3123 = vpop.f32.mrb[0].mxu0
          %v3124 = vpop.f32.mrb[0].mxu0
          %3125 = vdwg.mxu0
          %3126 = vmatprep.subr.bf16.mxu0 %v2556
          %3127 = vmatpush1.bf16.msra.mxu0 %v2555
          %3128 = vmatprep.subr.bf16.mxu0 %v2560
          %3129 = vmatpush1.bf16.msra.mxu0 %v2559
          %3130 = vmatprep.subr.bf16.mxu0 %v2564
          %3131 = vmatpush1.bf16.msra.mxu0 %v2563
          %3132 = vmatprep.subr.bf16.mxu0 %v2568
          %3133 = vmatpush1.bf16.msra.mxu0 %v2567
          %3134 = vmatprep.subr.bf16.mxu0 %v2572
          %3135 = vmatpush1.bf16.msra.mxu0 %v2571
          %3136 = vmatprep.subr.bf16.mxu0 %v2576
          %3137 = vmatpush1.bf16.msra.mxu0 %v2575
          %3138 = vmatprep.subr.bf16.mxu0 %v2580
          %3139 = vmatpush1.bf16.msra.mxu0 %v2579
          %3140 = vmatprep.subr.bf16.mxu0 %v2584
          %3141 = vmatpush1.bf16.msra.mxu0 %v2583
          %3142 = vmatprep.subr.bf16.mxu0 %v2588
          %3143 = vmatpush1.bf16.msra.mxu0 %v2587
          %3144 = vmatprep.subr.bf16.mxu0 %v2592
          %3145 = vmatpush1.bf16.msra.mxu0 %v2591
          %3146 = vmatprep.subr.bf16.mxu0 %v2596
          %3147 = vmatpush1.bf16.msra.mxu0 %v2595
          %3148 = vmatprep.subr.bf16.mxu0 %v2600
          %3149 = vmatpush1.bf16.msra.mxu0 %v2599
          %3150 = vmatprep.subr.bf16.mxu0 %v2604
          %3151 = vmatpush1.bf16.msra.mxu0 %v2603
          %3152 = vmatprep.subr.bf16.mxu0 %v2608
          %3153 = vmatpush1.bf16.msra.mxu0 %v2607
          %3154 = vmatprep.subr.bf16.mxu0 %v2612
          %3155 = vmatpush1.bf16.msra.mxu0 %v2611
          %3156 = vmatprep.subr.bf16.mxu0 %v2616
          %3157 = vmatpush1.bf16.msra.mxu0 %v2615
          %3158 = vmatprep.mubr.bf16.mxu0 %v1058
          %3159 = vmatmul.mubr.bf16.gmra.mrb[0].mxu0 %v1057
          %v3160 = vpop.f32.mrb[0].mxu0
          %v3161 = vadd.f32 %v3120, %v3160
          %v3162 = vpop.f32.mrb[0].mxu0
          %v3163 = vadd.f32 %v3122, %v3162
          %v3164 = vpop.f32.mrb[0].mxu0
          %v3165 = vpop.f32.mrb[0].mxu0
          %3166 = vdwg.mxu0
          %3167 = vmatprep.subr.bf16.mxu0 %v2620
          %3168 = vmatpush1.bf16.msra.mxu0 %v2619
          %3169 = vmatprep.subr.bf16.mxu0 %v2624
          %3170 = vmatpush1.bf16.msra.mxu0 %v2623
          %3171 = vmatprep.subr.bf16.mxu0 %v2628
          %3172 = vmatpush1.bf16.msra.mxu0 %v2627
          %3173 = vmatprep.subr.bf16.mxu0 %v2632
          %3174 = vmatpush1.bf16.msra.mxu0 %v2631
          %3175 = vmatprep.subr.bf16.mxu0 %v2636
          %3176 = vmatpush1.bf16.msra.mxu0 %v2635
          %3177 = vmatprep.subr.bf16.mxu0 %v2640
          %3178 = vmatpush1.bf16.msra.mxu0 %v2639
          %3179 = vmatprep.subr.bf16.mxu0 %v2644
          %3180 = vmatpush1.bf16.msra.mxu0 %v2643
          %3181 = vmatprep.subr.bf16.mxu0 %v2648
          %3182 = vmatpush1.bf16.msra.mxu0 %v2647
          %3183 = vmatprep.subr.bf16.mxu0 %v2652
          %3184 = vmatpush1.bf16.msra.mxu0 %v2651
          %3185 = vmatprep.subr.bf16.mxu0 %v2656
          %3186 = vmatpush1.bf16.msra.mxu0 %v2655
          %3187 = vmatprep.subr.bf16.mxu0 %v2660
          %3188 = vmatpush1.bf16.msra.mxu0 %v2659
          %3189 = vmatprep.subr.bf16.mxu0 %v2664
          %3190 = vmatpush1.bf16.msra.mxu0 %v2663
          %3191 = vmatprep.subr.bf16.mxu0 %v2668
          %3192 = vmatpush1.bf16.msra.mxu0 %v2667
          %3193 = vmatprep.subr.bf16.mxu0 %v2672
          %3194 = vmatpush1.bf16.msra.mxu0 %v2671
          %3195 = vmatprep.subr.bf16.mxu0 %v2676
          %3196 = vmatpush1.bf16.msra.mxu0 %v2675
          %3197 = vmatprep.subr.bf16.mxu0 %v2680
          %3198 = vmatpush1.bf16.msra.mxu0 %v2679
          %3199 = vmatprep.mubr.bf16.mxu0 %v1060
          %3200 = vmatmul.mubr.bf16.gmra.mrb[0].mxu0 %v1059
          %v3201 = vpop.f32.mrb[0].mxu0
          %v3202 = vadd.f32 %v3161, %v3201
          %v3203 = vpop.f32.mrb[0].mxu0
          %v3204 = vadd.f32 %v3163, %v3203
          %v3205 = vpop.f32.mrb[0].mxu0
          %v3206 = vpop.f32.mrb[0].mxu0
          %3207 = vdwg.mxu0
          %3208 = vmatprep.subr.bf16.mxu0 %v2366
          %3209 = vmatpush1.bf16.msra.mxu0 %v2365
          %3210 = vmatprep.subr.bf16.mxu0 %v2370
          %3211 = vmatpush1.bf16.msra.mxu0 %v2369
          %3212 = vmatprep.subr.bf16.mxu0 %v2374
          %3213 = vmatpush1.bf16.msra.mxu0 %v2373
          %3214 = vmatprep.subr.bf16.mxu0 %v2378
          %3215 = vmatpush1.bf16.msra.mxu0 %v2377
          %3216 = vmatprep.subr.bf16.mxu0 %v2382
          %3217 = vmatpush1.bf16.msra.mxu0 %v2381
          %3218 = vmatprep.subr.bf16.mxu0 %v2386
          %3219 = vmatpush1.bf16.msra.mxu0 %v2385
          %3220 = vmatprep.subr.bf16.mxu0 %v2390
          %3221 = vmatpush1.bf16.msra.mxu0 %v2389
          %3222 = vmatprep.subr.bf16.mxu0 %v2394
          %3223 = vmatpush1.bf16.msra.mxu0 %v2393
          %3224 = vmatprep.subr.bf16.mxu0 %v2398
          %3225 = vmatpush1.bf16.msra.mxu0 %v2397
          %3226 = vmatprep.subr.bf16.mxu0 %v2402
          %3227 = vmatpush1.bf16.msra.mxu0 %v2401
          %3228 = vmatprep.subr.bf16.mxu0 %v2406
          %3229 = vmatpush1.bf16.msra.mxu0 %v2405
          %3230 = vmatprep.subr.bf16.mxu0 %v2410
          %3231 = vmatpush1.bf16.msra.mxu0 %v2409
          %3232 = vmatprep.subr.bf16.mxu0 %v2414
          %3233 = vmatpush1.bf16.msra.mxu0 %v2413
          %3234 = vmatprep.subr.bf16.mxu0 %v2418
          %3235 = vmatpush1.bf16.msra.mxu0 %v2417
          %3236 = vmatprep.subr.bf16.mxu0 %v2422
          %3237 = vmatpush1.bf16.msra.mxu0 %v2421
          %3238 = vmatprep.subr.bf16.mxu0 %v2426
          %3239 = vmatpush1.bf16.msra.mxu0 %v2425
          %3240 = vmatprep.mubr.bf16.mxu0 %v1052
          %3241 = vmatmul.mubr.bf16.gmra.mrb[0].mxu0 %v1051
          %v3242 = vpop.f32.mrb[0].mxu0
          %v3243 = vadd.f32 %v1394, %v3242
          %v3244 = vpop.f32.mrb[0].mxu0
          %v3245 = vadd.f32 %v1398, %v3244
          %v3246 = vpop.f32.mrb[0].mxu0
          %v3247 = vpop.f32.mrb[0].mxu0
          %3248 = vdwg.mxu0
          %3249 = vmatprep.subr.bf16.mxu0 %v2430
          %3250 = vmatpush1.bf16.msra.mxu0 %v2429
          %3251 = vmatprep.subr.bf16.mxu0 %v2434
          %3252 = vmatpush1.bf16.msra.mxu0 %v2433
          %3253 = vmatprep.subr.bf16.mxu0 %v2438
          %3254 = vmatpush1.bf16.msra.mxu0 %v2437
          %3255 = vmatprep.subr.bf16.mxu0 %v2442
          %3256 = vmatpush1.bf16.msra.mxu0 %v2441
          %3257 = vmatprep.subr.bf16.mxu0 %v2446
          %3258 = vmatpush1.bf16.msra.mxu0 %v2445
          %3259 = vmatprep.subr.bf16.mxu0 %v2450
          %3260 = vmatpush1.bf16.msra.mxu0 %v2449
          %3261 = vmatprep.subr.bf16.mxu0 %v2454
          %3262 = vmatpush1.bf16.msra.mxu0 %v2453
          %3263 = vmatprep.subr.bf16.mxu0 %v2458
          %3264 = vmatpush1.bf16.msra.mxu0 %v2457
          %3265 = vmatprep.subr.bf16.mxu0 %v2462
          %3266 = vmatpush1.bf16.msra.mxu0 %v2461
          %3267 = vmatprep.subr.bf16.mxu0 %v2466
          %3268 = vmatpush1.bf16.msra.mxu0 %v2465
          %3269 = vmatprep.subr.bf16.mxu0 %v2470
          %3270 = vmatpush1.bf16.msra.mxu0 %v2469
          %3271 = vmatprep.subr.bf16.mxu0 %v2474
          %3272 = vmatpush1.bf16.msra.mxu0 %v2473
          %3273 = vmatprep.subr.bf16.mxu0 %v2478
          %3274 = vmatpush1.bf16.msra.mxu0 %v2477
          %3275 = vmatprep.subr.bf16.mxu0 %v2482
          %3276 = vmatpush1.bf16.msra.mxu0 %v2481
          %3277 = vmatprep.subr.bf16.mxu0 %v2486
          %3278 = vmatpush1.bf16.msra.mxu0 %v2485
          %3279 = vmatprep.subr.bf16.mxu0 %v2490
          %3280 = vmatpush1.bf16.msra.mxu0 %v2489
          %3281 = vmatprep.mubr.bf16.mxu0 %v1054
          %3282 = vmatmul.mubr.bf16.gmra.mrb[0].mxu0 %v1053
          %v3283 = vpop.f32.mrb[0].mxu0
          %v3284 = vadd.f32 %v3243, %v3283
          %v3285 = vpop.f32.mrb[0].mxu0
          %v3286 = vadd.f32 %v3245, %v3285
          %v3287 = vpop.f32.mrb[0].mxu0
          %v3288 = vpop.f32.mrb[0].mxu0
          %3289 = vdwg.mxu0
          %3290 = vmatprep.subr.bf16.mxu0 %v2494
          %3291 = vmatpush1.bf16.msra.mxu0 %v2493
          %3292 = vmatprep.subr.bf16.mxu0 %v2498
          %3293 = vmatpush1.bf16.msra.mxu0 %v2497
          %3294 = vmatprep.subr.bf16.mxu0 %v2502
          %3295 = vmatpush1.bf16.msra.mxu0 %v2501
          %3296 = vmatprep.subr.bf16.mxu0 %v2506
          %3297 = vmatpush1.bf16.msra.mxu0 %v2505
          %3298 = vmatprep.subr.bf16.mxu0 %v2510
          %3299 = vmatpush1.bf16.msra.mxu0 %v2509
          %3300 = vmatprep.subr.bf16.mxu0 %v2514
          %3301 = vmatpush1.bf16.msra.mxu0 %v2513
          %3302 = vmatprep.subr.bf16.mxu0 %v2518
          %3303 = vmatpush1.bf16.msra.mxu0 %v2517
          %3304 = vmatprep.subr.bf16.mxu0 %v2522
          %3305 = vmatpush1.bf16.msra.mxu0 %v2521
          %3306 = vmatprep.subr.bf16.mxu0 %v2526
          %3307 = vmatpush1.bf16.msra.mxu0 %v2525
          %3308 = vmatprep.subr.bf16.mxu0 %v2530
          %3309 = vmatpush1.bf16.msra.mxu0 %v2529
          %3310 = vmatprep.subr.bf16.mxu0 %v2534
          %3311 = vmatpush1.bf16.msra.mxu0 %v2533
          %3312 = vmatprep.subr.bf16.mxu0 %v2538
          %3313 = vmatpush1.bf16.msra.mxu0 %v2537
          %3314 = vmatprep.subr.bf16.mxu0 %v2542
          %3315 = vmatpush1.bf16.msra.mxu0 %v2541
          %3316 = vmatprep.subr.bf16.mxu0 %v2546
          %3317 = vmatpush1.bf16.msra.mxu0 %v2545
          %3318 = vmatprep.subr.bf16.mxu0 %v2550
          %3319 = vmatpush1.bf16.msra.mxu0 %v2549
          %3320 = vmatprep.subr.bf16.mxu0 %v2554
          %3321 = vmatpush1.bf16.msra.mxu0 %v2553
          %3322 = vmatprep.mubr.bf16.mxu0 %v1056
          %3323 = vmatmul.mubr.bf16.gmra.mrb[0].mxu0 %v1055
          %v3324 = vpop.f32.mrb[0].mxu0
          %v3325 = vadd.f32 %v3284, %v3324
          %v3326 = vpop.f32.mrb[0].mxu0
          %v3327 = vadd.f32 %v3286, %v3326
          %v3328 = vpop.f32.mrb[0].mxu0
          %v3329 = vpop.f32.mrb[0].mxu0
          %3330 = vdwg.mxu0
          %3331 = vmatprep.subr.bf16.mxu0 %v2558
          %3332 = vmatpush1.bf16.msra.mxu0 %v2557
          %3333 = vmatprep.subr.bf16.mxu0 %v2562
          %3334 = vmatpush1.bf16.msra.mxu0 %v2561
          %3335 = vmatprep.subr.bf16.mxu0 %v2566
          %3336 = vmatpush1.bf16.msra.mxu0 %v2565
          %3337 = vmatprep.subr.bf16.mxu0 %v2570
          %3338 = vmatpush1.bf16.msra.mxu0 %v2569
          %3339 = vmatprep.subr.bf16.mxu0 %v2574
          %3340 = vmatpush1.bf16.msra.mxu0 %v2573
          %3341 = vmatprep.subr.bf16.mxu0 %v2578
          %3342 = vmatpush1.bf16.msra.mxu0 %v2577
          %3343 = vmatprep.subr.bf16.mxu0 %v2582
          %3344 = vmatpush1.bf16.msra.mxu0 %v2581
          %3345 = vmatprep.subr.bf16.mxu0 %v2586
          %3346 = vmatpush1.bf16.msra.mxu0 %v2585
          %3347 = vmatprep.subr.bf16.mxu0 %v2590
          %3348 = vmatpush1.bf16.msra.mxu0 %v2589
          %3349 = vmatprep.subr.bf16.mxu0 %v2594
          %3350 = vmatpush1.bf16.msra.mxu0 %v2593
          %3351 = vmatprep.subr.bf16.mxu0 %v2598
          %3352 = vmatpush1.bf16.msra.mxu0 %v2597
          %3353 = vmatprep.subr.bf16.mxu0 %v2602
          %3354 = vmatpush1.bf16.msra.mxu0 %v2601
          %3355 = vmatprep.subr.bf16.mxu0 %v2606
          %3356 = vmatpush1.bf16.msra.mxu0 %v2605
          %3357 = vmatprep.subr.bf16.mxu0 %v2610
          %3358 = vmatpush1.bf16.msra.mxu0 %v2609
          %3359 = vmatprep.subr.bf16.mxu0 %v2614
          %3360 = vmatpush1.bf16.msra.mxu0 %v2613
          %3361 = vmatprep.subr.bf16.mxu0 %v2618
          %3362 = vmatpush1.bf16.msra.mxu0 %v2617
          %3363 = vmatprep.mubr.bf16.mxu0 %v1058
          %3364 = vmatmul.mubr.bf16.gmra.mrb[0].mxu0 %v1057
          %v3365 = vpop.f32.mrb[0].mxu0
          %v3366 = vadd.f32 %v3325, %v3365
          %v3367 = vpop.f32.mrb[0].mxu0
          %v3368 = vadd.f32 %v3327, %v3367
          %v3369 = vpop.f32.mrb[0].mxu0
          %v3370 = vpop.f32.mrb[0].mxu0
          %3371 = vdwg.mxu0
          %3372 = vmatprep.subr.bf16.mxu0 %v2622
          %3373 = vmatpush1.bf16.msra.mxu0 %v2621
          %3374 = vmatprep.subr.bf16.mxu0 %v2626
          %3375 = vmatpush1.bf16.msra.mxu0 %v2625
          %3376 = vmatprep.subr.bf16.mxu0 %v2630
          %3377 = vmatpush1.bf16.msra.mxu0 %v2629
          %3378 = vmatprep.subr.bf16.mxu0 %v2634
          %3379 = vmatpush1.bf16.msra.mxu0 %v2633
          %3380 = vmatprep.subr.bf16.mxu0 %v2638
          %3381 = vmatpush1.bf16.msra.mxu0 %v2637
          %3382 = vmatprep.subr.bf16.mxu0 %v2642
          %3383 = vmatpush1.bf16.msra.mxu0 %v2641
          %3384 = vmatprep.subr.bf16.mxu0 %v2646
          %3385 = vmatpush1.bf16.msra.mxu0 %v2645
          %3386 = vmatprep.subr.bf16.mxu0 %v2650
          %3387 = vmatpush1.bf16.msra.mxu0 %v2649
          %3388 = vmatprep.subr.bf16.mxu0 %v2654
          %3389 = vmatpush1.bf16.msra.mxu0 %v2653
          %3390 = vmatprep.subr.bf16.mxu0 %v2658
          %3391 = vmatpush1.bf16.msra.mxu0 %v2657
          %3392 = vmatprep.subr.bf16.mxu0 %v2662
          %3393 = vmatpush1.bf16.msra.mxu0 %v2661
          %3394 = vmatprep.subr.bf16.mxu0 %v2666
          %3395 = vmatpush1.bf16.msra.mxu0 %v2665
          %3396 = vmatprep.subr.bf16.mxu0 %v2670
          %3397 = vmatpush1.bf16.msra.mxu0 %v2669
          %3398 = vmatprep.subr.bf16.mxu0 %v2674
          %3399 = vmatpush1.bf16.msra.mxu0 %v2673
          %3400 = vmatprep.subr.bf16.mxu0 %v2678
          %3401 = vmatpush1.bf16.msra.mxu0 %v2677
          %3402 = vmatprep.subr.bf16.mxu0 %v2682
          %3403 = vmatpush1.bf16.msra.mxu0 %v2681
          %3404 = vmatprep.mubr.bf16.mxu0 %v1060
          %3405 = vmatmul.mubr.bf16.gmra.mrb[0].mxu0 %v1059
          %v3406 = vpop.f32.mrb[0].mxu0
          %v3407 = vadd.f32 %v3366, %v3406
          %v3408 = vpop.f32.mrb[0].mxu0
          %v3409 = vadd.f32 %v3368, %v3408
          %v3410 = vpop.f32.mrb[0].mxu0
          %v3411 = vpop.f32.mrb[0].mxu0
          %3412 = vdwg.mxu0
          %v3413 = vmax.f32 %v3202, 0.0
          %v3414 = vmax.f32 %v3204, 0.0
          %v3415 = vmax.f32 %v3407, 0.0
          %v3416 = vmax.f32 %v3409, 0.0
          %v3417 = vpack.c.bf16 %v3413, %v3413
          %v3418 = vpack.c.bf16 %v3414, %v3414
          %v3419 = vpack.c.bf16 %v3415, %v3415
          %v3420 = vpack.c.bf16 %v3416, %v3416
          %v3421 = vld [vmem:[#allocation9] sm:$0xf]
          %v3422 = vld [vmem:[#allocation9 + $0x4] sm:$0xf]
          %v3423 = vld [vmem:[#allocation9 + $0x8] sm:$0xf]
          %v3424 = vld [vmem:[#allocation9 + $0xc] sm:$0xf]
          %v3425 = vld [vmem:[#allocation9 + $0x10] sm:$0xf]
          %v3426 = vld [vmem:[#allocation9 + $0x14] sm:$0xf]
          %v3427 = vld [vmem:[#allocation9 + $0x18] sm:$0xf]
          %v3428 = vld [vmem:[#allocation9 + $0x1c] sm:$0xf]
          %v3429 = vld [vmem:[#allocation9 + $0x20] sm:$0xf]
          %v3430 = vld [vmem:[#allocation9 + $0x24] sm:$0xf]
          %v3431 = vld [vmem:[#allocation9 + $0x28] sm:$0xf]
          %v3432 = vld [vmem:[#allocation9 + $0x2c] sm:$0xf]
          %v3433 = vld [vmem:[#allocation9 + $0x30] sm:$0xf]
          %v3434 = vld [vmem:[#allocation9 + $0x34] sm:$0xf]
          %v3435 = vld [vmem:[#allocation9 + $0x38] sm:$0xf]
          %v3436 = vld [vmem:[#allocation9 + $0x3c] sm:$0xf]
          %v3437 = vld [vmem:[#allocation9 + $0x40] sm:$0xf]
          %v3438 = vld [vmem:[#allocation9 + $0x44] sm:$0xf]
          %v3439 = vld [vmem:[#allocation9 + $0x48] sm:$0xf]
          %v3440 = vld [vmem:[#allocation9 + $0x4c] sm:$0xf]
          %v3441 = vld [vmem:[#allocation9 + $0x50] sm:$0xf]
          %v3442 = vld [vmem:[#allocation9 + $0x54] sm:$0xf]
          %v3443 = vld [vmem:[#allocation9 + $0x58] sm:$0xf]
          %v3444 = vld [vmem:[#allocation9 + $0x5c] sm:$0xf]
          %v3445 = vld [vmem:[#allocation9 + $0x60] sm:$0xf]
          %v3446 = vld [vmem:[#allocation9 + $0x64] sm:$0xf]
          %v3447 = vld [vmem:[#allocation9 + $0x68] sm:$0xf]
          %v3448 = vld [vmem:[#allocation9 + $0x6c] sm:$0xf]
          %v3449 = vld [vmem:[#allocation9 + $0x70] sm:$0xf]
          %v3450 = vld [vmem:[#allocation9 + $0x74] sm:$0xf]
          %v3451 = vld [vmem:[#allocation9 + $0x78] sm:$0xf]
          %v3452 = vld [vmem:[#allocation9 + $0x7c] sm:$0xf]
          %v3453 = vld [vmem:[#allocation9 + $0x80] sm:$0xf]
          %v3454 = vld [vmem:[#allocation9 + $0x84] sm:$0xf]
          %v3455 = vld [vmem:[#allocation9 + $0x88] sm:$0xf]
          %v3456 = vld [vmem:[#allocation9 + $0x8c] sm:$0xf]
          %v3457 = vld [vmem:[#allocation9 + $0x90] sm:$0xf]
          %v3458 = vld [vmem:[#allocation9 + $0x94] sm:$0xf]
          %v3459 = vld [vmem:[#allocation9 + $0x98] sm:$0xf]
          %v3460 = vld [vmem:[#allocation9 + $0x9c] sm:$0xf]
          %v3461 = vld [vmem:[#allocation9 + $0xa0] sm:$0xf]
          %v3462 = vld [vmem:[#allocation9 + $0xa4] sm:$0xf]
          %v3463 = vld [vmem:[#allocation9 + $0xa8] sm:$0xf]
          %v3464 = vld [vmem:[#allocation9 + $0xac] sm:$0xf]
          %v3465 = vld [vmem:[#allocation9 + $0xb0] sm:$0xf]
          %v3466 = vld [vmem:[#allocation9 + $0xb4] sm:$0xf]
          %v3467 = vld [vmem:[#allocation9 + $0xb8] sm:$0xf]
          %v3468 = vld [vmem:[#allocation9 + $0xbc] sm:$0xf]
          %v3469 = vld [vmem:[#allocation9 + $0xc0] sm:$0xf]
          %v3470 = vld [vmem:[#allocation9 + $0xc4] sm:$0xf]
          %v3471 = vld [vmem:[#allocation9 + $0xc8] sm:$0xf]
          %v3472 = vld [vmem:[#allocation9 + $0xcc] sm:$0xf]
          %v3473 = vld [vmem:[#allocation9 + $0xd0] sm:$0xf]
          %v3474 = vld [vmem:[#allocation9 + $0xd4] sm:$0xf]
          %v3475 = vld [vmem:[#allocation9 + $0xd8] sm:$0xf]
          %v3476 = vld [vmem:[#allocation9 + $0xdc] sm:$0xf]
          %v3477 = vld [vmem:[#allocation9 + $0xe0] sm:$0xf]
          %v3478 = vld [vmem:[#allocation9 + $0xe4] sm:$0xf]
          %v3479 = vld [vmem:[#allocation9 + $0xe8] sm:$0xf]
          %v3480 = vld [vmem:[#allocation9 + $0xec] sm:$0xf]
          %v3481 = vld [vmem:[#allocation9 + $0xf0] sm:$0xf]
          %v3482 = vld [vmem:[#allocation9 + $0xf4] sm:$0xf]
          %v3483 = vld [vmem:[#allocation9 + $0xf8] sm:$0xf]
          %v3484 = vld [vmem:[#allocation9 + $0xfc] sm:$0xf]
          %v3485 = vld [vmem:[#allocation11] sm:$0x1]
          %v3487 = vlaneseq
          %v3488 = vshrl.u32 %v3487, 7
          %v3489 = vsub.s32 0, %v3488
          %v3490 = vrot.slane %v3485, %v3489
          %v3556 = vunpack.c.l.b16 %v3421
          %v3557 = vunpack.c.l.b16 %v3422
          %v3558 = vunpack.c.l.b16 %v3423
          %v3559 = vunpack.c.l.b16 %v3424
          %v3560 = vunpack.c.l.b16 %v3425
          %v3561 = vunpack.c.l.b16 %v3426
          %v3562 = vunpack.c.l.b16 %v3427
          %v3563 = vunpack.c.l.b16 %v3428
          %v3564 = vunpack.c.l.b16 %v3429
          %v3565 = vunpack.c.l.b16 %v3430
          %v3566 = vunpack.c.l.b16 %v3431
          %v3567 = vunpack.c.l.b16 %v3432
          %v3568 = vunpack.c.l.b16 %v3433
          %v3569 = vunpack.c.l.b16 %v3434
          %v3570 = vunpack.c.l.b16 %v3435
          %v3571 = vunpack.c.l.b16 %v3436
          %v3572 = vunpack.c.l.b16 %v3437
          %v3573 = vunpack.c.l.b16 %v3438
          %v3574 = vunpack.c.l.b16 %v3439
          %v3575 = vunpack.c.l.b16 %v3440
          %v3576 = vunpack.c.l.b16 %v3441
          %v3577 = vunpack.c.l.b16 %v3442
          %v3578 = vunpack.c.l.b16 %v3443
          %v3579 = vunpack.c.l.b16 %v3444
          %v3580 = vunpack.c.l.b16 %v3445
          %v3581 = vunpack.c.l.b16 %v3446
          %v3582 = vunpack.c.l.b16 %v3447
          %v3583 = vunpack.c.l.b16 %v3448
          %v3584 = vunpack.c.l.b16 %v3449
          %v3585 = vunpack.c.l.b16 %v3450
          %v3586 = vunpack.c.l.b16 %v3451
          %v3587 = vunpack.c.l.b16 %v3452
          %v3588 = vunpack.c.l.b16 %v3453
          %v3589 = vunpack.c.l.b16 %v3454
          %v3590 = vunpack.c.l.b16 %v3455
          %v3591 = vunpack.c.l.b16 %v3456
          %v3592 = vunpack.c.l.b16 %v3457
          %v3593 = vunpack.c.l.b16 %v3458
          %v3594 = vunpack.c.l.b16 %v3459
          %v3595 = vunpack.c.l.b16 %v3460
          %v3596 = vunpack.c.l.b16 %v3461
          %v3597 = vunpack.c.l.b16 %v3462
          %v3598 = vunpack.c.l.b16 %v3463
          %v3599 = vunpack.c.l.b16 %v3464
          %v3600 = vunpack.c.l.b16 %v3465
          %v3601 = vunpack.c.l.b16 %v3466
          %v3602 = vunpack.c.l.b16 %v3467
          %v3603 = vunpack.c.l.b16 %v3468
          %v3604 = vunpack.c.l.b16 %v3469
          %v3605 = vunpack.c.l.b16 %v3470
          %v3606 = vunpack.c.l.b16 %v3471
          %v3607 = vunpack.c.l.b16 %v3472
          %v3608 = vunpack.c.l.b16 %v3473
          %v3609 = vunpack.c.l.b16 %v3474
          %v3610 = vunpack.c.l.b16 %v3475
          %v3611 = vunpack.c.l.b16 %v3476
          %v3612 = vunpack.c.l.b16 %v3477
          %v3613 = vunpack.c.l.b16 %v3478
          %v3614 = vunpack.c.l.b16 %v3479
          %v3615 = vunpack.c.l.b16 %v3480
          %v3616 = vunpack.c.l.b16 %v3481
          %v3617 = vunpack.c.l.b16 %v3482
          %v3618 = vunpack.c.l.b16 %v3483
          %v3619 = vunpack.c.l.b16 %v3484
          %v3620 = vpack.c.b16 %v3557, %v3556
          %v3621 = vpack.c.b16 %v3559, %v3558
          %v3622 = vpack.c.b16 %v3561, %v3560
          %v3623 = vpack.c.b16 %v3563, %v3562
          %v3624 = vpack.c.b16 %v3565, %v3564
          %v3625 = vpack.c.b16 %v3567, %v3566
          %v3626 = vpack.c.b16 %v3569, %v3568
          %v3627 = vpack.c.b16 %v3571, %v3570
          %v3628 = vpack.c.b16 %v3573, %v3572
          %v3629 = vpack.c.b16 %v3575, %v3574
          %v3630 = vpack.c.b16 %v3577, %v3576
          %v3631 = vpack.c.b16 %v3579, %v3578
          %v3632 = vpack.c.b16 %v3581, %v3580
          %v3633 = vpack.c.b16 %v3583, %v3582
          %v3634 = vpack.c.b16 %v3585, %v3584
          %v3635 = vpack.c.b16 %v3587, %v3586
          %v3636 = vpack.c.b16 %v3589, %v3588
          %v3637 = vpack.c.b16 %v3591, %v3590
          %v3638 = vpack.c.b16 %v3593, %v3592
          %v3639 = vpack.c.b16 %v3595, %v3594
          %v3640 = vpack.c.b16 %v3597, %v3596
          %v3641 = vpack.c.b16 %v3599, %v3598
          %v3642 = vpack.c.b16 %v3601, %v3600
          %v3643 = vpack.c.b16 %v3603, %v3602
          %v3644 = vpack.c.b16 %v3605, %v3604
          %v3645 = vpack.c.b16 %v3607, %v3606
          %v3646 = vpack.c.b16 %v3609, %v3608
          %v3647 = vpack.c.b16 %v3611, %v3610
          %v3648 = vpack.c.b16 %v3613, %v3612
          %v3649 = vpack.c.b16 %v3615, %v3614
          %v3650 = vpack.c.b16 %v3617, %v3616
          %v3651 = vpack.c.b16 %v3619, %v3618
          %3684 = vmatprep.subr.bf16.mxu0 0
          %3685 = vmatpush1.bf16.msra.mxu0 %v3620
          %3686 = vmatprep.subr.bf16.mxu0 0
          %3687 = vmatpush1.bf16.msra.mxu0 %v3621
          %3688 = vmatprep.subr.bf16.mxu0 0
          %3689 = vmatpush1.bf16.msra.mxu0 %v3622
          %3690 = vmatprep.subr.bf16.mxu0 0
          %3691 = vmatpush1.bf16.msra.mxu0 %v3623
          %3692 = vmatprep.subr.bf16.mxu0 0
          %3693 = vmatpush1.bf16.msra.mxu0 %v3624
          %3694 = vmatprep.subr.bf16.mxu0 0
          %3695 = vmatpush1.bf16.msra.mxu0 %v3625
          %3696 = vmatprep.subr.bf16.mxu0 0
          %3697 = vmatpush1.bf16.msra.mxu0 %v3626
          %3698 = vmatprep.subr.bf16.mxu0 0
          %3699 = vmatpush1.bf16.msra.mxu0 %v3627
          %3700 = vmatprep.subr.bf16.mxu0 0
          %3701 = vmatpush1.bf16.msra.mxu0 %v3628
          %3702 = vmatprep.subr.bf16.mxu0 0
          %3703 = vmatpush1.bf16.msra.mxu0 %v3629
          %3704 = vmatprep.subr.bf16.mxu0 0
          %3705 = vmatpush1.bf16.msra.mxu0 %v3630
          %3706 = vmatprep.subr.bf16.mxu0 0
          %3707 = vmatpush1.bf16.msra.mxu0 %v3631
          %3708 = vmatprep.subr.bf16.mxu0 0
          %3709 = vmatpush1.bf16.msra.mxu0 %v3632
          %3710 = vmatprep.subr.bf16.mxu0 0
          %3711 = vmatpush1.bf16.msra.mxu0 %v3633
          %3712 = vmatprep.subr.bf16.mxu0 0
          %3713 = vmatpush1.bf16.msra.mxu0 %v3634
          %3714 = vmatprep.subr.bf16.mxu0 0
          %3715 = vmatpush1.bf16.msra.mxu0 %v3635
          %3716 = vmatprep.mubr.bf16.mxu0 %v3418
          %3717 = vmatmul.mubr.bf16.gmra.mrb[0].mxu0 %v3417
          %v3718 = vpop.f32.mrb[0].mxu0
          %v3719 = vadd.f32 %v3490, %v3718
          %v3720 = vpop.f32.mrb[0].mxu0
          %v3721 = vpop.f32.mrb[0].mxu0
          %v3722 = vpop.f32.mrb[0].mxu0
          %3723 = vdwg.mxu0
          %3724 = vmatprep.subr.bf16.mxu0 0
          %3725 = vmatpush1.bf16.msra.mxu0 %v3636
          %3726 = vmatprep.subr.bf16.mxu0 0
          %3727 = vmatpush1.bf16.msra.mxu0 %v3637
          %3728 = vmatprep.subr.bf16.mxu0 0
          %3729 = vmatpush1.bf16.msra.mxu0 %v3638
          %3730 = vmatprep.subr.bf16.mxu0 0
          %3731 = vmatpush1.bf16.msra.mxu0 %v3639
          %3732 = vmatprep.subr.bf16.mxu0 0
          %3733 = vmatpush1.bf16.msra.mxu0 %v3640
          %3734 = vmatprep.subr.bf16.mxu0 0
          %3735 = vmatpush1.bf16.msra.mxu0 %v3641
          %3736 = vmatprep.subr.bf16.mxu0 0
          %3737 = vmatpush1.bf16.msra.mxu0 %v3642
          %3738 = vmatprep.subr.bf16.mxu0 0
          %3739 = vmatpush1.bf16.msra.mxu0 %v3643
          %3740 = vmatprep.subr.bf16.mxu0 0
          %3741 = vmatpush1.bf16.msra.mxu0 %v3644
          %3742 = vmatprep.subr.bf16.mxu0 0
          %3743 = vmatpush1.bf16.msra.mxu0 %v3645
          %3744 = vmatprep.subr.bf16.mxu0 0
          %3745 = vmatpush1.bf16.msra.mxu0 %v3646
          %3746 = vmatprep.subr.bf16.mxu0 0
          %3747 = vmatpush1.bf16.msra.mxu0 %v3647
          %3748 = vmatprep.subr.bf16.mxu0 0
          %3749 = vmatpush1.bf16.msra.mxu0 %v3648
          %3750 = vmatprep.subr.bf16.mxu0 0
          %3751 = vmatpush1.bf16.msra.mxu0 %v3649
          %3752 = vmatprep.subr.bf16.mxu0 0
          %3753 = vmatpush1.bf16.msra.mxu0 %v3650
          %3754 = vmatprep.subr.bf16.mxu0 0
          %3755 = vmatpush1.bf16.msra.mxu0 %v3651
          %3756 = vmatprep.mubr.bf16.mxu0 %v3420
          %3757 = vmatmul.mubr.bf16.gmra.mrb[0].mxu0 %v3419
          %v3758 = vpop.f32.mrb[0].mxu0
          %v3759 = vadd.f32 %v3719, %v3758
          %v3760 = vpop.f32.mrb[0].mxu0
          %v3761 = vpop.f32.mrb[0].mxu0
          %v3762 = vpop.f32.mrb[0].mxu0
          %3763 = vdwg.mxu0
          %v3764 = vmul.f32 %v3759, %v3759
          %vm3765 = vcmask 1041408
          %v3766 = vsel %vm3765, %v3764, 0.0
          %3767 = vadd.xlane.f32.xlu0 %v3766
          %v3768 = vpop.xlane.xlu0 %3767
          %v3769 = vmax.f32 %v3768, 1e-24
          %v3770 = vrsqrt.pop %v3769
          %v3771 = vmul.f32 %v3759, %v3770
          %3772 = vst [vmem:[#allocation12] sm:$0x3] %v3771
        $region68: #{tpu_custom_call.1} parent=39 // pred_fallthru
          _
        // Predicated region
        $region69: #{tpu_custom_call.1} parent=39 // pred_check
          %p3773 = pneg %p164
        $region70: #{tpu_custom_call.1} parent=39 // pred_check_branch
          %3775 = sbr.rel (%p3773) target = $region72
        $region71: #{tpu_custom_call.1} parent=39 // pred_region
          %s3777 = ssub.s32 32, 32
          %3778 = vsyncadd [#allocation5], %s3777
          %s3779 = smul.addr %s26, 32
          %s3780 = scalar_lea.hbm %s5, %s3779
          %s3782 = sshll.u32 [#allocation12], 4
          %s3783 = int_to_ptr.vmem [resolvable:$true] %s3782
          %3785 = dma.vmem_to_hbm [thread:$0]  %s3783, 32, %s3780, [#allocation5]
        $region72: #{tpu_custom_call.1} parent=39 // pred_fallthru
          _
        // Predicated region
        $region73: #{tpu_custom_call.1} parent=39 // pred_check
          %p3786 = pneg %p164
        $region74: #{tpu_custom_call.1} parent=39 // pred_check_branch
          %3788 = sbr.rel (%p3786) target = $region76
        $region75: #{tpu_custom_call.1} parent=39 // pred_region
          %3789 = dma.done [#allocation5], 32
        $region76: #{tpu_custom_call.1} parent=39 // pred_fallthru
          _
      $region40: #{tpu_custom_call.1} parent=5 // pred_fallthru
        _
      %p3790 = scmp.le.s32.totalorder 2, %s17
      // Predicated region
      $region77: #{tpu_custom_call.1} parent=5 // pred_check
        %p3791 = pneg %p3790
      $region78: #{tpu_custom_call.1} parent=5 // pred_check_branch
        %3793 = sbr.rel (%p3791) target = $region80
      $region79: #{tpu_custom_call.1} parent=5 // pred_region
        %s3794 = ssub.s32 %s17, 2
      $region80: #{tpu_custom_call.1} parent=5 // pred_fallthru
        _
    $region6: #{tpu_custom_call.1} parent=1 // loop_footer
      %s21 = sadd.s32 1, %s17
    $region7: #{tpu_custom_call.1} parent=1 // loop_footer_branch
      %16 = sbr.rel target = $region3
    $region8: #{tpu_custom_call.1} parent=1 // loop_exit
      _
    %3795 = vsyncpa [#allocation4], 1
    %s3796 = scalar_lea.sflag [#allocation4], 1
    %3797 = vsyncpa %s3796, 1
    %3798 = vsyncpa [#allocation7], 1
    %3799 = vsyncpa [#allocation10], 1
    %3800 = vsyncpa [#allocation5], 1
    %s3801 = scalar_lea.sflag [#allocation5], 1
    %3802 = vsyncpa %s3801, 1

</llo_original>
